<compile_context>
chip_gen: v6e
topology: v6e:2x2x1
jax: 0.10.0
libtpu: 0.0.40
codegen_flags: <defaults>
</compile_context>

<pallas_src>
import numpy as np
import jax
import jax.numpy as jnp
from jax.experimental import pallas as pl
from jax.experimental.pallas import tpu as pltpu


# ----------------------------------------------------------------------------
# Fused kernel: MLP (transposed) -> exp_so3 -> torch-layout (TN, 12L) block
# ----------------------------------------------------------------------------
def _fc_se3_kernel(x_ref, w0_ref, b0_ref, w1_ref, b1_ref, w2_ref, b2_ref,
                   perm_ref, out_ref):
    hp = jax.lax.Precision.HIGHEST

    # ---------------- fused MLP (features on sublanes, batch on lanes) ------
    x = x_ref[...]                       # (Cin, TN)
    w0 = w0_ref[...]                     # (H0, Cin)
    cin = x.shape[0]
    if cin <= 8:
        # Degenerate contraction dim: do it on the VPU, skip the MXU pass.
        h = w0[:, 0:1] * x[0:1, :]
        for k in range(1, cin):
            h = h + w0[:, k:k + 1] * x[k:k + 1, :]
    else:
        h = jnp.dot(w0, x, preferred_element_type=jnp.float32, precision=hp)
    h = jnp.maximum(h + b0_ref[...], 0.0)                                   # ReLU
    h = jnp.dot(w1_ref[...], h, preferred_element_type=jnp.float32, precision=hp)
    h = jnp.maximum(h + b1_ref[...], 0.0)                                   # ReLU
    y = jnp.dot(w2_ref[...], h, preferred_element_type=jnp.float32,
                precision=hp) + b2_ref[...]
    # y: (6*L, TN), rows grouped by component: [wx | wy | wz | px | py | pz]
    # TODO(synk): if len_traj is ever not a multiple of 8, pad each component
    # slab (and the permuted w2/b2 rows) to a multiple of 8 sublanes in
    # prepare_params so these slices / stores stay (8,128)-tile aligned.

    L = y.shape[0] // 6
    wx = y[0 * L:1 * L, :]
    wy = y[1 * L:2 * L, :]
    wz = y[2 * L:3 * L, :]
    px = y[3 * L:4 * L, :]
    py = y[4 * L:5 * L, :]
    pz = y[5 * L:6 * L, :]

    # -------------- Rodrigues / exp_so3: (L, TN) lane-dense VPU work --------
    # Shared sub-products computed once; temporaries consumed promptly to keep
    # live vector state small (matters most on v5e's single store slot).
    wxx = wx * wx
    wyy = wy * wy
    wzz = wz * wz
    t2 = wxx + wyy + wzz                          # theta^2
    syz = wyy + wzz
    sxz = wxx + wzz
    sxy = wxx + wyy

    small = t2 < 1e-8
    safe_t2 = jnp.where(small, 1.0, t2)
    theta = jnp.sqrt(safe_t2)
    sin_t = jnp.sin(theta)
    sin_h = jnp.sin(0.5 * theta)
    A = jnp.where(small, 1.0 - t2 * (1.0 / 6.0), sin_t / theta)
    # (1 - cos)/theta^2 via half-angle form: no catastrophic cancellation.
    Bc = jnp.where(small, 0.5 - t2 * (1.0 / 24.0),
                   2.0 * (sin_h * sin_h) / safe_t2)

    Bxy = Bc * (wx * wy)
    Bxz = Bc * (wx * wz)
    Byz = Bc * (wy * wz)
    Awx = A * wx
    Awy = A * wy
    Awz = A * wz
    one = jnp.ones_like(t2)

    comps = (
        one - Bc * syz,   Bxy - Awz,       Bxz + Awy,       px,
        Bxy + Awz,        one - Bc * sxz,  Byz - Awx,       py,
        Bxz - Awy,        Byz + Awx,       one - Bc * sxy,  pz,
    )

    # -------------- output assembly, entirely in-kernel ---------------------
    # component-major slab stack: rows ordered c*L + t
    y_cm = jnp.concatenate(comps, axis=0)                       # (12L, TN)
    # row interleave to torch order t*12 + c via a 0/1 permutation matmul
    # (MXU is nowhere near its roofline here, so this is effectively free
    #  relative to the output DMA).
    y_il = jnp.dot(perm_ref[...], y_cm,
                   preferred_element_type=jnp.float32, precision=hp)
    # single 2-D transpose: batch back onto sublanes -> lane-dense block store
    out_ref[...] = y_il.T.astype(out_ref.dtype)                 # (TN, 12L)


# ----------------------------------------------------------------------------
# Wrapper glue
# ----------------------------------------------------------------------------
def _round_up(n, m):
    return ((n + m - 1) // m) * m


def _choose_lane_tile(batch):
    """Largest lane (batch) tile from {2048,...,128} whose padding overhead is
    small; batch is always padded up to a multiple of the returned tile."""
    for t in (2048, 1024, 512, 256, 128):
        pad = (-batch) % t
        if t <= batch and pad <= max(127, batch // 8):
            return t
    return 128


def prepare_params(params, len_traj):
    """One-time transform of nn.Linear-style params ((in, out) weights,
    (1, out) biases) into the transposed / component-permuted layout the fused
    kernel consumes, plus the constant row-interleave matrix."""
    w0, b0, w1, b1, w2, b2 = params
    L = len_traj
    # new row index c*L + t  <-  old output column index t*6 + c
    perm6 = (np.arange(L)[None, :] * 6 + np.arange(6)[:, None]).reshape(-1)
    # interleave matrix: y_il[t*12 + c] = y_cm[c*L + t]
    c12 = np.repeat(np.arange(12), L)
    tt = np.tile(np.arange(L), 12)
    P = np.zeros((12 * L, 12 * L), np.float32)
    P[tt * 12 + c12, c12 * L + tt] = 1.0
    return (w0.T, b0.T, w1.T, b1.T, w2.T[perm6], b2.T[perm6], jnp.asarray(P))


def fc_se3_forward(x, prep_params, out_dtype=jnp.float32):
    """FC_SE3.forward: MLP -> view(-1,6) -> exp_so3 | p -> (batch, len_traj*12).

    out_dtype=jnp.bfloat16 halves the HBM write traffic of this
    write-bandwidth-bound kernel if the consumer tolerates it (Rodrigues math
    stays in f32 either way); default keeps the module's f32 semantics."""
    w0t, b0t, w1t, b1t, w2t, b2t, perm = prep_params
    batch = x.shape[0]
    L = w2t.shape[0] // 6

    # Pad batch to a multiple of the lane tile: unmasked lane-dense stores,
    # full pipelining, and a shardable "parallel" grid axis.
    tn = _choose_lane_tile(batch)
    batch_pad = _round_up(max(batch, tn), tn)
    if batch_pad != batch:
        x = jnp.pad(x, ((0, batch_pad - batch), (0, 0)))
    x_t = x.T                                           # (Cin, batch_pad)
    grid = (batch_pad // tn,)

    def resident(shape):
        return pl.BlockSpec(shape, lambda j: (0, 0))    # stays in VMEM

    out = pl.pallas_call(
        _fc_se3_kernel,
        out_shape=jax.ShapeDtypeStruct((batch_pad, 12 * L), out_dtype),
        grid=grid,
        in_specs=[
            pl.BlockSpec((x_t.shape[0], tn), lambda j: (0, j)),
            resident(w0t.shape), resident(b0t.shape),
            resident(w1t.shape), resident(b1t.shape),
            resident(w2t.shape), resident(b2t.shape),
            resident(perm.shape),
        ],
        out_specs=pl.BlockSpec((tn, 12 * L), lambda j: (j, 0)),
        compiler_params=pltpu.CompilerParams(
            dimension_semantics=("parallel",),           # megacore sharding
            vmem_limit_bytes=(48 * 1024 * 1024 if tn >= 1024 else None)),
    )(x_t, w0t, b0t, w1t, b1t, w2t, b2t, perm)

    # Drop padded rows (no-op when batch was already a tile multiple).
    return out[:batch]


# ----------------------------------------------------------------------------
# Pure-JAX reference (sanity check) and deterministic init
# ----------------------------------------------------------------------------
def _reference_forward(x, params):
    w0, b0, w1, b1, w2, b2 = params
    hp = jax.lax.Precision.HIGHEST
    h = jnp.maximum(jnp.dot(x, w0, precision=hp) + b0, 0.0)
    h = jnp.maximum(jnp.dot(h, w1, precision=hp) + b1, 0.0)
    y = (jnp.dot(h, w2, precision=hp) + b2).reshape(-1, 6)
    w, p = y[:, :3], y[:, 3:]
    wx, wy, wz = w[:, 0:1], w[:, 1:2], w[:, 2:3]
    t2 = wx * wx + wy * wy + wz * wz
    small = t2 < 1e-8
    safe_t2 = jnp.where(small, 1.0, t2)
    theta = jnp.sqrt(safe_t2)
    A = jnp.where(small, 1.0 - t2 / 6.0, jnp.sin(theta) / theta)
    Bc = jnp.where(small, 0.5 - t2 / 24.0,
                   2.0 * jnp.sin(0.5 * theta) ** 2 / safe_t2)
    one = jnp.ones_like(t2)
    r = jnp.concatenate([
        one - Bc * (wy * wy + wz * wz), Bc * wx * wy - A * wz, Bc * wx * wz + A * wy, p[:, 0:1],
        Bc * wx * wy + A * wz, one - Bc * (wx * wx + wz * wz), Bc * wy * wz - A * wx, p[:, 1:2],
        Bc * wx * wz - A * wy, Bc * wy * wz + A * wx, one - Bc * (wx * wx + wy * wy), p[:, 2:3],
    ], axis=-1)
    return r.reshape(x.shape[0], -1)


def init_params(key, in_chan, l_hidden, len_traj):
    dims = [in_chan] + list(l_hidden) + [6 * len_traj]
    params = []
    for i in range(len(dims) - 1):
        key, kw, kb = jax.random.split(key, 3)
        scale = 1.0 / jnp.sqrt(jnp.float32(dims[i]))
        w = jax.random.uniform(kw, (dims[i], dims[i + 1]), jnp.float32, -scale, scale)
        b = jax.random.uniform(kb, (1, dims[i + 1]), jnp.float32, -scale, scale)
        params += [w, b]
    return params


if __name__ == "__main__":
    # Small config: in_chan=2, l_hidden=[32,32], out_chan=16*12 -> len_traj=16
    B = 8
    in_chan = 2
    l_hidden = [32, 32]
    out_chan = 16 * 12
    len_traj = out_chan // 12

    key = jax.random.PRNGKey(0)
    key, kx = jax.random.split(key)
    x = jax.random.normal(kx, (B, in_chan), jnp.float32)
    params = init_params(key, in_chan, l_hidden, len_traj)

    prep = prepare_params(params, len_traj)
    y_global = fc_se3_forward(x, prep)
    jax.block_until_ready(y_global)

    assert y_global.shape == (B, out_chan), y_global.shape
    y_ref = _reference_forward(x, params)
    assert bool(jnp.all(jnp.isfinite(y_global)))
    assert bool(jnp.allclose(y_global, y_ref, rtol=2e-2, atol=2e-2)), \
        float(jnp.max(jnp.abs(y_global - y_ref)))
    print("KERNEL_OK")
</pallas_src>

<mosaic_0001>
module attributes {stable_mosaic.version = 11 : i64} {
  func.func @_fc_se3_kernel(%arg0: i32, %arg1: memref<2x128xf32, #tpu.memory_space<vmem>>, %arg2: memref<32x2xf32, #tpu.memory_space<vmem>>, %arg3: memref<32x1xf32, #tpu.memory_space<vmem>>, %arg4: memref<32x32xf32, #tpu.memory_space<vmem>>, %arg5: memref<32x1xf32, #tpu.memory_space<vmem>>, %arg6: memref<96x32xf32, #tpu.memory_space<vmem>>, %arg7: memref<96x1xf32, #tpu.memory_space<vmem>>, %arg8: memref<192x192xf32, #tpu.memory_space<vmem>>, %arg9: memref<128x192xf32, #tpu.memory_space<vmem>>) attributes {dimension_semantics = [#tpu.dimension_semantics<parallel>], iteration_bounds = array<i64: 1>, scalar_prefetch = 0 : i64, scratch_operands = 0 : i64, tpu.core_type = #tpu.core_type<tc>, window_params = [{transform_indices = @transform_0, window_bounds = array<i64: 2, 128>}, {pipeline_mode = #tpu.pipeline_mode<synchronous>, transform_indices = @transform_1, window_bounds = array<i64: 32, 2>}, {pipeline_mode = #tpu.pipeline_mode<synchronous>, transform_indices = @transform_2, window_bounds = array<i64: 32, 1>}, {pipeline_mode = #tpu.pipeline_mode<synchronous>, transform_indices = @transform_3, window_bounds = array<i64: 32, 32>}, {pipeline_mode = #tpu.pipeline_mode<synchronous>, transform_indices = @transform_4, window_bounds = array<i64: 32, 1>}, {pipeline_mode = #tpu.pipeline_mode<synchronous>, transform_indices = @transform_5, window_bounds = array<i64: 96, 32>}, {pipeline_mode = #tpu.pipeline_mode<synchronous>, transform_indices = @transform_6, window_bounds = array<i64: 96, 1>}, {pipeline_mode = #tpu.pipeline_mode<synchronous>, transform_indices = @transform_7, window_bounds = array<i64: 192, 192>}, {transform_indices = @transform_8, window_bounds = array<i64: 128, 192>}]} {
    %c0 = arith.constant 0 : index
    %c0_0 = arith.constant 0 : index
    %0 = vector.load %arg1[%c0, %c0_0] : memref<2x128xf32, #tpu.memory_space<vmem>>, vector<2x128xf32>
    %c0_1 = arith.constant 0 : index
    %c0_2 = arith.constant 0 : index
    %1 = vector.load %arg2[%c0_1, %c0_2] : memref<32x2xf32, #tpu.memory_space<vmem>>, vector<32x2xf32>
    %2 = vector.extract_strided_slice %1 {offsets = [0, 0], sizes = [32, 1], strides = [1, 1]} : vector<32x2xf32> to vector<32x1xf32>
    %3 = vector.extract_strided_slice %0 {offsets = [0, 0], sizes = [1, 128], strides = [1, 1]} : vector<2x128xf32> to vector<1x128xf32>
    %4 = vector.broadcast %2 : vector<32x1xf32> to vector<32x128xf32>
    %5 = vector.broadcast %3 : vector<1x128xf32> to vector<32x128xf32>
    %6 = arith.mulf %4, %5 : vector<32x128xf32>
    %7 = vector.extract_strided_slice %1 {offsets = [0, 1], sizes = [32, 1], strides = [1, 1]} : vector<32x2xf32> to vector<32x1xf32>
    %8 = vector.extract_strided_slice %0 {offsets = [1, 0], sizes = [1, 128], strides = [1, 1]} : vector<2x128xf32> to vector<1x128xf32>
    %9 = vector.broadcast %7 : vector<32x1xf32> to vector<32x128xf32>
    %10 = vector.broadcast %8 : vector<1x128xf32> to vector<32x128xf32>
    %11 = arith.mulf %9, %10 : vector<32x128xf32>
    %12 = arith.addf %6, %11 : vector<32x128xf32>
    %c0_3 = arith.constant 0 : index
    %c0_4 = arith.constant 0 : index
    %13 = vector.load %arg3[%c0_3, %c0_4] : memref<32x1xf32, #tpu.memory_space<vmem>>, vector<32x1xf32>
    %14 = vector.broadcast %13 : vector<32x1xf32> to vector<32x128xf32>
    %15 = arith.addf %12, %14 : vector<32x128xf32>
    %cst = arith.constant 0.000000e+00 : f32
    %16 = vector.broadcast %cst : f32 to vector<32x128xf32>
    %17 = arith.maximumf %15, %16 : vector<32x128xf32>
    %c0_5 = arith.constant 0 : index
    %c0_6 = arith.constant 0 : index
    %18 = vector.load %arg4[%c0_5, %c0_6] : memref<32x32xf32, #tpu.memory_space<vmem>>, vector<32x32xf32>
    %cst_7 = arith.constant dense<0.000000e+00> : vector<32x128xf32>
    %19 = tpu.matmul %18, %17, %cst_7 {dimension_numbers = #tpu.dot_dimension_numbers<[1], [0], [0], [1], [0, 0, 1, 1], [], []>, precision = #tpu.contract_precision<fp32>} : vector<32x32xf32>, vector<32x128xf32>, vector<32x128xf32> -> vector<32x128xf32>
    %c0_8 = arith.constant 0 : index
    %c0_9 = arith.constant 0 : index
    %20 = vector.load %arg5[%c0_8, %c0_9] : memref<32x1xf32, #tpu.memory_space<vmem>>, vector<32x1xf32>
    %21 = vector.broadcast %20 : vector<32x1xf32> to vector<32x128xf32>
    %22 = arith.addf %19, %21 : vector<32x128xf32>
    %cst_10 = arith.constant 0.000000e+00 : f32
    %23 = vector.broadcast %cst_10 : f32 to vector<32x128xf32>
    %24 = arith.maximumf %22, %23 : vector<32x128xf32>
    %c0_11 = arith.constant 0 : index
    %c0_12 = arith.constant 0 : index
    %25 = vector.load %arg6[%c0_11, %c0_12] : memref<96x32xf32, #tpu.memory_space<vmem>>, vector<96x32xf32>
    %cst_13 = arith.constant dense<0.000000e+00> : vector<96x128xf32>
    %26 = tpu.matmul %25, %24, %cst_13 {dimension_numbers = #tpu.dot_dimension_numbers<[1], [0], [0], [1], [0, 0, 1, 1], [], []>, precision = #tpu.contract_precision<fp32>} : vector<96x32xf32>, vector<32x128xf32>, vector<96x128xf32> -> vector<96x128xf32>
    %c0_14 = arith.constant 0 : index
    %c0_15 = arith.constant 0 : index
    %27 = vector.load %arg7[%c0_14, %c0_15] : memref<96x1xf32, #tpu.memory_space<vmem>>, vector<96x1xf32>
    %28 = vector.broadcast %27 : vector<96x1xf32> to vector<96x128xf32>
    %29 = arith.addf %26, %28 : vector<96x128xf32>
    %30 = vector.extract_strided_slice %29 {offsets = [0, 0], sizes = [16, 128], strides = [1, 1]} : vector<96x128xf32> to vector<16x128xf32>
    %31 = vector.extract_strided_slice %29 {offsets = [16, 0], sizes = [16, 128], strides = [1, 1]} : vector<96x128xf32> to vector<16x128xf32>
    %32 = vector.extract_strided_slice %29 {offsets = [32, 0], sizes = [16, 128], strides = [1, 1]} : vector<96x128xf32> to vector<16x128xf32>
    %33 = vector.extract_strided_slice %29 {offsets = [48, 0], sizes = [16, 128], strides = [1, 1]} : vector<96x128xf32> to vector<16x128xf32>
    %34 = vector.extract_strided_slice %29 {offsets = [64, 0], sizes = [16, 128], strides = [1, 1]} : vector<96x128xf32> to vector<16x128xf32>
    %35 = vector.extract_strided_slice %29 {offsets = [80, 0], sizes = [16, 128], strides = [1, 1]} : vector<96x128xf32> to vector<16x128xf32>
    %36 = arith.mulf %30, %30 : vector<16x128xf32>
    %37 = arith.mulf %31, %31 : vector<16x128xf32>
    %38 = arith.mulf %32, %32 : vector<16x128xf32>
    %39 = arith.addf %36, %37 : vector<16x128xf32>
    %40 = arith.addf %39, %38 : vector<16x128xf32>
    %41 = arith.addf %37, %38 : vector<16x128xf32>
    %42 = arith.addf %36, %38 : vector<16x128xf32>
    %43 = arith.addf %36, %37 : vector<16x128xf32>
    %cst_16 = arith.constant 9.99999993E-9 : f32
    %44 = vector.broadcast %cst_16 : f32 to vector<16x128xf32>
    %45 = arith.cmpf olt, %40, %44 : vector<16x128xf32>
    %cst_17 = arith.constant 1.000000e+00 : f32
    %46 = vector.broadcast %cst_17 : f32 to vector<16x128xf32>
    %47 = arith.select %45, %46, %40 : vector<16x128xi1>, vector<16x128xf32>
    %48 = math.sqrt %47 : vector<16x128xf32>
    %49 = math.sin %48 : vector<16x128xf32>
    %cst_18 = arith.constant 5.000000e-01 : f32
    %50 = vector.broadcast %cst_18 : f32 to vector<16x128xf32>
    %51 = arith.mulf %50, %48 : vector<16x128xf32>
    %52 = math.sin %51 : vector<16x128xf32>
    %cst_19 = arith.constant 0.166666672 : f32
    %53 = vector.broadcast %cst_19 : f32 to vector<16x128xf32>
    %54 = arith.mulf %40, %53 : vector<16x128xf32>
    %cst_20 = arith.constant 1.000000e+00 : f32
    %55 = vector.broadcast %cst_20 : f32 to vector<16x128xf32>
    %56 = arith.subf %55, %54 : vector<16x128xf32>
    %57 = arith.divf %49, %48 : vector<16x128xf32>
    %58 = arith.select %45, %56, %57 : vector<16x128xi1>, vector<16x128xf32>
    %cst_21 = arith.constant 0.0416666679 : f32
    %59 = vector.broadcast %cst_21 : f32 to vector<16x128xf32>
    %60 = arith.mulf %40, %59 : vector<16x128xf32>
    %cst_22 = arith.constant 5.000000e-01 : f32
    %61 = vector.broadcast %cst_22 : f32 to vector<16x128xf32>
    %62 = arith.subf %61, %60 : vector<16x128xf32>
    %63 = arith.mulf %52, %52 : vector<16x128xf32>
    %cst_23 = arith.constant 2.000000e+00 : f32
    %64 = vector.broadcast %cst_23 : f32 to vector<16x128xf32>
    %65 = arith.mulf %64, %63 : vector<16x128xf32>
    %66 = arith.divf %65, %47 : vector<16x128xf32>
    %67 = arith.select %45, %62, %66 : vector<16x128xi1>, vector<16x128xf32>
    %68 = arith.mulf %30, %31 : vector<16x128xf32>
    %69 = arith.mulf %67, %68 : vector<16x128xf32>
    %70 = arith.mulf %30, %32 : vector<16x128xf32>
    %71 = arith.mulf %67, %70 : vector<16x128xf32>
    %72 = arith.mulf %31, %32 : vector<16x128xf32>
    %73 = arith.mulf %67, %72 : vector<16x128xf32>
    %74 = arith.mulf %58, %30 : vector<16x128xf32>
    %75 = arith.mulf %58, %31 : vector<16x128xf32>
    %76 = arith.mulf %58, %32 : vector<16x128xf32>
    %cst_24 = arith.constant 1.000000e+00 : f32
    %77 = vector.broadcast %cst_24 : f32 to vector<16x128xf32>
    %78 = arith.mulf %67, %41 : vector<16x128xf32>
    %79 = arith.subf %77, %78 : vector<16x128xf32>
    %80 = arith.subf %69, %76 : vector<16x128xf32>
    %81 = arith.addf %71, %75 : vector<16x128xf32>
    %82 = arith.addf %69, %76 : vector<16x128xf32>
    %83 = arith.mulf %67, %42 : vector<16x128xf32>
    %84 = arith.subf %77, %83 : vector<16x128xf32>
    %85 = arith.subf %73, %74 : vector<16x128xf32>
    %86 = arith.subf %71, %75 : vector<16x128xf32>
    %87 = arith.addf %73, %74 : vector<16x128xf32>
    %88 = arith.mulf %67, %43 : vector<16x128xf32>
    %89 = arith.subf %77, %88 : vector<16x128xf32>
    %90 = tpu.concatenate %79, %80, %81, %33, %82, %84, %85, %34, %86, %87, %89, %35 in 0 : vector<16x128xf32>, vector<16x128xf32>, vector<16x128xf32>, vector<16x128xf32>, vector<16x128xf32>, vector<16x128xf32>, vector<16x128xf32>, vector<16x128xf32>, vector<16x128xf32>, vector<16x128xf32>, vector<16x128xf32>, vector<16x128xf32> -> vector<192x128xf32>
    %c0_25 = arith.constant 0 : index
    %c0_26 = arith.constant 0 : index
    %91 = vector.load %arg8[%c0_25, %c0_26] : memref<192x192xf32, #tpu.memory_space<vmem>>, vector<192x192xf32>
    %cst_27 = arith.constant dense<0.000000e+00> : vector<192x128xf32>
    %92 = tpu.matmul %91, %90, %cst_27 {dimension_numbers = #tpu.dot_dimension_numbers<[1], [0], [0], [1], [0, 0, 1, 1], [], []>, precision = #tpu.contract_precision<fp32>} : vector<192x192xf32>, vector<192x128xf32>, vector<192x128xf32> -> vector<192x128xf32>
    %93 = tpu.transpose %92, [1, 0] : vector<192x128xf32> -> vector<128x192xf32>
    %c0_28 = arith.constant 0 : index
    %c0_29 = arith.constant 0 : index
    %94 = vector.load %arg9[%c0_28, %c0_29] : memref<128x192xf32, #tpu.memory_space<vmem>>, vector<128x192xf32>
    tpu.vector_store %arg9[%c0_28, %c0_29], %93 {strides = array<i32>} : memref<128x192xf32, #tpu.memory_space<vmem>>, vector<128x192xf32>,
    return
  }
  func.func @transform_0(%arg0: i32) -> (i32, i32) {
    %c0_i32 = arith.constant 0 : i32
    %c0_i32_0 = arith.constant 0 : i32
    return %c0_i32, %arg0 : i32, i32
  }
  func.func @transform_1(%arg0: i32) -> (i32, i32) {
    %c0_i32 = arith.constant 0 : i32
    %c0_i32_0 = arith.constant 0 : i32
    %c0_i32_1 = arith.constant 0 : i32
    return %c0_i32, %c0_i32_0 : i32, i32
  }
  func.func @transform_2(%arg0: i32) -> (i32, i32) {
    %c0_i32 = arith.constant 0 : i32
    %c0_i32_0 = arith.constant 0 : i32
    %c0_i32_1 = arith.constant 0 : i32
    return %c0_i32, %c0_i32_0 : i32, i32
  }
  func.func @transform_3(%arg0: i32) -> (i32, i32) {
    %c0_i32 = arith.constant 0 : i32
    %c0_i32_0 = arith.constant 0 : i32
    %c0_i32_1 = arith.constant 0 : i32
    return %c0_i32, %c0_i32_0 : i32, i32
  }
  func.func @transform_4(%arg0: i32) -> (i32, i32) {
    %c0_i32 = arith.constant 0 : i32
    %c0_i32_0 = arith.constant 0 : i32
    %c0_i32_1 = arith.constant 0 : i32
    return %c0_i32, %c0_i32_0 : i32, i32
  }
  func.func @transform_5(%arg0: i32) -> (i32, i32) {
    %c0_i32 = arith.constant 0 : i32
    %c0_i32_0 = arith.constant 0 : i32
    %c0_i32_1 = arith.constant 0 : i32
    return %c0_i32, %c0_i32_0 : i32, i32
  }
  func.func @transform_6(%arg0: i32) -> (i32, i32) {
    %c0_i32 = arith.constant 0 : i32
    %c0_i32_0 = arith.constant 0 : i32
    %c0_i32_1 = arith.constant 0 : i32
    return %c0_i32, %c0_i32_0 : i32, i32
  }
  func.func @transform_7(%arg0: i32) -> (i32, i32) {
    %c0_i32 = arith.constant 0 : i32
    %c0_i32_0 = arith.constant 0 : i32
    %c0_i32_1 = arith.constant 0 : i32
    return %c0_i32, %c0_i32_0 : i32, i32
  }
  func.func @transform_8(%arg0: i32) -> (i32, i32) {
    %c0_i32 = arith.constant 0 : i32
    %c0_i32_0 = arith.constant 0 : i32
    return %arg0, %c0_i32 : i32, i32
  }
}

</mosaic_0001>

<llo_original>
// kernel: tpu_custom_call.1
$region0: #{tpu_custom_call.1}
  #allocation0 [shape = 'u32[]', space=smem, size = 0x4, offset = 0x4, fixed_abs, tag = 'smem constant byte address 0x4 - core index']
  #allocation1 [shape = 'u32[144,128]{1,0:T(1,128)}', space=vmem, size = 0x12000, scoped, tag = 'internal scratch']
  %s0 = inlined_call_operand.vmem [shape: f32[2,128], index: 0, kind: input, shape index: {}]
  %s1 = inlined_call_operand.vmem [shape: f32[32,2], index: 1, kind: input, shape index: {}]
  %s2 = inlined_call_operand.vmem [shape: f32[32,1], index: 2, kind: input, shape index: {}]
  %s3 = inlined_call_operand.vmem [shape: f32[32,32], index: 3, kind: input, shape index: {}]
  %s4 = inlined_call_operand.vmem [shape: f32[32,1], index: 4, kind: input, shape index: {}]
  %s5 = inlined_call_operand.vmem [shape: f32[96,32], index: 5, kind: input, shape index: {}]
  %s6 = inlined_call_operand.vmem [shape: f32[96,1], index: 6, kind: input, shape index: {}]
  %s7 = inlined_call_operand.hbm [shape: f32[192,192], index: 7, kind: input, shape index: {}]
  %s8 = inlined_call_operand.vmem [shape: f32[128,192], index: 8, kind: output, shape index: {}]
  %s9 = sld [smem:[#allocation0]]
  $region46: #{tpu_custom_call.1} parent=0
    _
  %s11 = ssub.s32 1, %s9
  %s12 = scalar_select 0, %s11, %s9
  $region1: #{tpu_custom_call.1} parent=0
    #allocation2 [shape = 'u8[196608]{0}', space=vmem, size = 0x30000, scoped, tag = 'input window, operand 7, single buffered']
    #allocation3 [shape = 's32[1]{0}', space=sflag, size = 0x4, scoped, tag = 'scoped memory for tpu_custom_call.1']
    %13 = vsyncpa [#allocation3], 0
    // Predicated region
    $region2: #{tpu_custom_call.1} parent=1 // pred_check
      _
    $region3: #{tpu_custom_call.1} parent=1 // pred_check_branch
      %15 = sbr.rel (0) target = $region5
    $region4: #{tpu_custom_call.1} parent=1 // pred_region
      _
    $region5: #{tpu_custom_call.1} parent=1 // pred_fallthru
      _
    // Predicated region
    $region6: #{tpu_custom_call.1} parent=1 // pred_check
      _
    $region7: #{tpu_custom_call.1} parent=1 // pred_check_branch
      %17 = sbr.rel (0) target = $region9
    $region8: #{tpu_custom_call.1} parent=1 // pred_region
      _
    $region9: #{tpu_custom_call.1} parent=1 // pred_fallthru
      _
    // Predicated region
    $region10: #{tpu_custom_call.1} parent=1 // pred_check
      _
    $region11: #{tpu_custom_call.1} parent=1 // pred_check_branch
      %19 = sbr.rel (0) target = $region13
    $region12: #{tpu_custom_call.1} parent=1 // pred_region
      _
    $region13: #{tpu_custom_call.1} parent=1 // pred_fallthru
      _
    // Predicated region
    $region14: #{tpu_custom_call.1} parent=1 // pred_check
      _
    $region15: #{tpu_custom_call.1} parent=1 // pred_check_branch
      %21 = sbr.rel (0) target = $region17
    $region16: #{tpu_custom_call.1} parent=1 // pred_region
      _
    $region17: #{tpu_custom_call.1} parent=1 // pred_fallthru
      _
    // Predicated region
    $region18: #{tpu_custom_call.1} parent=1 // pred_check
      _
    $region19: #{tpu_custom_call.1} parent=1 // pred_check_branch
      %23 = sbr.rel (0) target = $region21
    $region20: #{tpu_custom_call.1} parent=1 // pred_region
      _
    $region21: #{tpu_custom_call.1} parent=1 // pred_fallthru
      _
    // Predicated region
    $region22: #{tpu_custom_call.1} parent=1 // pred_check
      _
    $region23: #{tpu_custom_call.1} parent=1 // pred_check_branch
      %25 = sbr.rel (0) target = $region25
    $region24: #{tpu_custom_call.1} parent=1 // pred_region
      _
    $region25: #{tpu_custom_call.1} parent=1 // pred_fallthru
      _
    // Predicated region
    $region26: #{tpu_custom_call.1} parent=1 // pred_check
      _
    $region27: #{tpu_custom_call.1} parent=1 // pred_check_branch
      %27 = sbr.rel (0) target = $region29
    $region28: #{tpu_custom_call.1} parent=1 // pred_region
      _
    $region29: #{tpu_custom_call.1} parent=1 // pred_fallthru
      _
    // Predicated region
    $region30: #{tpu_custom_call.1} parent=1 // pred_check
      _
    $region31: #{tpu_custom_call.1} parent=1 // pred_check_branch
      %29 = sbr.rel (0) target = $region33
    $region32: #{tpu_custom_call.1} parent=1 // pred_region
      %s31 = ssub.s32 6144, 6144
      %32 = vsyncadd [#allocation3], %s31
      %s33 = sshll.u32 [#allocation2], 4
      %s34 = int_to_ptr.vmem [resolvable:$true] %s33
      %39 = dma.hbm_to_vmem [thread:$0]  %s7, 6144, %s34, [#allocation3], 256, 256, 16
    $region33: #{tpu_custom_call.1} parent=1 // pred_fallthru
      _
    // Predicated region
    $region34: #{tpu_custom_call.1} parent=1 // pred_check
      _
    $region35: #{tpu_custom_call.1} parent=1 // pred_check_branch
      %41 = sbr.rel (0) target = $region37
    $region36: #{tpu_custom_call.1} parent=1 // pred_region
      %42 = dma.done [#allocation3], 6144
    $region37: #{tpu_custom_call.1} parent=1 // pred_fallthru
      _
    %v43 = vld [vmem:[%s0] sm:$0x3]
    %v44 = vld [vmem:[%s1] sm:$0xff]
    %v45 = vld [vmem:[%s1 + $0x8] sm:$0xff]
    %v46 = vld [vmem:[%s1 + $0x10] sm:$0xff]
    %v47 = vld [vmem:[%s1 + $0x18] sm:$0xff]
    %49 = vset.pattern.permute.xlu0 0
    %50 = vperm.xlu0 %49, %v44
    %v51 = vpop.permute.xlu0 %50
    %54 = vset.pattern.permute.xlu0 0
    %55 = vperm.xlu0 %54, %v45
    %v56 = vpop.permute.xlu0 %55
    %59 = vset.pattern.permute.xlu0 0
    %60 = vperm.xlu0 %59, %v46
    %v61 = vpop.permute.xlu0 %60
    %64 = vset.pattern.permute.xlu0 0
    %65 = vperm.xlu0 %64, %v47
    %v66 = vpop.permute.xlu0 %65
    %v68 = vlaneseq
    %v69 = vshrl.u32 %v68, 7
    %v70 = vsub.s32 0, %v69
    %v71 = vrot.slane %v43, %v70
    %v72 = vmul.f32 %v51, %v71
    %v73 = vmul.f32 %v56, %v71
    %v74 = vmul.f32 %v61, %v71
    %v75 = vmul.f32 %v66, %v71
    %76 = vset.pattern.permute.xlu0 1
    %77 = vperm.xlu0 %76, %v44
    %v78 = vpop.permute.xlu0 %77
    %80 = vset.pattern.permute.xlu0 1
    %81 = vperm.xlu0 %80, %v45
    %v82 = vpop.permute.xlu0 %81
    %84 = vset.pattern.permute.xlu0 1
    %85 = vperm.xlu0 %84, %v46
    %v86 = vpop.permute.xlu0 %85
    %88 = vset.pattern.permute.xlu0 1
    %89 = vperm.xlu0 %88, %v47
    %v90 = vpop.permute.xlu0 %89
    %v92 = vlaneseq
    %v93 = vshrl.u32 %v92, 7
    %v94 = vsub.s32 1, %v93
    %v95 = vrot.slane %v43, %v94
    %v96 = vmul.f32 %v78, %v95
    %v97 = vmul.f32 %v82, %v95
    %v98 = vmul.f32 %v86, %v95
    %v99 = vmul.f32 %v90, %v95
    %v100 = vadd.f32 %v72, %v96
    %v101 = vadd.f32 %v73, %v97
    %v102 = vadd.f32 %v74, %v98
    %v103 = vadd.f32 %v75, %v99
    %v104 = vld [vmem:[%s2] sm:$0xff]
    %v105 = vld [vmem:[%s2 + $0x8] sm:$0xff]
    %v106 = vld [vmem:[%s2 + $0x10] sm:$0xff]
    %v107 = vld [vmem:[%s2 + $0x18] sm:$0xff]
    %109 = vset.pattern.permute.xlu0 0
    %110 = vperm.xlu0 %109, %v104
    %v111 = vpop.permute.xlu0 %110
    %114 = vset.pattern.permute.xlu0 0
    %115 = vperm.xlu0 %114, %v105
    %v116 = vpop.permute.xlu0 %115
    %119 = vset.pattern.permute.xlu0 0
    %120 = vperm.xlu0 %119, %v106
    %v121 = vpop.permute.xlu0 %120
    %124 = vset.pattern.permute.xlu0 0
    %125 = vperm.xlu0 %124, %v107
    %v126 = vpop.permute.xlu0 %125
    %v128 = vadd.f32 %v100, %v111
    %v129 = vadd.f32 %v101, %v116
    %v130 = vadd.f32 %v102, %v121
    %v131 = vadd.f32 %v103, %v126
    %v132 = vmax.f32 %v128, 0.0
    %v133 = vmax.f32 %v129, 0.0
    %v134 = vmax.f32 %v130, 0.0
    %v135 = vmax.f32 %v131, 0.0
    %v136 = vld [vmem:[%s3] sm:$0xff]
    %v137 = vld [vmem:[%s3 + $0x8] sm:$0xff]
    %v138 = vld [vmem:[%s3 + $0x10] sm:$0xff]
    %v139 = vld [vmem:[%s3 + $0x18] sm:$0xff]
    %v140 = vld [vmem:[%s4] sm:$0xff]
    %v141 = vld [vmem:[%s4 + $0x8] sm:$0xff]
    %v142 = vld [vmem:[%s4 + $0x10] sm:$0xff]
    %v143 = vld [vmem:[%s4 + $0x18] sm:$0xff]
    %145 = vset.pattern.permute.xlu0 0
    %146 = vperm.xlu0 %145, %v140
    %v147 = vpop.permute.xlu0 %146
    %150 = vset.pattern.permute.xlu0 0
    %151 = vperm.xlu0 %150, %v141
    %v152 = vpop.permute.xlu0 %151
    %155 = vset.pattern.permute.xlu0 0
    %156 = vperm.xlu0 %155, %v142
    %v157 = vpop.permute.xlu0 %156
    %160 = vset.pattern.permute.xlu0 0
    %161 = vperm.xlu0 %160, %v143
    %v162 = vpop.permute.xlu0 %161
    %vm164 = vcmask 261120
    %v166 = vsel %vm164, %v136, 0
    %v169 = vsel %vm164, %v137, 0
    %v172 = vsel %vm164, %v138, 0
    %v175 = vsel %vm164, %v139, 0
    %177 = vmatprep.subr.mxu0 0.0
    %178 = vmatpush1.msra.mxu0 0.0
    %179 = vmatprep.subr.mxu0 0.0
    %180 = vmatpush1.msra.mxu0 0.0
    %181 = vmatprep.subr.mxu0 0.0
    %182 = vmatpush1.msra.mxu0 0.0
    %183 = vmatprep.subr.mxu0 0.0
    %184 = vmatpush1.msra.mxu0 0.0
    %185 = vmatprep.subr.mxu0 0.0
    %186 = vmatpush1.msra.mxu0 0.0
    %187 = vmatprep.subr.mxu0 0.0
    %188 = vmatpush1.msra.mxu0 0.0
    %189 = vmatprep.subr.mxu0 0.0
    %190 = vmatpush1.msra.mxu0 0.0
    %191 = vmatprep.subr.mxu0 0.0
    %192 = vmatpush1.msra.mxu0 0.0
    %193 = vmatprep.subr.mxu0 0.0
    %194 = vmatpush1.msra.mxu0 0.0
    %195 = vmatprep.subr.mxu0 0.0
    %196 = vmatpush1.msra.mxu0 0.0
    %197 = vmatprep.subr.mxu0 0.0
    %198 = vmatpush1.msra.mxu0 0.0
    %199 = vmatprep.subr.mxu0 0.0
    %200 = vmatpush1.msra.mxu0 0.0
    %201 = vmatprep.subr.mxu0 0.0
    %v202 = vand.u32 %v135, 4294901760
    %203 = vmatpush1.msra.mxu0 %v202
    %204 = vmatprep.subr.mxu0 0.0
    %v205 = vand.u32 %v134, 4294901760
    %206 = vmatpush1.msra.mxu0 %v205
    %207 = vmatprep.subr.mxu0 0.0
    %v208 = vand.u32 %v133, 4294901760
    %209 = vmatpush1.msra.mxu0 %v208
    %210 = vmatprep.subr.mxu0 0.0
    %v211 = vand.u32 %v132, 4294901760
    %212 = vmatpush1.msra.mxu0 %v211
    %213 = vmatprep.subr.mxu0 0.0
    %214 = vmatpush2.msra.mxu0 0.0
    %215 = vmatprep.subr.mxu0 0.0
    %216 = vmatpush2.msra.mxu0 0.0
    %217 = vmatprep.subr.mxu0 0.0
    %218 = vmatpush2.msra.mxu0 0.0
    %219 = vmatprep.subr.mxu0 0.0
    %220 = vmatpush2.msra.mxu0 0.0
    %221 = vmatprep.subr.mxu0 0.0
    %222 = vmatpush2.msra.mxu0 0.0
    %223 = vmatprep.subr.mxu0 0.0
    %224 = vmatpush2.msra.mxu0 0.0
    %225 = vmatprep.subr.mxu0 0.0
    %226 = vmatpush2.msra.mxu0 0.0
    %227 = vmatprep.subr.mxu0 0.0
    %228 = vmatpush2.msra.mxu0 0.0
    %229 = vmatprep.subr.mxu0 0.0
    %230 = vmatpush2.msra.mxu0 0.0
    %231 = vmatprep.subr.mxu0 0.0
    %232 = vmatpush2.msra.mxu0 0.0
    %233 = vmatprep.subr.mxu0 0.0
    %234 = vmatpush2.msra.mxu0 0.0
    %235 = vmatprep.subr.mxu0 0.0
    %236 = vmatpush2.msra.mxu0 0.0
    %237 = vmatprep.subr.mxu0 0.0
    %238 = vmatpush2.msra.mxu0 0.0
    %239 = vmatprep.subr.mxu0 0.0
    %240 = vmatpush2.msra.mxu0 0.0
    %241 = vmatprep.subr.mxu0 0.0
    %242 = vmatpush2.msra.mxu0 0.0
    %243 = vmatprep.subr.mxu0 0.0
    %244 = vmatpush2.msra.mxu0 0.0
    %245 = vmatprep.mubr.f32.mxu0 0.0
    %v246 = vand.u32 %v166, 4294901760
    %v247 = vsub.f32 %v166, %v246
    %v248 = vand.u32 %v247, 4294901760
    %v249 = vsub.f32 %v247, %v248
    %v250 = vand.u32 %v249, 4294901760
    %251 = vmatmul.mubr.f32.gmra.mxu0 %v250
    %v252 = vpop.f32.mrf.mxu0
    %v253 = vadd.f32 %v147, %v252
    %v254 = vpop.f32.mrf.mxu0
    %255 = vmatprep.mubr.f32.mxu0 0.0
    %v256 = vand.u32 %v169, 4294901760
    %v257 = vsub.f32 %v169, %v256
    %v258 = vand.u32 %v257, 4294901760
    %v259 = vsub.f32 %v257, %v258
    %v260 = vand.u32 %v259, 4294901760
    %261 = vmatmul.mubr.f32.gmra.mxu0 %v260
    %v262 = vpop.f32.mrf.mxu0
    %v263 = vadd.f32 %v152, %v262
    %v264 = vpop.f32.mrf.mxu0
    %265 = vmatprep.mubr.f32.mxu0 0.0
    %v266 = vand.u32 %v172, 4294901760
    %v267 = vsub.f32 %v172, %v266
    %v268 = vand.u32 %v267, 4294901760
    %v269 = vsub.f32 %v267, %v268
    %v270 = vand.u32 %v269, 4294901760
    %271 = vmatmul.mubr.f32.gmra.mxu0 %v270
    %v272 = vpop.f32.mrf.mxu0
    %v273 = vadd.f32 %v157, %v272
    %v274 = vpop.f32.mrf.mxu0
    %275 = vmatprep.mubr.f32.mxu0 0.0
    %v276 = vand.u32 %v175, 4294901760
    %v277 = vsub.f32 %v175, %v276
    %v278 = vand.u32 %v277, 4294901760
    %v279 = vsub.f32 %v277, %v278
    %v280 = vand.u32 %v279, 4294901760
    %281 = vmatmul.mubr.f32.gmra.mxu0 %v280
    %v282 = vpop.f32.mrf.mxu0
    %v283 = vadd.f32 %v162, %v282
    %v284 = vpop.f32.mrf.mxu0
    %285 = vdwg.mxu0
    %286 = vmatprep.subr.mxu0 0.0
    %287 = vmatpush1.msra.mxu0 0.0
    %288 = vmatprep.subr.mxu0 0.0
    %289 = vmatpush1.msra.mxu0 0.0
    %290 = vmatprep.subr.mxu0 0.0
    %291 = vmatpush1.msra.mxu0 0.0
    %292 = vmatprep.subr.mxu0 0.0
    %293 = vmatpush1.msra.mxu0 0.0
    %294 = vmatprep.subr.mxu0 0.0
    %295 = vmatpush1.msra.mxu0 0.0
    %296 = vmatprep.subr.mxu0 0.0
    %297 = vmatpush1.msra.mxu0 0.0
    %298 = vmatprep.subr.mxu0 0.0
    %299 = vmatpush1.msra.mxu0 0.0
    %300 = vmatprep.subr.mxu0 0.0
    %301 = vmatpush1.msra.mxu0 0.0
    %302 = vmatprep.subr.mxu0 0.0
    %303 = vmatpush1.msra.mxu0 0.0
    %304 = vmatprep.subr.mxu0 0.0
    %305 = vmatpush1.msra.mxu0 0.0
    %306 = vmatprep.subr.mxu0 0.0
    %307 = vmatpush1.msra.mxu0 0.0
    %308 = vmatprep.subr.mxu0 0.0
    %309 = vmatpush1.msra.mxu0 0.0
    %310 = vmatprep.subr.mxu0 0.0
    %v311 = vand.u32 %v135, 4294901760
    %v312 = vsub.f32 %v135, %v311
    %v313 = vand.u32 %v312, 4294901760
    %v314 = vsub.f32 %v312, %v313
    %v315 = vand.u32 %v314, 4294901760
    %316 = vmatpush1.msra.mxu0 %v315
    %317 = vmatprep.subr.mxu0 0.0
    %v318 = vand.u32 %v134, 4294901760
    %v319 = vsub.f32 %v134, %v318
    %v320 = vand.u32 %v319, 4294901760
    %v321 = vsub.f32 %v319, %v320
    %v322 = vand.u32 %v321, 4294901760
    %323 = vmatpush1.msra.mxu0 %v322
    %324 = vmatprep.subr.mxu0 0.0
    %v325 = vand.u32 %v133, 4294901760
    %v326 = vsub.f32 %v133, %v325
    %v327 = vand.u32 %v326, 4294901760
    %v328 = vsub.f32 %v326, %v327
    %v329 = vand.u32 %v328, 4294901760
    %330 = vmatpush1.msra.mxu0 %v329
    %331 = vmatprep.subr.mxu0 0.0
    %v332 = vand.u32 %v132, 4294901760
    %v333 = vsub.f32 %v132, %v332
    %v334 = vand.u32 %v333, 4294901760
    %v335 = vsub.f32 %v333, %v334
    %v336 = vand.u32 %v335, 4294901760
    %337 = vmatpush1.msra.mxu0 %v336
    %338 = vmatprep.subr.mxu0 0.0
    %339 = vmatpush2.msra.mxu0 0.0
    %340 = vmatprep.subr.mxu0 0.0
    %341 = vmatpush2.msra.mxu0 0.0
    %342 = vmatprep.subr.mxu0 0.0
    %343 = vmatpush2.msra.mxu0 0.0
    %344 = vmatprep.subr.mxu0 0.0
    %345 = vmatpush2.msra.mxu0 0.0
    %346 = vmatprep.subr.mxu0 0.0
    %347 = vmatpush2.msra.mxu0 0.0
    %348 = vmatprep.subr.mxu0 0.0
    %349 = vmatpush2.msra.mxu0 0.0
    %350 = vmatprep.subr.mxu0 0.0
    %351 = vmatpush2.msra.mxu0 0.0
    %352 = vmatprep.subr.mxu0 0.0
    %353 = vmatpush2.msra.mxu0 0.0
    %354 = vmatprep.subr.mxu0 0.0
    %355 = vmatpush2.msra.mxu0 0.0
    %356 = vmatprep.subr.mxu0 0.0
    %357 = vmatpush2.msra.mxu0 0.0
    %358 = vmatprep.subr.mxu0 0.0
    %359 = vmatpush2.msra.mxu0 0.0
    %360 = vmatprep.subr.mxu0 0.0
    %361 = vmatpush2.msra.mxu0 0.0
    %362 = vmatprep.subr.mxu0 0.0
    %363 = vmatpush2.msra.mxu0 0.0
    %364 = vmatprep.subr.mxu0 0.0
    %365 = vmatpush2.msra.mxu0 0.0
    %366 = vmatprep.subr.mxu0 0.0
    %367 = vmatpush2.msra.mxu0 0.0
    %368 = vmatprep.subr.mxu0 0.0
    %369 = vmatpush2.msra.mxu0 0.0
    %370 = vmatprep.mubr.f32.mxu0 0.0
    %v371 = vand.u32 %v166, 4294901760
    %372 = vmatmul.mubr.f32.gmra.mxu0 %v371
    %v373 = vpop.f32.mrf.mxu0
    %v374 = vadd.f32 %v253, %v373
    %v375 = vpop.f32.mrf.mxu0
    %376 = vmatprep.mubr.f32.mxu0 0.0
    %v377 = vand.u32 %v169, 4294901760
    %378 = vmatmul.mubr.f32.gmra.mxu0 %v377
    %v379 = vpop.f32.mrf.mxu0
    %v380 = vadd.f32 %v263, %v379
    %v381 = vpop.f32.mrf.mxu0
    %382 = vmatprep.mubr.f32.mxu0 0.0
    %v383 = vand.u32 %v172, 4294901760
    %384 = vmatmul.mubr.f32.gmra.mxu0 %v383
    %v385 = vpop.f32.mrf.mxu0
    %v386 = vadd.f32 %v273, %v385
    %v387 = vpop.f32.mrf.mxu0
    %388 = vmatprep.mubr.f32.mxu0 0.0
    %v389 = vand.u32 %v175, 4294901760
    %390 = vmatmul.mubr.f32.gmra.mxu0 %v389
    %v391 = vpop.f32.mrf.mxu0
    %v392 = vadd.f32 %v283, %v391
    %v393 = vpop.f32.mrf.mxu0
    %394 = vdwg.mxu0
    %395 = vmatprep.subr.mxu0 0.0
    %396 = vmatpush1.msra.mxu0 0.0
    %397 = vmatprep.subr.mxu0 0.0
    %398 = vmatpush1.msra.mxu0 0.0
    %399 = vmatprep.subr.mxu0 0.0
    %400 = vmatpush1.msra.mxu0 0.0
    %401 = vmatprep.subr.mxu0 0.0
    %402 = vmatpush1.msra.mxu0 0.0
    %403 = vmatprep.subr.mxu0 0.0
    %404 = vmatpush1.msra.mxu0 0.0
    %405 = vmatprep.subr.mxu0 0.0
    %406 = vmatpush1.msra.mxu0 0.0
    %407 = vmatprep.subr.mxu0 0.0
    %408 = vmatpush1.msra.mxu0 0.0
    %409 = vmatprep.subr.mxu0 0.0
    %410 = vmatpush1.msra.mxu0 0.0
    %411 = vmatprep.subr.mxu0 0.0
    %412 = vmatpush1.msra.mxu0 0.0
    %413 = vmatprep.subr.mxu0 0.0
    %414 = vmatpush1.msra.mxu0 0.0
    %415 = vmatprep.subr.mxu0 0.0
    %416 = vmatpush1.msra.mxu0 0.0
    %417 = vmatprep.subr.mxu0 0.0
    %418 = vmatpush1.msra.mxu0 0.0
    %419 = vmatprep.subr.mxu0 0.0
    %v420 = vand.u32 %v135, 4294901760
    %v421 = vsub.f32 %v135, %v420
    %422 = vmatpush1.msra.mxu0 %v421
    %423 = vmatprep.subr.mxu0 0.0
    %v424 = vand.u32 %v134, 4294901760
    %v425 = vsub.f32 %v134, %v424
    %426 = vmatpush1.msra.mxu0 %v425
    %427 = vmatprep.subr.mxu0 0.0
    %v428 = vand.u32 %v133, 4294901760
    %v429 = vsub.f32 %v133, %v428
    %430 = vmatpush1.msra.mxu0 %v429
    %431 = vmatprep.subr.mxu0 0.0
    %v432 = vand.u32 %v132, 4294901760
    %v433 = vsub.f32 %v132, %v432
    %434 = vmatpush1.msra.mxu0 %v433
    %435 = vmatprep.subr.mxu0 0.0
    %436 = vmatpush2.msra.mxu0 0.0
    %437 = vmatprep.subr.mxu0 0.0
    %438 = vmatpush2.msra.mxu0 0.0
    %439 = vmatprep.subr.mxu0 0.0
    %440 = vmatpush2.msra.mxu0 0.0
    %441 = vmatprep.subr.mxu0 0.0
    %442 = vmatpush2.msra.mxu0 0.0
    %443 = vmatprep.subr.mxu0 0.0
    %444 = vmatpush2.msra.mxu0 0.0
    %445 = vmatprep.subr.mxu0 0.0
    %446 = vmatpush2.msra.mxu0 0.0
    %447 = vmatprep.subr.mxu0 0.0
    %448 = vmatpush2.msra.mxu0 0.0
    %449 = vmatprep.subr.mxu0 0.0
    %450 = vmatpush2.msra.mxu0 0.0
    %451 = vmatprep.subr.mxu0 0.0
    %452 = vmatpush2.msra.mxu0 0.0
    %453 = vmatprep.subr.mxu0 0.0
    %454 = vmatpush2.msra.mxu0 0.0
    %455 = vmatprep.subr.mxu0 0.0
    %456 = vmatpush2.msra.mxu0 0.0
    %457 = vmatprep.subr.mxu0 0.0
    %458 = vmatpush2.msra.mxu0 0.0
    %459 = vmatprep.subr.mxu0 0.0
    %460 = vmatpush2.msra.mxu0 0.0
    %461 = vmatprep.subr.mxu0 0.0
    %462 = vmatpush2.msra.mxu0 0.0
    %463 = vmatprep.subr.mxu0 0.0
    %464 = vmatpush2.msra.mxu0 0.0
    %465 = vmatprep.subr.mxu0 0.0
    %466 = vmatpush2.msra.mxu0 0.0
    %467 = vmatprep.mubr.f32.mxu0 0.0
    %v468 = vand.u32 %v166, 4294901760
    %v469 = vsub.f32 %v166, %v468
    %470 = vmatmul.mubr.f32.gmra.mxu0 %v469
    %v471 = vpop.f32.mrf.mxu0
    %v472 = vadd.f32 %v374, %v471
    %v473 = vpop.f32.mrf.mxu0
    %474 = vmatprep.mubr.f32.mxu0 0.0
    %v475 = vand.u32 %v169, 4294901760
    %v476 = vsub.f32 %v169, %v475
    %477 = vmatmul.mubr.f32.gmra.mxu0 %v476
    %v478 = vpop.f32.mrf.mxu0
    %v479 = vadd.f32 %v380, %v478
    %v480 = vpop.f32.mrf.mxu0
    %481 = vmatprep.mubr.f32.mxu0 0.0
    %v482 = vand.u32 %v172, 4294901760
    %v483 = vsub.f32 %v172, %v482
    %484 = vmatmul.mubr.f32.gmra.mxu0 %v483
    %v485 = vpop.f32.mrf.mxu0
    %v486 = vadd.f32 %v386, %v485
    %v487 = vpop.f32.mrf.mxu0
    %488 = vmatprep.mubr.f32.mxu0 0.0
    %v489 = vand.u32 %v175, 4294901760
    %v490 = vsub.f32 %v175, %v489
    %491 = vmatmul.mubr.f32.gmra.mxu0 %v490
    %v492 = vpop.f32.mrf.mxu0
    %v493 = vadd.f32 %v392, %v492
    %v494 = vpop.f32.mrf.mxu0
    %495 = vdwg.mxu0
    %496 = vmatprep.subr.mxu0 0.0
    %497 = vmatpush1.msra.mxu0 0.0
    %498 = vmatprep.subr.mxu0 0.0
    %499 = vmatpush1.msra.mxu0 0.0
    %500 = vmatprep.subr.mxu0 0.0
    %501 = vmatpush1.msra.mxu0 0.0
    %502 = vmatprep.subr.mxu0 0.0
    %503 = vmatpush1.msra.mxu0 0.0
    %504 = vmatprep.subr.mxu0 0.0
    %505 = vmatpush1.msra.mxu0 0.0
    %506 = vmatprep.subr.mxu0 0.0
    %507 = vmatpush1.msra.mxu0 0.0
    %508 = vmatprep.subr.mxu0 0.0
    %509 = vmatpush1.msra.mxu0 0.0
    %510 = vmatprep.subr.mxu0 0.0
    %511 = vmatpush1.msra.mxu0 0.0
    %512 = vmatprep.subr.mxu0 0.0
    %513 = vmatpush1.msra.mxu0 0.0
    %514 = vmatprep.subr.mxu0 0.0
    %515 = vmatpush1.msra.mxu0 0.0
    %516 = vmatprep.subr.mxu0 0.0
    %517 = vmatpush1.msra.mxu0 0.0
    %518 = vmatprep.subr.mxu0 0.0
    %519 = vmatpush1.msra.mxu0 0.0
    %520 = vmatprep.subr.mxu0 0.0
    %v521 = vand.u32 %v135, 4294901760
    %522 = vmatpush1.msra.mxu0 %v521
    %523 = vmatprep.subr.mxu0 0.0
    %v524 = vand.u32 %v134, 4294901760
    %525 = vmatpush1.msra.mxu0 %v524
    %526 = vmatprep.subr.mxu0 0.0
    %v527 = vand.u32 %v133, 4294901760
    %528 = vmatpush1.msra.mxu0 %v527
    %529 = vmatprep.subr.mxu0 0.0
    %v530 = vand.u32 %v132, 4294901760
    %531 = vmatpush1.msra.mxu0 %v530
    %532 = vmatprep.subr.mxu0 0.0
    %533 = vmatpush2.msra.mxu0 0.0
    %534 = vmatprep.subr.mxu0 0.0
    %535 = vmatpush2.msra.mxu0 0.0
    %536 = vmatprep.subr.mxu0 0.0
    %537 = vmatpush2.msra.mxu0 0.0
    %538 = vmatprep.subr.mxu0 0.0
    %539 = vmatpush2.msra.mxu0 0.0
    %540 = vmatprep.subr.mxu0 0.0
    %541 = vmatpush2.msra.mxu0 0.0
    %542 = vmatprep.subr.mxu0 0.0
    %543 = vmatpush2.msra.mxu0 0.0
    %544 = vmatprep.subr.mxu0 0.0
    %545 = vmatpush2.msra.mxu0 0.0
    %546 = vmatprep.subr.mxu0 0.0
    %547 = vmatpush2.msra.mxu0 0.0
    %548 = vmatprep.subr.mxu0 0.0
    %549 = vmatpush2.msra.mxu0 0.0
    %550 = vmatprep.subr.mxu0 0.0
    %551 = vmatpush2.msra.mxu0 0.0
    %552 = vmatprep.subr.mxu0 0.0
    %553 = vmatpush2.msra.mxu0 0.0
    %554 = vmatprep.subr.mxu0 0.0
    %555 = vmatpush2.msra.mxu0 0.0
    %556 = vmatprep.subr.mxu0 0.0
    %557 = vmatpush2.msra.mxu0 0.0
    %558 = vmatprep.subr.mxu0 0.0
    %559 = vmatpush2.msra.mxu0 0.0
    %560 = vmatprep.subr.mxu0 0.0
    %561 = vmatpush2.msra.mxu0 0.0
    %562 = vmatprep.subr.mxu0 0.0
    %563 = vmatpush2.msra.mxu0 0.0
    %564 = vmatprep.mubr.f32.mxu0 0.0
    %v565 = vand.u32 %v166, 4294901760
    %v566 = vsub.f32 %v166, %v565
    %v567 = vand.u32 %v566, 4294901760
    %568 = vmatmul.mubr.f32.gmra.mxu0 %v567
    %v569 = vpop.f32.mrf.mxu0
    %v570 = vadd.f32 %v472, %v569
    %v571 = vpop.f32.mrf.mxu0
    %572 = vmatprep.mubr.f32.mxu0 0.0
    %v573 = vand.u32 %v169, 4294901760
    %v574 = vsub.f32 %v169, %v573
    %v575 = vand.u32 %v574, 4294901760
    %576 = vmatmul.mubr.f32.gmra.mxu0 %v575
    %v577 = vpop.f32.mrf.mxu0
    %v578 = vadd.f32 %v479, %v577
    %v579 = vpop.f32.mrf.mxu0
    %580 = vmatprep.mubr.f32.mxu0 0.0
    %v581 = vand.u32 %v172, 4294901760
    %v582 = vsub.f32 %v172, %v581
    %v583 = vand.u32 %v582, 4294901760
    %584 = vmatmul.mubr.f32.gmra.mxu0 %v583
    %v585 = vpop.f32.mrf.mxu0
    %v586 = vadd.f32 %v486, %v585
    %v587 = vpop.f32.mrf.mxu0
    %588 = vmatprep.mubr.f32.mxu0 0.0
    %v589 = vand.u32 %v175, 4294901760
    %v590 = vsub.f32 %v175, %v589
    %v591 = vand.u32 %v590, 4294901760
    %592 = vmatmul.mubr.f32.gmra.mxu0 %v591
    %v593 = vpop.f32.mrf.mxu0
    %v594 = vadd.f32 %v493, %v593
    %v595 = vpop.f32.mrf.mxu0
    %596 = vdwg.mxu0
    %597 = vmatprep.subr.mxu0 0.0
    %598 = vmatpush1.msra.mxu0 0.0
    %599 = vmatprep.subr.mxu0 0.0
    %600 = vmatpush1.msra.mxu0 0.0
    %601 = vmatprep.subr.mxu0 0.0
    %602 = vmatpush1.msra.mxu0 0.0
    %603 = vmatprep.subr.mxu0 0.0
    %604 = vmatpush1.msra.mxu0 0.0
    %605 = vmatprep.subr.mxu0 0.0
    %606 = vmatpush1.msra.mxu0 0.0
    %607 = vmatprep.subr.mxu0 0.0
    %608 = vmatpush1.msra.mxu0 0.0
    %609 = vmatprep.subr.mxu0 0.0
    %610 = vmatpush1.msra.mxu0 0.0
    %611 = vmatprep.subr.mxu0 0.0
    %612 = vmatpush1.msra.mxu0 0.0
    %613 = vmatprep.subr.mxu0 0.0
    %614 = vmatpush1.msra.mxu0 0.0
    %615 = vmatprep.subr.mxu0 0.0
    %616 = vmatpush1.msra.mxu0 0.0
    %617 = vmatprep.subr.mxu0 0.0
    %618 = vmatpush1.msra.mxu0 0.0
    %619 = vmatprep.subr.mxu0 0.0
    %620 = vmatpush1.msra.mxu0 0.0
    %621 = vmatprep.subr.mxu0 0.0
    %v622 = vand.u32 %v135, 4294901760
    %v623 = vsub.f32 %v135, %v622
    %v624 = vand.u32 %v623, 4294901760
    %625 = vmatpush1.msra.mxu0 %v624
    %626 = vmatprep.subr.mxu0 0.0
    %v627 = vand.u32 %v134, 4294901760
    %v628 = vsub.f32 %v134, %v627
    %v629 = vand.u32 %v628, 4294901760
    %630 = vmatpush1.msra.mxu0 %v629
    %631 = vmatprep.subr.mxu0 0.0
    %v632 = vand.u32 %v133, 4294901760
    %v633 = vsub.f32 %v133, %v632
    %v634 = vand.u32 %v633, 4294901760
    %635 = vmatpush1.msra.mxu0 %v634
    %636 = vmatprep.subr.mxu0 0.0
    %v637 = vand.u32 %v132, 4294901760
    %v638 = vsub.f32 %v132, %v637
    %v639 = vand.u32 %v638, 4294901760
    %640 = vmatpush1.msra.mxu0 %v639
    %641 = vmatprep.subr.mxu0 0.0
    %642 = vmatpush2.msra.mxu0 0.0
    %643 = vmatprep.subr.mxu0 0.0
    %644 = vmatpush2.msra.mxu0 0.0
    %645 = vmatprep.subr.mxu0 0.0
    %646 = vmatpush2.msra.mxu0 0.0
    %647 = vmatprep.subr.mxu0 0.0
    %648 = vmatpush2.msra.mxu0 0.0
    %649 = vmatprep.subr.mxu0 0.0
    %650 = vmatpush2.msra.mxu0 0.0
    %651 = vmatprep.subr.mxu0 0.0
    %652 = vmatpush2.msra.mxu0 0.0
    %653 = vmatprep.subr.mxu0 0.0
    %654 = vmatpush2.msra.mxu0 0.0
    %655 = vmatprep.subr.mxu0 0.0
    %656 = vmatpush2.msra.mxu0 0.0
    %657 = vmatprep.subr.mxu0 0.0
    %658 = vmatpush2.msra.mxu0 0.0
    %659 = vmatprep.subr.mxu0 0.0
    %660 = vmatpush2.msra.mxu0 0.0
    %661 = vmatprep.subr.mxu0 0.0
    %662 = vmatpush2.msra.mxu0 0.0
    %663 = vmatprep.subr.mxu0 0.0
    %664 = vmatpush2.msra.mxu0 0.0
    %665 = vmatprep.subr.mxu0 0.0
    %666 = vmatpush2.msra.mxu0 0.0
    %667 = vmatprep.subr.mxu0 0.0
    %668 = vmatpush2.msra.mxu0 0.0
    %669 = vmatprep.subr.mxu0 0.0
    %670 = vmatpush2.msra.mxu0 0.0
    %671 = vmatprep.subr.mxu0 0.0
    %672 = vmatpush2.msra.mxu0 0.0
    %673 = vmatprep.mubr.f32.mxu0 0.0
    %v674 = vand.u32 %v166, 4294901760
    %675 = vmatmul.mubr.f32.gmra.mxu0 %v674
    %v676 = vpop.f32.mrf.mxu0
    %v677 = vadd.f32 %v570, %v676
    %v678 = vpop.f32.mrf.mxu0
    %679 = vmatprep.mubr.f32.mxu0 0.0
    %v680 = vand.u32 %v169, 4294901760
    %681 = vmatmul.mubr.f32.gmra.mxu0 %v680
    %v682 = vpop.f32.mrf.mxu0
    %v683 = vadd.f32 %v578, %v682
    %v684 = vpop.f32.mrf.mxu0
    %685 = vmatprep.mubr.f32.mxu0 0.0
    %v686 = vand.u32 %v172, 4294901760
    %687 = vmatmul.mubr.f32.gmra.mxu0 %v686
    %v688 = vpop.f32.mrf.mxu0
    %v689 = vadd.f32 %v586, %v688
    %v690 = vpop.f32.mrf.mxu0
    %691 = vmatprep.mubr.f32.mxu0 0.0
    %v692 = vand.u32 %v175, 4294901760
    %693 = vmatmul.mubr.f32.gmra.mxu0 %v692
    %v694 = vpop.f32.mrf.mxu0
    %v695 = vadd.f32 %v594, %v694
    %v696 = vpop.f32.mrf.mxu0
    %697 = vdwg.mxu0
    %698 = vmatprep.subr.mxu0 0.0
    %699 = vmatpush1.msra.mxu0 0.0
    %700 = vmatprep.subr.mxu0 0.0
    %701 = vmatpush1.msra.mxu0 0.0
    %702 = vmatprep.subr.mxu0 0.0
    %703 = vmatpush1.msra.mxu0 0.0
    %704 = vmatprep.subr.mxu0 0.0
    %705 = vmatpush1.msra.mxu0 0.0
    %706 = vmatprep.subr.mxu0 0.0
    %707 = vmatpush1.msra.mxu0 0.0
    %708 = vmatprep.subr.mxu0 0.0
    %709 = vmatpush1.msra.mxu0 0.0
    %710 = vmatprep.subr.mxu0 0.0
    %711 = vmatpush1.msra.mxu0 0.0
    %712 = vmatprep.subr.mxu0 0.0
    %713 = vmatpush1.msra.mxu0 0.0
    %714 = vmatprep.subr.mxu0 0.0
    %715 = vmatpush1.msra.mxu0 0.0
    %716 = vmatprep.subr.mxu0 0.0
    %717 = vmatpush1.msra.mxu0 0.0
    %718 = vmatprep.subr.mxu0 0.0
    %719 = vmatpush1.msra.mxu0 0.0
    %720 = vmatprep.subr.mxu0 0.0
    %721 = vmatpush1.msra.mxu0 0.0
    %722 = vmatprep.subr.mxu0 0.0
    %v723 = vand.u32 %v135, 4294901760
    %724 = vmatpush1.msra.mxu0 %v723
    %725 = vmatprep.subr.mxu0 0.0
    %v726 = vand.u32 %v134, 4294901760
    %727 = vmatpush1.msra.mxu0 %v726
    %728 = vmatprep.subr.mxu0 0.0
    %v729 = vand.u32 %v133, 4294901760
    %730 = vmatpush1.msra.mxu0 %v729
    %731 = vmatprep.subr.mxu0 0.0
    %v732 = vand.u32 %v132, 4294901760
    %733 = vmatpush1.msra.mxu0 %v732
    %734 = vmatprep.subr.mxu0 0.0
    %735 = vmatpush2.msra.mxu0 0.0
    %736 = vmatprep.subr.mxu0 0.0
    %737 = vmatpush2.msra.mxu0 0.0
    %738 = vmatprep.subr.mxu0 0.0
    %739 = vmatpush2.msra.mxu0 0.0
    %740 = vmatprep.subr.mxu0 0.0
    %741 = vmatpush2.msra.mxu0 0.0
    %742 = vmatprep.subr.mxu0 0.0
    %743 = vmatpush2.msra.mxu0 0.0
    %744 = vmatprep.subr.mxu0 0.0
    %745 = vmatpush2.msra.mxu0 0.0
    %746 = vmatprep.subr.mxu0 0.0
    %747 = vmatpush2.msra.mxu0 0.0
    %748 = vmatprep.subr.mxu0 0.0
    %749 = vmatpush2.msra.mxu0 0.0
    %750 = vmatprep.subr.mxu0 0.0
    %751 = vmatpush2.msra.mxu0 0.0
    %752 = vmatprep.subr.mxu0 0.0
    %753 = vmatpush2.msra.mxu0 0.0
    %754 = vmatprep.subr.mxu0 0.0
    %755 = vmatpush2.msra.mxu0 0.0
    %756 = vmatprep.subr.mxu0 0.0
    %757 = vmatpush2.msra.mxu0 0.0
    %758 = vmatprep.subr.mxu0 0.0
    %759 = vmatpush2.msra.mxu0 0.0
    %760 = vmatprep.subr.mxu0 0.0
    %761 = vmatpush2.msra.mxu0 0.0
    %762 = vmatprep.subr.mxu0 0.0
    %763 = vmatpush2.msra.mxu0 0.0
    %764 = vmatprep.subr.mxu0 0.0
    %765 = vmatpush2.msra.mxu0 0.0
    %766 = vmatprep.mubr.f32.mxu0 0.0
    %v767 = vand.u32 %v166, 4294901760
    %768 = vmatmul.mubr.f32.gmra.mxu0 %v767
    %v769 = vpop.f32.mrf.mxu0
    %v770 = vadd.f32 %v677, %v769
    %v771 = vpop.f32.mrf.mxu0
    %772 = vmatprep.mubr.f32.mxu0 0.0
    %v773 = vand.u32 %v169, 4294901760
    %774 = vmatmul.mubr.f32.gmra.mxu0 %v773
    %v775 = vpop.f32.mrf.mxu0
    %v776 = vadd.f32 %v683, %v775
    %v777 = vpop.f32.mrf.mxu0
    %778 = vmatprep.mubr.f32.mxu0 0.0
    %v779 = vand.u32 %v172, 4294901760
    %780 = vmatmul.mubr.f32.gmra.mxu0 %v779
    %v781 = vpop.f32.mrf.mxu0
    %v782 = vadd.f32 %v689, %v781
    %v783 = vpop.f32.mrf.mxu0
    %784 = vmatprep.mubr.f32.mxu0 0.0
    %v785 = vand.u32 %v175, 4294901760
    %786 = vmatmul.mubr.f32.gmra.mxu0 %v785
    %v787 = vpop.f32.mrf.mxu0
    %v788 = vadd.f32 %v695, %v787
    %v789 = vpop.f32.mrf.mxu0
    %790 = vdwg.mxu0
    %v791 = vmax.f32 %v770, 0.0
    %v792 = vmax.f32 %v776, 0.0
    %v793 = vmax.f32 %v782, 0.0
    %v794 = vmax.f32 %v788, 0.0
    %v795 = vld [vmem:[%s5] sm:$0xff]
    %v796 = vld [vmem:[%s5 + $0x8] sm:$0xff]
    %v797 = vld [vmem:[%s5 + $0x10] sm:$0xff]
    %v798 = vld [vmem:[%s5 + $0x18] sm:$0xff]
    %v799 = vld [vmem:[%s5 + $0x20] sm:$0xff]
    %v800 = vld [vmem:[%s5 + $0x28] sm:$0xff]
    %v801 = vld [vmem:[%s5 + $0x30] sm:$0xff]
    %v802 = vld [vmem:[%s5 + $0x38] sm:$0xff]
    %v803 = vld [vmem:[%s5 + $0x40] sm:$0xff]
    %v804 = vld [vmem:[%s5 + $0x48] sm:$0xff]
    %v805 = vld [vmem:[%s5 + $0x50] sm:$0xff]
    %v806 = vld [vmem:[%s5 + $0x58] sm:$0xff]
    %v807 = vld [vmem:[%s6] sm:$0xff]
    %v808 = vld [vmem:[%s6 + $0x8] sm:$0xff]
    %v809 = vld [vmem:[%s6 + $0x10] sm:$0xff]
    %v810 = vld [vmem:[%s6 + $0x18] sm:$0xff]
    %v811 = vld [vmem:[%s6 + $0x20] sm:$0xff]
    %v812 = vld [vmem:[%s6 + $0x28] sm:$0xff]
    %v813 = vld [vmem:[%s6 + $0x30] sm:$0xff]
    %v814 = vld [vmem:[%s6 + $0x38] sm:$0xff]
    %v815 = vld [vmem:[%s6 + $0x40] sm:$0xff]
    %v816 = vld [vmem:[%s6 + $0x48] sm:$0xff]
    %v817 = vld [vmem:[%s6 + $0x50] sm:$0xff]
    %v818 = vld [vmem:[%s6 + $0x58] sm:$0xff]
    %820 = vset.pattern.permute.xlu0 0
    %821 = vperm.xlu0 %820, %v807
    %v822 = vpop.permute.xlu0 %821
    %825 = vset.pattern.permute.xlu0 0
    %826 = vperm.xlu0 %825, %v808
    %v827 = vpop.permute.xlu0 %826
    %830 = vset.pattern.permute.xlu0 0
    %831 = vperm.xlu0 %830, %v809
    %v832 = vpop.permute.xlu0 %831
    %835 = vset.pattern.permute.xlu0 0
    %836 = vperm.xlu0 %835, %v810
    %v837 = vpop.permute.xlu0 %836
    %840 = vset.pattern.permute.xlu0 0
    %841 = vperm.xlu0 %840, %v811
    %v842 = vpop.permute.xlu0 %841
    %845 = vset.pattern.permute.xlu0 0
    %846 = vperm.xlu0 %845, %v812
    %v847 = vpop.permute.xlu0 %846
    %850 = vset.pattern.permute.xlu0 0
    %851 = vperm.xlu0 %850, %v813
    %v852 = vpop.permute.xlu0 %851
    %855 = vset.pattern.permute.xlu0 0
    %856 = vperm.xlu0 %855, %v814
    %v857 = vpop.permute.xlu0 %856
    %860 = vset.pattern.permute.xlu0 0
    %861 = vperm.xlu0 %860, %v815
    %v862 = vpop.permute.xlu0 %861
    %865 = vset.pattern.permute.xlu0 0
    %866 = vperm.xlu0 %865, %v816
    %v867 = vpop.permute.xlu0 %866
    %870 = vset.pattern.permute.xlu0 0
    %871 = vperm.xlu0 %870, %v817
    %v872 = vpop.permute.xlu0 %871
    %875 = vset.pattern.permute.xlu0 0
    %876 = vperm.xlu0 %875, %v818
    %v877 = vpop.permute.xlu0 %876
    %v880 = vsel %vm164, %v795, 0
    %v883 = vsel %vm164, %v796, 0
    %v886 = vsel %vm164, %v797, 0
    %v889 = vsel %vm164, %v798, 0
    %v892 = vsel %vm164, %v799, 0
    %v895 = vsel %vm164, %v800, 0
    %v898 = vsel %vm164, %v801, 0
    %v901 = vsel %vm164, %v802, 0
    %v904 = vsel %vm164, %v803, 0
    %v907 = vsel %vm164, %v804, 0
    %v910 = vsel %vm164, %v805, 0
    %v913 = vsel %vm164, %v806, 0
    %915 = vmatprep.subr.mxu0 0.0
    %916 = vmatpush1.msra.mxu0 0.0
    %917 = vmatprep.subr.mxu0 0.0
    %918 = vmatpush1.msra.mxu0 0.0
    %919 = vmatprep.subr.mxu0 0.0
    %920 = vmatpush1.msra.mxu0 0.0
    %921 = vmatprep.subr.mxu0 0.0
    %922 = vmatpush1.msra.mxu0 0.0
    %923 = vmatprep.subr.mxu0 0.0
    %924 = vmatpush1.msra.mxu0 0.0
    %925 = vmatprep.subr.mxu0 0.0
    %926 = vmatpush1.msra.mxu0 0.0
    %927 = vmatprep.subr.mxu0 0.0
    %928 = vmatpush1.msra.mxu0 0.0
    %929 = vmatprep.subr.mxu0 0.0
    %930 = vmatpush1.msra.mxu0 0.0
    %931 = vmatprep.subr.mxu0 0.0
    %932 = vmatpush1.msra.mxu0 0.0
    %933 = vmatprep.subr.mxu0 0.0
    %934 = vmatpush1.msra.mxu0 0.0
    %935 = vmatprep.subr.mxu0 0.0
    %936 = vmatpush1.msra.mxu0 0.0
    %937 = vmatprep.subr.mxu0 0.0
    %938 = vmatpush1.msra.mxu0 0.0
    %939 = vmatprep.subr.mxu0 0.0
    %v940 = vand.u32 %v794, 4294901760
    %941 = vmatpush1.msra.mxu0 %v940
    %942 = vmatprep.subr.mxu0 0.0
    %v943 = vand.u32 %v793, 4294901760
    %944 = vmatpush1.msra.mxu0 %v943
    %945 = vmatprep.subr.mxu0 0.0
    %v946 = vand.u32 %v792, 4294901760
    %947 = vmatpush1.msra.mxu0 %v946
    %948 = vmatprep.subr.mxu0 0.0
    %v949 = vand.u32 %v791, 4294901760
    %950 = vmatpush1.msra.mxu0 %v949
    %951 = vmatprep.subr.mxu0 0.0
    %952 = vmatpush2.msra.mxu0 0.0
    %953 = vmatprep.subr.mxu0 0.0
    %954 = vmatpush2.msra.mxu0 0.0
    %955 = vmatprep.subr.mxu0 0.0
    %956 = vmatpush2.msra.mxu0 0.0
    %957 = vmatprep.subr.mxu0 0.0
    %958 = vmatpush2.msra.mxu0 0.0
    %959 = vmatprep.subr.mxu0 0.0
    %960 = vmatpush2.msra.mxu0 0.0
    %961 = vmatprep.subr.mxu0 0.0
    %962 = vmatpush2.msra.mxu0 0.0
    %963 = vmatprep.subr.mxu0 0.0
    %964 = vmatpush2.msra.mxu0 0.0
    %965 = vmatprep.subr.mxu0 0.0
    %966 = vmatpush2.msra.mxu0 0.0
    %967 = vmatprep.subr.mxu0 0.0
    %968 = vmatpush2.msra.mxu0 0.0
    %969 = vmatprep.subr.mxu0 0.0
    %970 = vmatpush2.msra.mxu0 0.0
    %971 = vmatprep.subr.mxu0 0.0
    %972 = vmatpush2.msra.mxu0 0.0
    %973 = vmatprep.subr.mxu0 0.0
    %974 = vmatpush2.msra.mxu0 0.0
    %975 = vmatprep.subr.mxu0 0.0
    %976 = vmatpush2.msra.mxu0 0.0
    %977 = vmatprep.subr.mxu0 0.0
    %978 = vmatpush2.msra.mxu0 0.0
    %979 = vmatprep.subr.mxu0 0.0
    %980 = vmatpush2.msra.mxu0 0.0
    %981 = vmatprep.subr.mxu0 0.0
    %982 = vmatpush2.msra.mxu0 0.0
    %983 = vmatprep.mubr.f32.mxu0 0.0
    %v984 = vand.u32 %v880, 4294901760
    %v985 = vsub.f32 %v880, %v984
    %v986 = vand.u32 %v985, 4294901760
    %v987 = vsub.f32 %v985, %v986
    %v988 = vand.u32 %v987, 4294901760
    %989 = vmatmul.mubr.f32.gmra.mxu0 %v988
    %v990 = vpop.f32.mrf.mxu0
    %v991 = vadd.f32 %v822, %v990
    %v992 = vpop.f32.mrf.mxu0
    %993 = vmatprep.mubr.f32.mxu0 0.0
    %v994 = vand.u32 %v883, 4294901760
    %v995 = vsub.f32 %v883, %v994
    %v996 = vand.u32 %v995, 4294901760
    %v997 = vsub.f32 %v995, %v996
    %v998 = vand.u32 %v997, 4294901760
    %999 = vmatmul.mubr.f32.gmra.mxu0 %v998
    %v1000 = vpop.f32.mrf.mxu0
    %v1001 = vadd.f32 %v827, %v1000
    %v1002 = vpop.f32.mrf.mxu0
    %1003 = vmatprep.mubr.f32.mxu0 0.0
    %v1004 = vand.u32 %v886, 4294901760
    %v1005 = vsub.f32 %v886, %v1004
    %v1006 = vand.u32 %v1005, 4294901760
    %v1007 = vsub.f32 %v1005, %v1006
    %v1008 = vand.u32 %v1007, 4294901760
    %1009 = vmatmul.mubr.f32.gmra.mxu0 %v1008
    %v1010 = vpop.f32.mrf.mxu0
    %v1011 = vadd.f32 %v832, %v1010
    %v1012 = vpop.f32.mrf.mxu0
    %1013 = vmatprep.mubr.f32.mxu0 0.0
    %v1014 = vand.u32 %v889, 4294901760
    %v1015 = vsub.f32 %v889, %v1014
    %v1016 = vand.u32 %v1015, 4294901760
    %v1017 = vsub.f32 %v1015, %v1016
    %v1018 = vand.u32 %v1017, 4294901760
    %1019 = vmatmul.mubr.f32.gmra.mxu0 %v1018
    %v1020 = vpop.f32.mrf.mxu0
    %v1021 = vadd.f32 %v837, %v1020
    %v1022 = vpop.f32.mrf.mxu0
    %1023 = vmatprep.mubr.f32.mxu0 0.0
    %v1024 = vand.u32 %v892, 4294901760
    %v1025 = vsub.f32 %v892, %v1024
    %v1026 = vand.u32 %v1025, 4294901760
    %v1027 = vsub.f32 %v1025, %v1026
    %v1028 = vand.u32 %v1027, 4294901760
    %1029 = vmatmul.mubr.f32.gmra.mxu0 %v1028
    %v1030 = vpop.f32.mrf.mxu0
    %v1031 = vadd.f32 %v842, %v1030
    %v1032 = vpop.f32.mrf.mxu0
    %1033 = vmatprep.mubr.f32.mxu0 0.0
    %v1034 = vand.u32 %v895, 4294901760
    %v1035 = vsub.f32 %v895, %v1034
    %v1036 = vand.u32 %v1035, 4294901760
    %v1037 = vsub.f32 %v1035, %v1036
    %v1038 = vand.u32 %v1037, 4294901760
    %1039 = vmatmul.mubr.f32.gmra.mxu0 %v1038
    %v1040 = vpop.f32.mrf.mxu0
    %v1041 = vadd.f32 %v847, %v1040
    %v1042 = vpop.f32.mrf.mxu0
    %1043 = vmatprep.mubr.f32.mxu0 0.0
    %v1044 = vand.u32 %v898, 4294901760
    %v1045 = vsub.f32 %v898, %v1044
    %v1046 = vand.u32 %v1045, 4294901760
    %v1047 = vsub.f32 %v1045, %v1046
    %v1048 = vand.u32 %v1047, 4294901760
    %1049 = vmatmul.mubr.f32.gmra.mxu0 %v1048
    %v1050 = vpop.f32.mrf.mxu0
    %v1051 = vadd.f32 %v852, %v1050
    %v1052 = vpop.f32.mrf.mxu0
    %1053 = vmatprep.mubr.f32.mxu0 0.0
    %v1054 = vand.u32 %v901, 4294901760
    %v1055 = vsub.f32 %v901, %v1054
    %v1056 = vand.u32 %v1055, 4294901760
    %v1057 = vsub.f32 %v1055, %v1056
    %v1058 = vand.u32 %v1057, 4294901760
    %1059 = vmatmul.mubr.f32.gmra.mxu0 %v1058
    %v1060 = vpop.f32.mrf.mxu0
    %v1061 = vadd.f32 %v857, %v1060
    %v1062 = vpop.f32.mrf.mxu0
    %1063 = vmatprep.mubr.f32.mxu0 0.0
    %v1064 = vand.u32 %v904, 4294901760
    %v1065 = vsub.f32 %v904, %v1064
    %v1066 = vand.u32 %v1065, 4294901760
    %v1067 = vsub.f32 %v1065, %v1066
    %v1068 = vand.u32 %v1067, 4294901760
    %1069 = vmatmul.mubr.f32.gmra.mxu0 %v1068
    %v1070 = vpop.f32.mrf.mxu0
    %v1071 = vadd.f32 %v862, %v1070
    %v1072 = vpop.f32.mrf.mxu0
    %1073 = vmatprep.mubr.f32.mxu0 0.0
    %v1074 = vand.u32 %v907, 4294901760
    %v1075 = vsub.f32 %v907, %v1074
    %v1076 = vand.u32 %v1075, 4294901760
    %v1077 = vsub.f32 %v1075, %v1076
    %v1078 = vand.u32 %v1077, 4294901760
    %1079 = vmatmul.mubr.f32.gmra.mxu0 %v1078
    %v1080 = vpop.f32.mrf.mxu0
    %v1081 = vadd.f32 %v867, %v1080
    %v1082 = vpop.f32.mrf.mxu0
    %1083 = vmatprep.mubr.f32.mxu0 0.0
    %v1084 = vand.u32 %v910, 4294901760
    %v1085 = vsub.f32 %v910, %v1084
    %v1086 = vand.u32 %v1085, 4294901760
    %v1087 = vsub.f32 %v1085, %v1086
    %v1088 = vand.u32 %v1087, 4294901760
    %1089 = vmatmul.mubr.f32.gmra.mxu0 %v1088
    %v1090 = vpop.f32.mrf.mxu0
    %v1091 = vadd.f32 %v872, %v1090
    %v1092 = vpop.f32.mrf.mxu0
    %1093 = vmatprep.mubr.f32.mxu0 0.0
    %v1094 = vand.u32 %v913, 4294901760
    %v1095 = vsub.f32 %v913, %v1094
    %v1096 = vand.u32 %v1095, 4294901760
    %v1097 = vsub.f32 %v1095, %v1096
    %v1098 = vand.u32 %v1097, 4294901760
    %1099 = vmatmul.mubr.f32.gmra.mxu0 %v1098
    %v1100 = vpop.f32.mrf.mxu0
    %v1101 = vadd.f32 %v877, %v1100
    %v1102 = vpop.f32.mrf.mxu0
    %1103 = vdwg.mxu0
    %1104 = vmatprep.subr.mxu0 0.0
    %1105 = vmatpush1.msra.mxu0 0.0
    %1106 = vmatprep.subr.mxu0 0.0
    %1107 = vmatpush1.msra.mxu0 0.0
    %1108 = vmatprep.subr.mxu0 0.0
    %1109 = vmatpush1.msra.mxu0 0.0
    %1110 = vmatprep.subr.mxu0 0.0
    %1111 = vmatpush1.msra.mxu0 0.0
    %1112 = vmatprep.subr.mxu0 0.0
    %1113 = vmatpush1.msra.mxu0 0.0
    %1114 = vmatprep.subr.mxu0 0.0
    %1115 = vmatpush1.msra.mxu0 0.0
    %1116 = vmatprep.subr.mxu0 0.0
    %1117 = vmatpush1.msra.mxu0 0.0
    %1118 = vmatprep.subr.mxu0 0.0
    %1119 = vmatpush1.msra.mxu0 0.0
    %1120 = vmatprep.subr.mxu0 0.0
    %1121 = vmatpush1.msra.mxu0 0.0
    %1122 = vmatprep.subr.mxu0 0.0
    %1123 = vmatpush1.msra.mxu0 0.0
    %1124 = vmatprep.subr.mxu0 0.0
    %1125 = vmatpush1.msra.mxu0 0.0
    %1126 = vmatprep.subr.mxu0 0.0
    %1127 = vmatpush1.msra.mxu0 0.0
    %1128 = vmatprep.subr.mxu0 0.0
    %v1129 = vand.u32 %v794, 4294901760
    %v1130 = vsub.f32 %v794, %v1129
    %v1131 = vand.u32 %v1130, 4294901760
    %v1132 = vsub.f32 %v1130, %v1131
    %v1133 = vand.u32 %v1132, 4294901760
    %1134 = vmatpush1.msra.mxu0 %v1133
    %1135 = vmatprep.subr.mxu0 0.0
    %v1136 = vand.u32 %v793, 4294901760
    %v1137 = vsub.f32 %v793, %v1136
    %v1138 = vand.u32 %v1137, 4294901760
    %v1139 = vsub.f32 %v1137, %v1138
    %v1140 = vand.u32 %v1139, 4294901760
    %1141 = vmatpush1.msra.mxu0 %v1140
    %1142 = vmatprep.subr.mxu0 0.0
    %v1143 = vand.u32 %v792, 4294901760
    %v1144 = vsub.f32 %v792, %v1143
    %v1145 = vand.u32 %v1144, 4294901760
    %v1146 = vsub.f32 %v1144, %v1145
    %v1147 = vand.u32 %v1146, 4294901760
    %1148 = vmatpush1.msra.mxu0 %v1147
    %1149 = vmatprep.subr.mxu0 0.0
    %v1150 = vand.u32 %v791, 4294901760
    %v1151 = vsub.f32 %v791, %v1150
    %v1152 = vand.u32 %v1151, 4294901760
    %v1153 = vsub.f32 %v1151, %v1152
    %v1154 = vand.u32 %v1153, 4294901760
    %1155 = vmatpush1.msra.mxu0 %v1154
    %1156 = vmatprep.subr.mxu0 0.0
    %1157 = vmatpush2.msra.mxu0 0.0
    %1158 = vmatprep.subr.mxu0 0.0
    %1159 = vmatpush2.msra.mxu0 0.0
    %1160 = vmatprep.subr.mxu0 0.0
    %1161 = vmatpush2.msra.mxu0 0.0
    %1162 = vmatprep.subr.mxu0 0.0
    %1163 = vmatpush2.msra.mxu0 0.0
    %1164 = vmatprep.subr.mxu0 0.0
    %1165 = vmatpush2.msra.mxu0 0.0
    %1166 = vmatprep.subr.mxu0 0.0
    %1167 = vmatpush2.msra.mxu0 0.0
    %1168 = vmatprep.subr.mxu0 0.0
    %1169 = vmatpush2.msra.mxu0 0.0
    %1170 = vmatprep.subr.mxu0 0.0
    %1171 = vmatpush2.msra.mxu0 0.0
    %1172 = vmatprep.subr.mxu0 0.0
    %1173 = vmatpush2.msra.mxu0 0.0
    %1174 = vmatprep.subr.mxu0 0.0
    %1175 = vmatpush2.msra.mxu0 0.0
    %1176 = vmatprep.subr.mxu0 0.0
    %1177 = vmatpush2.msra.mxu0 0.0
    %1178 = vmatprep.subr.mxu0 0.0
    %1179 = vmatpush2.msra.mxu0 0.0
    %1180 = vmatprep.subr.mxu0 0.0
    %1181 = vmatpush2.msra.mxu0 0.0
    %1182 = vmatprep.subr.mxu0 0.0
    %1183 = vmatpush2.msra.mxu0 0.0
    %1184 = vmatprep.subr.mxu0 0.0
    %1185 = vmatpush2.msra.mxu0 0.0
    %1186 = vmatprep.subr.mxu0 0.0
    %1187 = vmatpush2.msra.mxu0 0.0
    %1188 = vmatprep.mubr.f32.mxu0 0.0
    %v1189 = vand.u32 %v880, 4294901760
    %1190 = vmatmul.mubr.f32.gmra.mxu0 %v1189
    %v1191 = vpop.f32.mrf.mxu0
    %v1192 = vadd.f32 %v991, %v1191
    %v1193 = vpop.f32.mrf.mxu0
    %1194 = vmatprep.mubr.f32.mxu0 0.0
    %v1195 = vand.u32 %v883, 4294901760
    %1196 = vmatmul.mubr.f32.gmra.mxu0 %v1195
    %v1197 = vpop.f32.mrf.mxu0
    %v1198 = vadd.f32 %v1001, %v1197
    %v1199 = vpop.f32.mrf.mxu0
    %1200 = vmatprep.mubr.f32.mxu0 0.0
    %v1201 = vand.u32 %v886, 4294901760
    %1202 = vmatmul.mubr.f32.gmra.mxu0 %v1201
    %v1203 = vpop.f32.mrf.mxu0
    %v1204 = vadd.f32 %v1011, %v1203
    %v1205 = vpop.f32.mrf.mxu0
    %1206 = vmatprep.mubr.f32.mxu0 0.0
    %v1207 = vand.u32 %v889, 4294901760
    %1208 = vmatmul.mubr.f32.gmra.mxu0 %v1207
    %v1209 = vpop.f32.mrf.mxu0
    %v1210 = vadd.f32 %v1021, %v1209
    %v1211 = vpop.f32.mrf.mxu0
    %1212 = vmatprep.mubr.f32.mxu0 0.0
    %v1213 = vand.u32 %v892, 4294901760
    %1214 = vmatmul.mubr.f32.gmra.mxu0 %v1213
    %v1215 = vpop.f32.mrf.mxu0
    %v1216 = vadd.f32 %v1031, %v1215
    %v1217 = vpop.f32.mrf.mxu0
    %1218 = vmatprep.mubr.f32.mxu0 0.0
    %v1219 = vand.u32 %v895, 4294901760
    %1220 = vmatmul.mubr.f32.gmra.mxu0 %v1219
    %v1221 = vpop.f32.mrf.mxu0
    %v1222 = vadd.f32 %v1041, %v1221
    %v1223 = vpop.f32.mrf.mxu0
    %1224 = vmatprep.mubr.f32.mxu0 0.0
    %v1225 = vand.u32 %v898, 4294901760
    %1226 = vmatmul.mubr.f32.gmra.mxu0 %v1225
    %v1227 = vpop.f32.mrf.mxu0
    %v1228 = vadd.f32 %v1051, %v1227
    %v1229 = vpop.f32.mrf.mxu0
    %1230 = vmatprep.mubr.f32.mxu0 0.0
    %v1231 = vand.u32 %v901, 4294901760
    %1232 = vmatmul.mubr.f32.gmra.mxu0 %v1231
    %v1233 = vpop.f32.mrf.mxu0
    %v1234 = vadd.f32 %v1061, %v1233
    %v1235 = vpop.f32.mrf.mxu0
    %1236 = vmatprep.mubr.f32.mxu0 0.0
    %v1237 = vand.u32 %v904, 4294901760
    %1238 = vmatmul.mubr.f32.gmra.mxu0 %v1237
    %v1239 = vpop.f32.mrf.mxu0
    %v1240 = vadd.f32 %v1071, %v1239
    %v1241 = vpop.f32.mrf.mxu0
    %1242 = vmatprep.mubr.f32.mxu0 0.0
    %v1243 = vand.u32 %v907, 4294901760
    %1244 = vmatmul.mubr.f32.gmra.mxu0 %v1243
    %v1245 = vpop.f32.mrf.mxu0
    %v1246 = vadd.f32 %v1081, %v1245
    %v1247 = vpop.f32.mrf.mxu0
    %1248 = vmatprep.mubr.f32.mxu0 0.0
    %v1249 = vand.u32 %v910, 4294901760
    %1250 = vmatmul.mubr.f32.gmra.mxu0 %v1249
    %v1251 = vpop.f32.mrf.mxu0
    %v1252 = vadd.f32 %v1091, %v1251
    %v1253 = vpop.f32.mrf.mxu0
    %1254 = vmatprep.mubr.f32.mxu0 0.0
    %v1255 = vand.u32 %v913, 4294901760
    %1256 = vmatmul.mubr.f32.gmra.mxu0 %v1255
    %v1257 = vpop.f32.mrf.mxu0
    %v1258 = vadd.f32 %v1101, %v1257
    %v1259 = vpop.f32.mrf.mxu0
    %1260 = vdwg.mxu0
    %1261 = vmatprep.subr.mxu0 0.0
    %1262 = vmatpush1.msra.mxu0 0.0
    %1263 = vmatprep.subr.mxu0 0.0
    %1264 = vmatpush1.msra.mxu0 0.0
    %1265 = vmatprep.subr.mxu0 0.0
    %1266 = vmatpush1.msra.mxu0 0.0
    %1267 = vmatprep.subr.mxu0 0.0
    %1268 = vmatpush1.msra.mxu0 0.0
    %1269 = vmatprep.subr.mxu0 0.0
    %1270 = vmatpush1.msra.mxu0 0.0
    %1271 = vmatprep.subr.mxu0 0.0
    %1272 = vmatpush1.msra.mxu0 0.0
    %1273 = vmatprep.subr.mxu0 0.0
    %1274 = vmatpush1.msra.mxu0 0.0
    %1275 = vmatprep.subr.mxu0 0.0
    %1276 = vmatpush1.msra.mxu0 0.0
    %1277 = vmatprep.subr.mxu0 0.0
    %1278 = vmatpush1.msra.mxu0 0.0
    %1279 = vmatprep.subr.mxu0 0.0
    %1280 = vmatpush1.msra.mxu0 0.0
    %1281 = vmatprep.subr.mxu0 0.0
    %1282 = vmatpush1.msra.mxu0 0.0
    %1283 = vmatprep.subr.mxu0 0.0
    %1284 = vmatpush1.msra.mxu0 0.0
    %1285 = vmatprep.subr.mxu0 0.0
    %v1286 = vand.u32 %v794, 4294901760
    %v1287 = vsub.f32 %v794, %v1286
    %1288 = vmatpush1.msra.mxu0 %v1287
    %1289 = vmatprep.subr.mxu0 0.0
    %v1290 = vand.u32 %v793, 4294901760
    %v1291 = vsub.f32 %v793, %v1290
    %1292 = vmatpush1.msra.mxu0 %v1291
    %1293 = vmatprep.subr.mxu0 0.0
    %v1294 = vand.u32 %v792, 4294901760
    %v1295 = vsub.f32 %v792, %v1294
    %1296 = vmatpush1.msra.mxu0 %v1295
    %1297 = vmatprep.subr.mxu0 0.0
    %v1298 = vand.u32 %v791, 4294901760
    %v1299 = vsub.f32 %v791, %v1298
    %1300 = vmatpush1.msra.mxu0 %v1299
    %1301 = vmatprep.subr.mxu0 0.0
    %1302 = vmatpush2.msra.mxu0 0.0
    %1303 = vmatprep.subr.mxu0 0.0
    %1304 = vmatpush2.msra.mxu0 0.0
    %1305 = vmatprep.subr.mxu0 0.0
    %1306 = vmatpush2.msra.mxu0 0.0
    %1307 = vmatprep.subr.mxu0 0.0
    %1308 = vmatpush2.msra.mxu0 0.0
    %1309 = vmatprep.subr.mxu0 0.0
    %1310 = vmatpush2.msra.mxu0 0.0
    %1311 = vmatprep.subr.mxu0 0.0
    %1312 = vmatpush2.msra.mxu0 0.0
    %1313 = vmatprep.subr.mxu0 0.0
    %1314 = vmatpush2.msra.mxu0 0.0
    %1315 = vmatprep.subr.mxu0 0.0
    %1316 = vmatpush2.msra.mxu0 0.0
    %1317 = vmatprep.subr.mxu0 0.0
    %1318 = vmatpush2.msra.mxu0 0.0
    %1319 = vmatprep.subr.mxu0 0.0
    %1320 = vmatpush2.msra.mxu0 0.0
    %1321 = vmatprep.subr.mxu0 0.0
    %1322 = vmatpush2.msra.mxu0 0.0
    %1323 = vmatprep.subr.mxu0 0.0
    %1324 = vmatpush2.msra.mxu0 0.0
    %1325 = vmatprep.subr.mxu0 0.0
    %1326 = vmatpush2.msra.mxu0 0.0
    %1327 = vmatprep.subr.mxu0 0.0
    %1328 = vmatpush2.msra.mxu0 0.0
    %1329 = vmatprep.subr.mxu0 0.0
    %1330 = vmatpush2.msra.mxu0 0.0
    %1331 = vmatprep.subr.mxu0 0.0
    %1332 = vmatpush2.msra.mxu0 0.0
    %1333 = vmatprep.mubr.f32.mxu0 0.0
    %v1334 = vand.u32 %v880, 4294901760
    %v1335 = vsub.f32 %v880, %v1334
    %1336 = vmatmul.mubr.f32.gmra.mxu0 %v1335
    %v1337 = vpop.f32.mrf.mxu0
    %v1338 = vadd.f32 %v1192, %v1337
    %v1339 = vpop.f32.mrf.mxu0
    %1340 = vmatprep.mubr.f32.mxu0 0.0
    %v1341 = vand.u32 %v883, 4294901760
    %v1342 = vsub.f32 %v883, %v1341
    %1343 = vmatmul.mubr.f32.gmra.mxu0 %v1342
    %v1344 = vpop.f32.mrf.mxu0
    %v1345 = vadd.f32 %v1198, %v1344
    %v1346 = vpop.f32.mrf.mxu0
    %1347 = vmatprep.mubr.f32.mxu0 0.0
    %v1348 = vand.u32 %v886, 4294901760
    %v1349 = vsub.f32 %v886, %v1348
    %1350 = vmatmul.mubr.f32.gmra.mxu0 %v1349
    %v1351 = vpop.f32.mrf.mxu0
    %v1352 = vadd.f32 %v1204, %v1351
    %v1353 = vpop.f32.mrf.mxu0
    %1354 = vmatprep.mubr.f32.mxu0 0.0
    %v1355 = vand.u32 %v889, 4294901760
    %v1356 = vsub.f32 %v889, %v1355
    %1357 = vmatmul.mubr.f32.gmra.mxu0 %v1356
    %v1358 = vpop.f32.mrf.mxu0
    %v1359 = vadd.f32 %v1210, %v1358
    %v1360 = vpop.f32.mrf.mxu0
    %1361 = vmatprep.mubr.f32.mxu0 0.0
    %v1362 = vand.u32 %v892, 4294901760
    %v1363 = vsub.f32 %v892, %v1362
    %1364 = vmatmul.mubr.f32.gmra.mxu0 %v1363
    %v1365 = vpop.f32.mrf.mxu0
    %v1366 = vadd.f32 %v1216, %v1365
    %v1367 = vpop.f32.mrf.mxu0
    %1368 = vmatprep.mubr.f32.mxu0 0.0
    %v1369 = vand.u32 %v895, 4294901760
    %v1370 = vsub.f32 %v895, %v1369
    %1371 = vmatmul.mubr.f32.gmra.mxu0 %v1370
    %v1372 = vpop.f32.mrf.mxu0
    %v1373 = vadd.f32 %v1222, %v1372
    %v1374 = vpop.f32.mrf.mxu0
    %1375 = vmatprep.mubr.f32.mxu0 0.0
    %v1376 = vand.u32 %v898, 4294901760
    %v1377 = vsub.f32 %v898, %v1376
    %1378 = vmatmul.mubr.f32.gmra.mxu0 %v1377
    %v1379 = vpop.f32.mrf.mxu0
    %v1380 = vadd.f32 %v1228, %v1379
    %v1381 = vpop.f32.mrf.mxu0
    %1382 = vmatprep.mubr.f32.mxu0 0.0
    %v1383 = vand.u32 %v901, 4294901760
    %v1384 = vsub.f32 %v901, %v1383
    %1385 = vmatmul.mubr.f32.gmra.mxu0 %v1384
    %v1386 = vpop.f32.mrf.mxu0
    %v1387 = vadd.f32 %v1234, %v1386
    %v1388 = vpop.f32.mrf.mxu0
    %1389 = vmatprep.mubr.f32.mxu0 0.0
    %v1390 = vand.u32 %v904, 4294901760
    %v1391 = vsub.f32 %v904, %v1390
    %1392 = vmatmul.mubr.f32.gmra.mxu0 %v1391
    %v1393 = vpop.f32.mrf.mxu0
    %v1394 = vadd.f32 %v1240, %v1393
    %v1395 = vpop.f32.mrf.mxu0
    %1396 = vmatprep.mubr.f32.mxu0 0.0
    %v1397 = vand.u32 %v907, 4294901760
    %v1398 = vsub.f32 %v907, %v1397
    %1399 = vmatmul.mubr.f32.gmra.mxu0 %v1398
    %v1400 = vpop.f32.mrf.mxu0
    %v1401 = vadd.f32 %v1246, %v1400
    %v1402 = vpop.f32.mrf.mxu0
    %1403 = vmatprep.mubr.f32.mxu0 0.0
    %v1404 = vand.u32 %v910, 4294901760
    %v1405 = vsub.f32 %v910, %v1404
    %1406 = vmatmul.mubr.f32.gmra.mxu0 %v1405
    %v1407 = vpop.f32.mrf.mxu0
    %v1408 = vadd.f32 %v1252, %v1407
    %v1409 = vpop.f32.mrf.mxu0
    %1410 = vmatprep.mubr.f32.mxu0 0.0
    %v1411 = vand.u32 %v913, 4294901760
    %v1412 = vsub.f32 %v913, %v1411
    %1413 = vmatmul.mubr.f32.gmra.mxu0 %v1412
    %v1414 = vpop.f32.mrf.mxu0
    %v1415 = vadd.f32 %v1258, %v1414
    %v1416 = vpop.f32.mrf.mxu0
    %1417 = vdwg.mxu0
    %1418 = vmatprep.subr.mxu0 0.0
    %1419 = vmatpush1.msra.mxu0 0.0
    %1420 = vmatprep.subr.mxu0 0.0
    %1421 = vmatpush1.msra.mxu0 0.0
    %1422 = vmatprep.subr.mxu0 0.0
    %1423 = vmatpush1.msra.mxu0 0.0
    %1424 = vmatprep.subr.mxu0 0.0
    %1425 = vmatpush1.msra.mxu0 0.0
    %1426 = vmatprep.subr.mxu0 0.0
    %1427 = vmatpush1.msra.mxu0 0.0
    %1428 = vmatprep.subr.mxu0 0.0
    %1429 = vmatpush1.msra.mxu0 0.0
    %1430 = vmatprep.subr.mxu0 0.0
    %1431 = vmatpush1.msra.mxu0 0.0
    %1432 = vmatprep.subr.mxu0 0.0
    %1433 = vmatpush1.msra.mxu0 0.0
    %1434 = vmatprep.subr.mxu0 0.0
    %1435 = vmatpush1.msra.mxu0 0.0
    %1436 = vmatprep.subr.mxu0 0.0
    %1437 = vmatpush1.msra.mxu0 0.0
    %1438 = vmatprep.subr.mxu0 0.0
    %1439 = vmatpush1.msra.mxu0 0.0
    %1440 = vmatprep.subr.mxu0 0.0
    %1441 = vmatpush1.msra.mxu0 0.0
    %1442 = vmatprep.subr.mxu0 0.0
    %v1443 = vand.u32 %v794, 4294901760
    %1444 = vmatpush1.msra.mxu0 %v1443
    %1445 = vmatprep.subr.mxu0 0.0
    %v1446 = vand.u32 %v793, 4294901760
    %1447 = vmatpush1.msra.mxu0 %v1446
    %1448 = vmatprep.subr.mxu0 0.0
    %v1449 = vand.u32 %v792, 4294901760
    %1450 = vmatpush1.msra.mxu0 %v1449
    %1451 = vmatprep.subr.mxu0 0.0
    %v1452 = vand.u32 %v791, 4294901760
    %1453 = vmatpush1.msra.mxu0 %v1452
    %1454 = vmatprep.subr.mxu0 0.0
    %1455 = vmatpush2.msra.mxu0 0.0
    %1456 = vmatprep.subr.mxu0 0.0
    %1457 = vmatpush2.msra.mxu0 0.0
    %1458 = vmatprep.subr.mxu0 0.0
    %1459 = vmatpush2.msra.mxu0 0.0
    %1460 = vmatprep.subr.mxu0 0.0
    %1461 = vmatpush2.msra.mxu0 0.0
    %1462 = vmatprep.subr.mxu0 0.0
    %1463 = vmatpush2.msra.mxu0 0.0
    %1464 = vmatprep.subr.mxu0 0.0
    %1465 = vmatpush2.msra.mxu0 0.0
    %1466 = vmatprep.subr.mxu0 0.0
    %1467 = vmatpush2.msra.mxu0 0.0
    %1468 = vmatprep.subr.mxu0 0.0
    %1469 = vmatpush2.msra.mxu0 0.0
    %1470 = vmatprep.subr.mxu0 0.0
    %1471 = vmatpush2.msra.mxu0 0.0
    %1472 = vmatprep.subr.mxu0 0.0
    %1473 = vmatpush2.msra.mxu0 0.0
    %1474 = vmatprep.subr.mxu0 0.0
    %1475 = vmatpush2.msra.mxu0 0.0
    %1476 = vmatprep.subr.mxu0 0.0
    %1477 = vmatpush2.msra.mxu0 0.0
    %1478 = vmatprep.subr.mxu0 0.0
    %1479 = vmatpush2.msra.mxu0 0.0
    %1480 = vmatprep.subr.mxu0 0.0
    %1481 = vmatpush2.msra.mxu0 0.0
    %1482 = vmatprep.subr.mxu0 0.0
    %1483 = vmatpush2.msra.mxu0 0.0
    %1484 = vmatprep.subr.mxu0 0.0
    %1485 = vmatpush2.msra.mxu0 0.0
    %1486 = vmatprep.mubr.f32.mxu0 0.0
    %v1487 = vand.u32 %v880, 4294901760
    %v1488 = vsub.f32 %v880, %v1487
    %v1489 = vand.u32 %v1488, 4294901760
    %1490 = vmatmul.mubr.f32.gmra.mxu0 %v1489
    %v1491 = vpop.f32.mrf.mxu0
    %v1492 = vadd.f32 %v1338, %v1491
    %v1493 = vpop.f32.mrf.mxu0
    %1494 = vmatprep.mubr.f32.mxu0 0.0
    %v1495 = vand.u32 %v883, 4294901760
    %v1496 = vsub.f32 %v883, %v1495
    %v1497 = vand.u32 %v1496, 4294901760
    %1498 = vmatmul.mubr.f32.gmra.mxu0 %v1497
    %v1499 = vpop.f32.mrf.mxu0
    %v1500 = vadd.f32 %v1345, %v1499
    %v1501 = vpop.f32.mrf.mxu0
    %1502 = vmatprep.mubr.f32.mxu0 0.0
    %v1503 = vand.u32 %v886, 4294901760
    %v1504 = vsub.f32 %v886, %v1503
    %v1505 = vand.u32 %v1504, 4294901760
    %1506 = vmatmul.mubr.f32.gmra.mxu0 %v1505
    %v1507 = vpop.f32.mrf.mxu0
    %v1508 = vadd.f32 %v1352, %v1507
    %v1509 = vpop.f32.mrf.mxu0
    %1510 = vmatprep.mubr.f32.mxu0 0.0
    %v1511 = vand.u32 %v889, 4294901760
    %v1512 = vsub.f32 %v889, %v1511
    %v1513 = vand.u32 %v1512, 4294901760
    %1514 = vmatmul.mubr.f32.gmra.mxu0 %v1513
    %v1515 = vpop.f32.mrf.mxu0
    %v1516 = vadd.f32 %v1359, %v1515
    %v1517 = vpop.f32.mrf.mxu0
    %1518 = vmatprep.mubr.f32.mxu0 0.0
    %v1519 = vand.u32 %v892, 4294901760
    %v1520 = vsub.f32 %v892, %v1519
    %v1521 = vand.u32 %v1520, 4294901760
    %1522 = vmatmul.mubr.f32.gmra.mxu0 %v1521
    %v1523 = vpop.f32.mrf.mxu0
    %v1524 = vadd.f32 %v1366, %v1523
    %v1525 = vpop.f32.mrf.mxu0
    %1526 = vmatprep.mubr.f32.mxu0 0.0
    %v1527 = vand.u32 %v895, 4294901760
    %v1528 = vsub.f32 %v895, %v1527
    %v1529 = vand.u32 %v1528, 4294901760
    %1530 = vmatmul.mubr.f32.gmra.mxu0 %v1529
    %v1531 = vpop.f32.mrf.mxu0
    %v1532 = vadd.f32 %v1373, %v1531
    %v1533 = vpop.f32.mrf.mxu0
    %1534 = vmatprep.mubr.f32.mxu0 0.0
    %v1535 = vand.u32 %v898, 4294901760
    %v1536 = vsub.f32 %v898, %v1535
    %v1537 = vand.u32 %v1536, 4294901760
    %1538 = vmatmul.mubr.f32.gmra.mxu0 %v1537
    %v1539 = vpop.f32.mrf.mxu0
    %v1540 = vadd.f32 %v1380, %v1539
    %v1541 = vpop.f32.mrf.mxu0
    %1542 = vmatprep.mubr.f32.mxu0 0.0
    %v1543 = vand.u32 %v901, 4294901760
    %v1544 = vsub.f32 %v901, %v1543
    %v1545 = vand.u32 %v1544, 4294901760
    %1546 = vmatmul.mubr.f32.gmra.mxu0 %v1545
    %v1547 = vpop.f32.mrf.mxu0
    %v1548 = vadd.f32 %v1387, %v1547
    %v1549 = vpop.f32.mrf.mxu0
    %1550 = vmatprep.mubr.f32.mxu0 0.0
    %v1551 = vand.u32 %v904, 4294901760
    %v1552 = vsub.f32 %v904, %v1551
    %v1553 = vand.u32 %v1552, 4294901760
    %1554 = vmatmul.mubr.f32.gmra.mxu0 %v1553
    %v1555 = vpop.f32.mrf.mxu0
    %v1556 = vadd.f32 %v1394, %v1555
    %v1557 = vpop.f32.mrf.mxu0
    %1558 = vmatprep.mubr.f32.mxu0 0.0
    %v1559 = vand.u32 %v907, 4294901760
    %v1560 = vsub.f32 %v907, %v1559
    %v1561 = vand.u32 %v1560, 4294901760
    %1562 = vmatmul.mubr.f32.gmra.mxu0 %v1561
    %v1563 = vpop.f32.mrf.mxu0
    %v1564 = vadd.f32 %v1401, %v1563
    %v1565 = vpop.f32.mrf.mxu0
    %1566 = vmatprep.mubr.f32.mxu0 0.0
    %v1567 = vand.u32 %v910, 4294901760
    %v1568 = vsub.f32 %v910, %v1567
    %v1569 = vand.u32 %v1568, 4294901760
    %1570 = vmatmul.mubr.f32.gmra.mxu0 %v1569
    %v1571 = vpop.f32.mrf.mxu0
    %v1572 = vadd.f32 %v1408, %v1571
    %v1573 = vpop.f32.mrf.mxu0
    %1574 = vmatprep.mubr.f32.mxu0 0.0
    %v1575 = vand.u32 %v913, 4294901760
    %v1576 = vsub.f32 %v913, %v1575
    %v1577 = vand.u32 %v1576, 4294901760
    %1578 = vmatmul.mubr.f32.gmra.mxu0 %v1577
    %v1579 = vpop.f32.mrf.mxu0
    %v1580 = vadd.f32 %v1415, %v1579
    %v1581 = vpop.f32.mrf.mxu0
    %1582 = vdwg.mxu0
    %1583 = vmatprep.subr.mxu0 0.0
    %1584 = vmatpush1.msra.mxu0 0.0
    %1585 = vmatprep.subr.mxu0 0.0
    %1586 = vmatpush1.msra.mxu0 0.0
    %1587 = vmatprep.subr.mxu0 0.0
    %1588 = vmatpush1.msra.mxu0 0.0
    %1589 = vmatprep.subr.mxu0 0.0
    %1590 = vmatpush1.msra.mxu0 0.0
    %1591 = vmatprep.subr.mxu0 0.0
    %1592 = vmatpush1.msra.mxu0 0.0
    %1593 = vmatprep.subr.mxu0 0.0
    %1594 = vmatpush1.msra.mxu0 0.0
    %1595 = vmatprep.subr.mxu0 0.0
    %1596 = vmatpush1.msra.mxu0 0.0
    %1597 = vmatprep.subr.mxu0 0.0
    %1598 = vmatpush1.msra.mxu0 0.0
    %1599 = vmatprep.subr.mxu0 0.0
    %1600 = vmatpush1.msra.mxu0 0.0
    %1601 = vmatprep.subr.mxu0 0.0
    %1602 = vmatpush1.msra.mxu0 0.0
    %1603 = vmatprep.subr.mxu0 0.0
    %1604 = vmatpush1.msra.mxu0 0.0
    %1605 = vmatprep.subr.mxu0 0.0
    %1606 = vmatpush1.msra.mxu0 0.0
    %1607 = vmatprep.subr.mxu0 0.0
    %v1608 = vand.u32 %v794, 4294901760
    %v1609 = vsub.f32 %v794, %v1608
    %v1610 = vand.u32 %v1609, 4294901760
    %1611 = vmatpush1.msra.mxu0 %v1610
    %1612 = vmatprep.subr.mxu0 0.0
    %v1613 = vand.u32 %v793, 4294901760
    %v1614 = vsub.f32 %v793, %v1613
    %v1615 = vand.u32 %v1614, 4294901760
    %1616 = vmatpush1.msra.mxu0 %v1615
    %1617 = vmatprep.subr.mxu0 0.0
    %v1618 = vand.u32 %v792, 4294901760
    %v1619 = vsub.f32 %v792, %v1618
    %v1620 = vand.u32 %v1619, 4294901760
    %1621 = vmatpush1.msra.mxu0 %v1620
    %1622 = vmatprep.subr.mxu0 0.0
    %v1623 = vand.u32 %v791, 4294901760
    %v1624 = vsub.f32 %v791, %v1623
    %v1625 = vand.u32 %v1624, 4294901760
    %1626 = vmatpush1.msra.mxu0 %v1625
    %1627 = vmatprep.subr.mxu0 0.0
    %1628 = vmatpush2.msra.mxu0 0.0
    %1629 = vmatprep.subr.mxu0 0.0
    %1630 = vmatpush2.msra.mxu0 0.0
    %1631 = vmatprep.subr.mxu0 0.0
    %1632 = vmatpush2.msra.mxu0 0.0
    %1633 = vmatprep.subr.mxu0 0.0
    %1634 = vmatpush2.msra.mxu0 0.0
    %1635 = vmatprep.subr.mxu0 0.0
    %1636 = vmatpush2.msra.mxu0 0.0
    %1637 = vmatprep.subr.mxu0 0.0
    %1638 = vmatpush2.msra.mxu0 0.0
    %1639 = vmatprep.subr.mxu0 0.0
    %1640 = vmatpush2.msra.mxu0 0.0
    %1641 = vmatprep.subr.mxu0 0.0
    %1642 = vmatpush2.msra.mxu0 0.0
    %1643 = vmatprep.subr.mxu0 0.0
    %1644 = vmatpush2.msra.mxu0 0.0
    %1645 = vmatprep.subr.mxu0 0.0
    %1646 = vmatpush2.msra.mxu0 0.0
    %1647 = vmatprep.subr.mxu0 0.0
    %1648 = vmatpush2.msra.mxu0 0.0
    %1649 = vmatprep.subr.mxu0 0.0
    %1650 = vmatpush2.msra.mxu0 0.0
    %1651 = vmatprep.subr.mxu0 0.0
    %1652 = vmatpush2.msra.mxu0 0.0
    %1653 = vmatprep.subr.mxu0 0.0
    %1654 = vmatpush2.msra.mxu0 0.0
    %1655 = vmatprep.subr.mxu0 0.0
    %1656 = vmatpush2.msra.mxu0 0.0
    %1657 = vmatprep.subr.mxu0 0.0
    %1658 = vmatpush2.msra.mxu0 0.0
    %1659 = vmatprep.mubr.f32.mxu0 0.0
    %v1660 = vand.u32 %v880, 4294901760
    %1661 = vmatmul.mubr.f32.gmra.mxu0 %v1660
    %v1662 = vpop.f32.mrf.mxu0
    %v1663 = vadd.f32 %v1492, %v1662
    %v1664 = vpop.f32.mrf.mxu0
    %1665 = vmatprep.mubr.f32.mxu0 0.0
    %v1666 = vand.u32 %v883, 4294901760
    %1667 = vmatmul.mubr.f32.gmra.mxu0 %v1666
    %v1668 = vpop.f32.mrf.mxu0
    %v1669 = vadd.f32 %v1500, %v1668
    %v1670 = vpop.f32.mrf.mxu0
    %1671 = vmatprep.mubr.f32.mxu0 0.0
    %v1672 = vand.u32 %v886, 4294901760
    %1673 = vmatmul.mubr.f32.gmra.mxu0 %v1672
    %v1674 = vpop.f32.mrf.mxu0
    %v1675 = vadd.f32 %v1508, %v1674
    %v1676 = vpop.f32.mrf.mxu0
    %1677 = vmatprep.mubr.f32.mxu0 0.0
    %v1678 = vand.u32 %v889, 4294901760
    %1679 = vmatmul.mubr.f32.gmra.mxu0 %v1678
    %v1680 = vpop.f32.mrf.mxu0
    %v1681 = vadd.f32 %v1516, %v1680
    %v1682 = vpop.f32.mrf.mxu0
    %1683 = vmatprep.mubr.f32.mxu0 0.0
    %v1684 = vand.u32 %v892, 4294901760
    %1685 = vmatmul.mubr.f32.gmra.mxu0 %v1684
    %v1686 = vpop.f32.mrf.mxu0
    %v1687 = vadd.f32 %v1524, %v1686
    %v1688 = vpop.f32.mrf.mxu0
    %1689 = vmatprep.mubr.f32.mxu0 0.0
    %v1690 = vand.u32 %v895, 4294901760
    %1691 = vmatmul.mubr.f32.gmra.mxu0 %v1690
    %v1692 = vpop.f32.mrf.mxu0
    %v1693 = vadd.f32 %v1532, %v1692
    %v1694 = vpop.f32.mrf.mxu0
    %1695 = vmatprep.mubr.f32.mxu0 0.0
    %v1696 = vand.u32 %v898, 4294901760
    %1697 = vmatmul.mubr.f32.gmra.mxu0 %v1696
    %v1698 = vpop.f32.mrf.mxu0
    %v1699 = vadd.f32 %v1540, %v1698
    %v1700 = vpop.f32.mrf.mxu0
    %1701 = vmatprep.mubr.f32.mxu0 0.0
    %v1702 = vand.u32 %v901, 4294901760
    %1703 = vmatmul.mubr.f32.gmra.mxu0 %v1702
    %v1704 = vpop.f32.mrf.mxu0
    %v1705 = vadd.f32 %v1548, %v1704
    %v1706 = vpop.f32.mrf.mxu0
    %1707 = vmatprep.mubr.f32.mxu0 0.0
    %v1708 = vand.u32 %v904, 4294901760
    %1709 = vmatmul.mubr.f32.gmra.mxu0 %v1708
    %v1710 = vpop.f32.mrf.mxu0
    %v1711 = vadd.f32 %v1556, %v1710
    %v1712 = vpop.f32.mrf.mxu0
    %1713 = vmatprep.mubr.f32.mxu0 0.0
    %v1714 = vand.u32 %v907, 4294901760
    %1715 = vmatmul.mubr.f32.gmra.mxu0 %v1714
    %v1716 = vpop.f32.mrf.mxu0
    %v1717 = vadd.f32 %v1564, %v1716
    %v1718 = vpop.f32.mrf.mxu0
    %1719 = vmatprep.mubr.f32.mxu0 0.0
    %v1720 = vand.u32 %v910, 4294901760
    %1721 = vmatmul.mubr.f32.gmra.mxu0 %v1720
    %v1722 = vpop.f32.mrf.mxu0
    %v1723 = vadd.f32 %v1572, %v1722
    %v1724 = vpop.f32.mrf.mxu0
    %1725 = vmatprep.mubr.f32.mxu0 0.0
    %v1726 = vand.u32 %v913, 4294901760
    %1727 = vmatmul.mubr.f32.gmra.mxu0 %v1726
    %v1728 = vpop.f32.mrf.mxu0
    %v1729 = vadd.f32 %v1580, %v1728
    %v1730 = vpop.f32.mrf.mxu0
    %1731 = vdwg.mxu0
    %1732 = vmatprep.subr.mxu0 0.0
    %1733 = vmatpush1.msra.mxu0 0.0
    %1734 = vmatprep.subr.mxu0 0.0
    %1735 = vmatpush1.msra.mxu0 0.0
    %1736 = vmatprep.subr.mxu0 0.0
    %1737 = vmatpush1.msra.mxu0 0.0
    %1738 = vmatprep.subr.mxu0 0.0
    %1739 = vmatpush1.msra.mxu0 0.0
    %1740 = vmatprep.subr.mxu0 0.0
    %1741 = vmatpush1.msra.mxu0 0.0
    %1742 = vmatprep.subr.mxu0 0.0
    %1743 = vmatpush1.msra.mxu0 0.0
    %1744 = vmatprep.subr.mxu0 0.0
    %1745 = vmatpush1.msra.mxu0 0.0
    %1746 = vmatprep.subr.mxu0 0.0
    %1747 = vmatpush1.msra.mxu0 0.0
    %1748 = vmatprep.subr.mxu0 0.0
    %1749 = vmatpush1.msra.mxu0 0.0
    %1750 = vmatprep.subr.mxu0 0.0
    %1751 = vmatpush1.msra.mxu0 0.0
    %1752 = vmatprep.subr.mxu0 0.0
    %1753 = vmatpush1.msra.mxu0 0.0
    %1754 = vmatprep.subr.mxu0 0.0
    %1755 = vmatpush1.msra.mxu0 0.0
    %1756 = vmatprep.subr.mxu0 0.0
    %v1757 = vand.u32 %v794, 4294901760
    %1758 = vmatpush1.msra.mxu0 %v1757
    %1759 = vmatprep.subr.mxu0 0.0
    %v1760 = vand.u32 %v793, 4294901760
    %1761 = vmatpush1.msra.mxu0 %v1760
    %1762 = vmatprep.subr.mxu0 0.0
    %v1763 = vand.u32 %v792, 4294901760
    %1764 = vmatpush1.msra.mxu0 %v1763
    %1765 = vmatprep.subr.mxu0 0.0
    %v1766 = vand.u32 %v791, 4294901760
    %1767 = vmatpush1.msra.mxu0 %v1766
    %1768 = vmatprep.subr.mxu0 0.0
    %1769 = vmatpush2.msra.mxu0 0.0
    %1770 = vmatprep.subr.mxu0 0.0
    %1771 = vmatpush2.msra.mxu0 0.0
    %1772 = vmatprep.subr.mxu0 0.0
    %1773 = vmatpush2.msra.mxu0 0.0
    %1774 = vmatprep.subr.mxu0 0.0
    %1775 = vmatpush2.msra.mxu0 0.0
    %1776 = vmatprep.subr.mxu0 0.0
    %1777 = vmatpush2.msra.mxu0 0.0
    %1778 = vmatprep.subr.mxu0 0.0
    %1779 = vmatpush2.msra.mxu0 0.0
    %1780 = vmatprep.subr.mxu0 0.0
    %1781 = vmatpush2.msra.mxu0 0.0
    %1782 = vmatprep.subr.mxu0 0.0
    %1783 = vmatpush2.msra.mxu0 0.0
    %1784 = vmatprep.subr.mxu0 0.0
    %1785 = vmatpush2.msra.mxu0 0.0
    %1786 = vmatprep.subr.mxu0 0.0
    %1787 = vmatpush2.msra.mxu0 0.0
    %1788 = vmatprep.subr.mxu0 0.0
    %1789 = vmatpush2.msra.mxu0 0.0
    %1790 = vmatprep.subr.mxu0 0.0
    %1791 = vmatpush2.msra.mxu0 0.0
    %1792 = vmatprep.subr.mxu0 0.0
    %1793 = vmatpush2.msra.mxu0 0.0
    %1794 = vmatprep.subr.mxu0 0.0
    %1795 = vmatpush2.msra.mxu0 0.0
    %1796 = vmatprep.subr.mxu0 0.0
    %1797 = vmatpush2.msra.mxu0 0.0
    %1798 = vmatprep.subr.mxu0 0.0
    %1799 = vmatpush2.msra.mxu0 0.0
    %1800 = vmatprep.mubr.f32.mxu0 0.0
    %v1801 = vand.u32 %v880, 4294901760
    %1802 = vmatmul.mubr.f32.gmra.mxu0 %v1801
    %v1803 = vpop.f32.mrf.mxu0
    %v1804 = vadd.f32 %v1663, %v1803
    %v1805 = vpop.f32.mrf.mxu0
    %1806 = vmatprep.mubr.f32.mxu0 0.0
    %v1807 = vand.u32 %v883, 4294901760
    %1808 = vmatmul.mubr.f32.gmra.mxu0 %v1807
    %v1809 = vpop.f32.mrf.mxu0
    %v1810 = vadd.f32 %v1669, %v1809
    %v1811 = vpop.f32.mrf.mxu0
    %1812 = vmatprep.mubr.f32.mxu0 0.0
    %v1813 = vand.u32 %v886, 4294901760
    %1814 = vmatmul.mubr.f32.gmra.mxu0 %v1813
    %v1815 = vpop.f32.mrf.mxu0
    %v1816 = vadd.f32 %v1675, %v1815
    %v1817 = vpop.f32.mrf.mxu0
    %1818 = vmatprep.mubr.f32.mxu0 0.0
    %v1819 = vand.u32 %v889, 4294901760
    %1820 = vmatmul.mubr.f32.gmra.mxu0 %v1819
    %v1821 = vpop.f32.mrf.mxu0
    %v1822 = vadd.f32 %v1681, %v1821
    %v1823 = vpop.f32.mrf.mxu0
    %1824 = vmatprep.mubr.f32.mxu0 0.0
    %v1825 = vand.u32 %v892, 4294901760
    %1826 = vmatmul.mubr.f32.gmra.mxu0 %v1825
    %v1827 = vpop.f32.mrf.mxu0
    %v1828 = vadd.f32 %v1687, %v1827
    %v1829 = vpop.f32.mrf.mxu0
    %1830 = vmatprep.mubr.f32.mxu0 0.0
    %v1831 = vand.u32 %v895, 4294901760
    %1832 = vmatmul.mubr.f32.gmra.mxu0 %v1831
    %v1833 = vpop.f32.mrf.mxu0
    %v1834 = vadd.f32 %v1693, %v1833
    %v1835 = vpop.f32.mrf.mxu0
    %1836 = vmatprep.mubr.f32.mxu0 0.0
    %v1837 = vand.u32 %v898, 4294901760
    %1838 = vmatmul.mubr.f32.gmra.mxu0 %v1837
    %v1839 = vpop.f32.mrf.mxu0
    %v1840 = vadd.f32 %v1699, %v1839
    %v1841 = vpop.f32.mrf.mxu0
    %1842 = vmatprep.mubr.f32.mxu0 0.0
    %v1843 = vand.u32 %v901, 4294901760
    %1844 = vmatmul.mubr.f32.gmra.mxu0 %v1843
    %v1845 = vpop.f32.mrf.mxu0
    %v1846 = vadd.f32 %v1705, %v1845
    %v1847 = vpop.f32.mrf.mxu0
    %1848 = vmatprep.mubr.f32.mxu0 0.0
    %v1849 = vand.u32 %v904, 4294901760
    %1850 = vmatmul.mubr.f32.gmra.mxu0 %v1849
    %v1851 = vpop.f32.mrf.mxu0
    %v1852 = vadd.f32 %v1711, %v1851
    %v1853 = vpop.f32.mrf.mxu0
    %1854 = vmatprep.mubr.f32.mxu0 0.0
    %v1855 = vand.u32 %v907, 4294901760
    %1856 = vmatmul.mubr.f32.gmra.mxu0 %v1855
    %v1857 = vpop.f32.mrf.mxu0
    %v1858 = vadd.f32 %v1717, %v1857
    %v1859 = vpop.f32.mrf.mxu0
    %1860 = vmatprep.mubr.f32.mxu0 0.0
    %v1861 = vand.u32 %v910, 4294901760
    %1862 = vmatmul.mubr.f32.gmra.mxu0 %v1861
    %v1863 = vpop.f32.mrf.mxu0
    %v1864 = vadd.f32 %v1723, %v1863
    %v1865 = vpop.f32.mrf.mxu0
    %1866 = vmatprep.mubr.f32.mxu0 0.0
    %v1867 = vand.u32 %v913, 4294901760
    %1868 = vmatmul.mubr.f32.gmra.mxu0 %v1867
    %v1869 = vpop.f32.mrf.mxu0
    %v1870 = vadd.f32 %v1729, %v1869
    %v1871 = vpop.f32.mrf.mxu0
    %1872 = vdwg.mxu0
    %v1873 = vmul.f32 %v1804, %v1804
    %v1874 = vmul.f32 %v1810, %v1810
    %v1875 = vmul.f32 %v1816, %v1816
    %v1876 = vmul.f32 %v1822, %v1822
    %v1877 = vmul.f32 %v1828, %v1828
    %v1878 = vmul.f32 %v1834, %v1834
    %v1879 = vadd.f32 %v1873, %v1875
    %v1880 = vadd.f32 %v1874, %v1876
    %v1881 = vadd.f32 %v1879, %v1877
    %v1882 = vadd.f32 %v1880, %v1878
    %v1883 = vadd.f32 %v1875, %v1877
    %v1884 = vadd.f32 %v1876, %v1878
    %v1885 = vadd.f32 %v1873, %v1877
    %v1886 = vadd.f32 %v1874, %v1878
    %vm1887 = vcmp.lt.f32.partialorder %v1881, 1e-08
    %vm1888 = vcmp.lt.f32.partialorder %v1882, 1e-08
    %v1889 = vsel %vm1887, 1.0, %v1881
    %v1890 = vsel %vm1888, 1.0, %v1882
    %v1891 = vrsqrt.pop %v1889
    %v1892 = vmul.f32 %v1889, %v1891
    %vm1893 = vcmp.eq.f32.partialorder %v1889, inf
    %v1894 = vsel %vm1893, %v1889, %v1892
    %vm1895 = vcmp.eq.f32.partialorder %v1889, 0.0
    %v1896 = vand.u32 %v1889, 2147483648
    %v1897 = vsel %vm1895, %v1896, %v1894
    %v1898 = vrsqrt.pop %v1890
    %v1899 = vmul.f32 %v1890, %v1898
    %vm1900 = vcmp.eq.f32.partialorder %v1890, inf
    %v1901 = vsel %vm1900, %v1890, %v1899
    %vm1902 = vcmp.eq.f32.partialorder %v1890, 0.0
    %v1903 = vand.u32 %v1890, 2147483648
    %v1904 = vsel %vm1902, %v1903, %v1901
    %v1905 = vand.u32 2147483647, %v1897
    %vm1906 = vcmp.le.f32.partialorder %v1905, 0.7853982
    %vm1907 = vcmp.lt.s32.totalorder %v1897, 0
    %v1908 = vand.u32 %v1897, 2139095040
    %v1909 = vshrl.u32 %v1908, 23
    %v1910 = vsub.s32 %v1909, 127
    %v1911 = vand.u32 2147483647, %v1897
    %v1912 = vand.u32 %v1911, 8388607
    %v1913 = vor.u32 %v1912, 8388608
    %v1914 = vsub.s32 0, %v1913
    %v1915 = vadd.s32 %v1910, 1
    %vm1916 = vcmp.gt.s32.totalorder %v1915, 0
    %v1917 = vsel %vm1916, %v1915, 0
    %v1918 = vshrl.u32 %v1917, 5
    %v1919 = vand.u32 %v1917, 31
    %v1920 = vsub.s32 32, %v1919
    %v1921 = vshrl.u32 683565275, %v1920
    %v1922 = vshll.u32 683565275, %v1919
    %v1923 = vshrl.u32 2475754826, %v1920
    %v1924 = vor.u32 %v1922, %v1923
    %v1925 = vshll.u32 2475754826, %v1919
    %v1926 = vshrl.u32 2131351028, %v1920
    %v1927 = vor.u32 %v1925, %v1926
    %v1928 = vshll.u32 2131351028, %v1919
    %v1929 = vshrl.u32 2102212464, %v1920
    %v1930 = vor.u32 %v1928, %v1929
    %v1931 = vshll.u32 2102212464, %v1919
    %v1932 = vshrl.u32 920167782, %v1920
    %v1933 = vor.u32 %v1931, %v1932
    %v1934 = vshll.u32 920167782, %v1919
    %v1935 = vshrl.u32 1326507024, %v1920
    %v1936 = vor.u32 %v1934, %v1935
    %vm1937 = vcmp.lt.s32.totalorder %v1918, 1
    %vm1938 = vcmp.lt.s32.totalorder %v1918, 2
    %vm1939 = vcmp.lt.s32.totalorder %v1918, 3
    %vm1940 = vcmp.lt.s32.totalorder %v1918, 4
    %v1941 = vsel %vm1937, %v1921, %v1924
    %v1942 = vsel %vm1940, %v1930, 2102212464
    %v1943 = vsel %vm1939, %v1927, %v1942
    %v1944 = vsel %vm1938, %v1941, %v1943
    %v1945 = vsel %vm1937, %v1924, %v1927
    %v1946 = vsel %vm1940, %v1933, 920167782
    %v1947 = vsel %vm1939, %v1930, %v1946
    %v1948 = vsel %vm1938, %v1945, %v1947
    %v1949 = vsel %vm1937, %v1927, %v1930
    %v1950 = vsel %vm1940, %v1936, 1326507024
    %v1951 = vsel %vm1939, %v1933, %v1950
    %v1952 = vsel %vm1938, %v1949, %v1951
    %v1953 = vshll.u32 %v1913, 8
    %v1954 = vmul.u32.u64.compose %v1953, %v1952
    %v1955 = vextract.low.u32 %v1954
    %v1956 = vextract.high.u32 %v1954
    %v1957 = vmul.u32.u64.compose %v1953, %v1948
    %v1958 = vextract.low.u32 %v1957
    %v1959 = vextract.high.u32 %v1957
    %v1960 = vmul.u32 %v1953, %v1944
    %v1961 = vadd.s32 %v1956, %v1958
    %vm1962 = vc.u32 %v1956, %v1958
    %v1963 = vadd.s32 %v1959, 1
    %v1964 = vsel %vm1962, %v1963, %v1959
    %v1965 = vadd.s32 %v1960, %v1964
    %v1966 = vadd.s32 %v1965, 536870912
    %v1967 = vshrl.u32 %v1966, 30
    %v1968 = vshll.u32 %v1967, 30
    %v1969 = vsub.s32 %v1965, %v1968
    %vm1970 = vcmp.lt.s32.totalorder %v1969, 0
    %v1971 = vsub.s32 0, %v1969
    %v1972 = vsel %vm1970, %v1971, %v1969
    %v1973 = vclz %v1972
    %v1974 = vsub.s32 %v1973, 2
    %vm1975 = vcmp.gt.s32.totalorder 0, %v1974
    %v1976 = vsel %vm1975, 0, %v1974
    %v1977 = vsub.s32 32, %v1976
    %v1978 = vshll.u32 %v1969, %v1976
    %v1979 = vshrl.u32 %v1961, %v1977
    %v1980 = vor.u32 %v1978, %v1979
    %v1981 = vsub.s32 4294967266, %v1976
    %v1982 = vadd.s32 %v1981, 127
    %v1983 = vshll.u32 %v1982, 23
    %v1984 = vor.u32 4788187, %v1983
    %v1985 = vand.u32 2147483647, %v1984
    %v1987 = vcvt.s32.f32 %v1980
    %v1988 = vmul.f32 %v1987, %v1985
    %v1989 = vxor.u32 %v1988, 2147483648
    %v1990 = vsel %vm1907, %v1989, %v1988
    %v1991 = vsub.s32 4, %v1967
    %v1992 = vsel %vm1907, %v1991, %v1967
    %v1993 = vsel %vm1906, %v1897, %v1990
    %v1994 = vsel %vm1906, 0, %v1992
    %v1995 = vcosq.f32.pop %v1993
    %v1996 = vsinq.f32.pop %v1993
    %vm1997 = vweird.f32 %v1897
    %v1998 = vadd.s32 %v1994, 3
    %v1999 = vand.u32 %v1998, 3
    %vm2000 = vcmp.lt.s32.totalorder %v1999, 2
    %vm2001 = vcmp.eq.s32.totalorder %v1999, 0
    %v2002 = vxor.u32 %v1996, 2147483648
    %v2003 = vsel %vm2001, %v1995, %v2002
    %vm2004 = vcmp.eq.s32.totalorder %v1999, 2
    %v2005 = vxor.u32 %v1995, 2147483648
    %v2006 = vsel %vm2004, %v2005, %v1996
    %v2007 = vsel %vm2000, %v2003, %v2006
    %v2008 = vsel %vm1997, nan, %v2007
    %v2009 = vand.u32 2147483647, %v1904
    %vm2010 = vcmp.le.f32.partialorder %v2009, 0.7853982
    %vm2011 = vcmp.lt.s32.totalorder %v1904, 0
    %v2012 = vand.u32 %v1904, 2139095040
    %v2013 = vshrl.u32 %v2012, 23
    %v2014 = vsub.s32 %v2013, 127
    %v2015 = vand.u32 2147483647, %v1904
    %v2016 = vand.u32 %v2015, 8388607
    %v2017 = vor.u32 %v2016, 8388608
    %v2018 = vsub.s32 0, %v2017
    %v2019 = vadd.s32 %v2014, 1
    %vm2020 = vcmp.gt.s32.totalorder %v2019, 0
    %v2021 = vsel %vm2020, %v2019, 0
    %v2022 = vshrl.u32 %v2021, 5
    %v2023 = vand.u32 %v2021, 31
    %v2024 = vsub.s32 32, %v2023
    %v2025 = vshrl.u32 683565275, %v2024
    %v2026 = vshll.u32 683565275, %v2023
    %v2027 = vshrl.u32 2475754826, %v2024
    %v2028 = vor.u32 %v2026, %v2027
    %v2029 = vshll.u32 2475754826, %v2023
    %v2030 = vshrl.u32 2131351028, %v2024
    %v2031 = vor.u32 %v2029, %v2030
    %v2032 = vshll.u32 2131351028, %v2023
    %v2033 = vshrl.u32 2102212464, %v2024
    %v2034 = vor.u32 %v2032, %v2033
    %v2035 = vshll.u32 2102212464, %v2023
    %v2036 = vshrl.u32 920167782, %v2024
    %v2037 = vor.u32 %v2035, %v2036
    %v2038 = vshll.u32 920167782, %v2023
    %v2039 = vshrl.u32 1326507024, %v2024
    %v2040 = vor.u32 %v2038, %v2039
    %vm2041 = vcmp.lt.s32.totalorder %v2022, 1
    %vm2042 = vcmp.lt.s32.totalorder %v2022, 2
    %vm2043 = vcmp.lt.s32.totalorder %v2022, 3
    %vm2044 = vcmp.lt.s32.totalorder %v2022, 4
    %v2045 = vsel %vm2041, %v2025, %v2028
    %v2046 = vsel %vm2044, %v2034, 2102212464
    %v2047 = vsel %vm2043, %v2031, %v2046
    %v2048 = vsel %vm2042, %v2045, %v2047
    %v2049 = vsel %vm2041, %v2028, %v2031
    %v2050 = vsel %vm2044, %v2037, 920167782
    %v2051 = vsel %vm2043, %v2034, %v2050
    %v2052 = vsel %vm2042, %v2049, %v2051
    %v2053 = vsel %vm2041, %v2031, %v2034
    %v2054 = vsel %vm2044, %v2040, 1326507024
    %v2055 = vsel %vm2043, %v2037, %v2054
    %v2056 = vsel %vm2042, %v2053, %v2055
    %v2057 = vshll.u32 %v2017, 8
    %v2058 = vmul.u32.u64.compose %v2057, %v2056
    %v2059 = vextract.low.u32 %v2058
    %v2060 = vextract.high.u32 %v2058
    %v2061 = vmul.u32.u64.compose %v2057, %v2052
    %v2062 = vextract.low.u32 %v2061
    %v2063 = vextract.high.u32 %v2061
    %v2064 = vmul.u32 %v2057, %v2048
    %v2065 = vadd.s32 %v2060, %v2062
    %vm2066 = vc.u32 %v2060, %v2062
    %v2067 = vadd.s32 %v2063, 1
    %v2068 = vsel %vm2066, %v2067, %v2063
    %v2069 = vadd.s32 %v2064, %v2068
    %v2070 = vadd.s32 %v2069, 536870912
    %v2071 = vshrl.u32 %v2070, 30
    %v2072 = vshll.u32 %v2071, 30
    %v2073 = vsub.s32 %v2069, %v2072
    %vm2074 = vcmp.lt.s32.totalorder %v2073, 0
    %v2075 = vsub.s32 0, %v2073
    %v2076 = vsel %vm2074, %v2075, %v2073
    %v2077 = vclz %v2076
    %v2078 = vsub.s32 %v2077, 2
    %vm2079 = vcmp.gt.s32.totalorder 0, %v2078
    %v2080 = vsel %vm2079, 0, %v2078
    %v2081 = vsub.s32 32, %v2080
    %v2082 = vshll.u32 %v2073, %v2080
    %v2083 = vshrl.u32 %v2065, %v2081
    %v2084 = vor.u32 %v2082, %v2083
    %v2085 = vsub.s32 4294967266, %v2080
    %v2086 = vadd.s32 %v2085, 127
    %v2087 = vshll.u32 %v2086, 23
    %v2088 = vor.u32 4788187, %v2087
    %v2089 = vand.u32 2147483647, %v2088
    %v2091 = vcvt.s32.f32 %v2084
    %v2092 = vmul.f32 %v2091, %v2089
    %v2093 = vxor.u32 %v2092, 2147483648
    %v2094 = vsel %vm2011, %v2093, %v2092
    %v2095 = vsub.s32 4, %v2071
    %v2096 = vsel %vm2011, %v2095, %v2071
    %v2097 = vsel %vm2010, %v1904, %v2094
    %v2098 = vsel %vm2010, 0, %v2096
    %v2099 = vcosq.f32.pop %v2097
    %v2100 = vsinq.f32.pop %v2097
    %vm2101 = vweird.f32 %v1904
    %v2102 = vadd.s32 %v2098, 3
    %v2103 = vand.u32 %v2102, 3
    %vm2104 = vcmp.lt.s32.totalorder %v2103, 2
    %vm2105 = vcmp.eq.s32.totalorder %v2103, 0
    %v2106 = vxor.u32 %v2100, 2147483648
    %v2107 = vsel %vm2105, %v2099, %v2106
    %vm2108 = vcmp.eq.s32.totalorder %v2103, 2
    %v2109 = vxor.u32 %v2099, 2147483648
    %v2110 = vsel %vm2108, %v2109, %v2100
    %v2111 = vsel %vm2104, %v2107, %v2110
    %v2112 = vsel %vm2101, nan, %v2111
    %v2113 = vmul.f32 %v1897, 0.5
    %v2114 = vmul.f32 %v1904, 0.5
    %v2115 = vand.u32 2147483647, %v2113
    %vm2116 = vcmp.le.f32.partialorder %v2115, 0.7853982
    %vm2117 = vcmp.lt.s32.totalorder %v2113, 0
    %v2118 = vand.u32 %v2113, 2139095040
    %v2119 = vshrl.u32 %v2118, 23
    %v2120 = vsub.s32 %v2119, 127
    %v2121 = vand.u32 2147483647, %v2113
    %v2122 = vand.u32 %v2121, 8388607
    %v2123 = vor.u32 %v2122, 8388608
    %v2124 = vsub.s32 0, %v2123
    %v2125 = vadd.s32 %v2120, 1
    %vm2126 = vcmp.gt.s32.totalorder %v2125, 0
    %v2127 = vsel %vm2126, %v2125, 0
    %v2128 = vshrl.u32 %v2127, 5
    %v2129 = vand.u32 %v2127, 31
    %v2130 = vsub.s32 32, %v2129
    %v2131 = vshrl.u32 683565275, %v2130
    %v2132 = vshll.u32 683565275, %v2129
    %v2133 = vshrl.u32 2475754826, %v2130
    %v2134 = vor.u32 %v2132, %v2133
    %v2135 = vshll.u32 2475754826, %v2129
    %v2136 = vshrl.u32 2131351028, %v2130
    %v2137 = vor.u32 %v2135, %v2136
    %v2138 = vshll.u32 2131351028, %v2129
    %v2139 = vshrl.u32 2102212464, %v2130
    %v2140 = vor.u32 %v2138, %v2139
    %v2141 = vshll.u32 2102212464, %v2129
    %v2142 = vshrl.u32 920167782, %v2130
    %v2143 = vor.u32 %v2141, %v2142
    %v2144 = vshll.u32 920167782, %v2129
    %v2145 = vshrl.u32 1326507024, %v2130
    %v2146 = vor.u32 %v2144, %v2145
    %vm2147 = vcmp.lt.s32.totalorder %v2128, 1
    %vm2148 = vcmp.lt.s32.totalorder %v2128, 2
    %vm2149 = vcmp.lt.s32.totalorder %v2128, 3
    %vm2150 = vcmp.lt.s32.totalorder %v2128, 4
    %v2151 = vsel %vm2147, %v2131, %v2134
    %v2152 = vsel %vm2150, %v2140, 2102212464
    %v2153 = vsel %vm2149, %v2137, %v2152
    %v2154 = vsel %vm2148, %v2151, %v2153
    %v2155 = vsel %vm2147, %v2134, %v2137
    %v2156 = vsel %vm2150, %v2143, 920167782
    %v2157 = vsel %vm2149, %v2140, %v2156
    %v2158 = vsel %vm2148, %v2155, %v2157
    %v2159 = vsel %vm2147, %v2137, %v2140
    %v2160 = vsel %vm2150, %v2146, 1326507024
    %v2161 = vsel %vm2149, %v2143, %v2160
    %v2162 = vsel %vm2148, %v2159, %v2161
    %v2163 = vshll.u32 %v2123, 8
    %v2164 = vmul.u32.u64.compose %v2163, %v2162
    %v2165 = vextract.low.u32 %v2164
    %v2166 = vextract.high.u32 %v2164
    %v2167 = vmul.u32.u64.compose %v2163, %v2158
    %v2168 = vextract.low.u32 %v2167
    %v2169 = vextract.high.u32 %v2167
    %v2170 = vmul.u32 %v2163, %v2154
    %v2171 = vadd.s32 %v2166, %v2168
    %vm2172 = vc.u32 %v2166, %v2168
    %v2173 = vadd.s32 %v2169, 1
    %v2174 = vsel %vm2172, %v2173, %v2169
    %v2175 = vadd.s32 %v2170, %v2174
    %v2176 = vadd.s32 %v2175, 536870912
    %v2177 = vshrl.u32 %v2176, 30
    %v2178 = vshll.u32 %v2177, 30
    %v2179 = vsub.s32 %v2175, %v2178
    %vm2180 = vcmp.lt.s32.totalorder %v2179, 0
    %v2181 = vsub.s32 0, %v2179
    %v2182 = vsel %vm2180, %v2181, %v2179
    %v2183 = vclz %v2182
    %v2184 = vsub.s32 %v2183, 2
    %vm2185 = vcmp.gt.s32.totalorder 0, %v2184
    %v2186 = vsel %vm2185, 0, %v2184
    %v2187 = vsub.s32 32, %v2186
    %v2188 = vshll.u32 %v2179, %v2186
    %v2189 = vshrl.u32 %v2171, %v2187
    %v2190 = vor.u32 %v2188, %v2189
    %v2191 = vsub.s32 4294967266, %v2186
    %v2192 = vadd.s32 %v2191, 127
    %v2193 = vshll.u32 %v2192, 23
    %v2194 = vor.u32 4788187, %v2193
    %v2195 = vand.u32 2147483647, %v2194
    %v2197 = vcvt.s32.f32 %v2190
    %v2198 = vmul.f32 %v2197, %v2195
    %v2199 = vxor.u32 %v2198, 2147483648
    %v2200 = vsel %vm2117, %v2199, %v2198
    %v2201 = vsub.s32 4, %v2177
    %v2202 = vsel %vm2117, %v2201, %v2177
    %v2203 = vsel %vm2116, %v2113, %v2200
    %v2204 = vsel %vm2116, 0, %v2202
    %v2205 = vcosq.f32.pop %v2203
    %v2206 = vsinq.f32.pop %v2203
    %vm2207 = vweird.f32 %v2113
    %v2208 = vadd.s32 %v2204, 3
    %v2209 = vand.u32 %v2208, 3
    %vm2210 = vcmp.lt.s32.totalorder %v2209, 2
    %vm2211 = vcmp.eq.s32.totalorder %v2209, 0
    %v2212 = vxor.u32 %v2206, 2147483648
    %v2213 = vsel %vm2211, %v2205, %v2212
    %vm2214 = vcmp.eq.s32.totalorder %v2209, 2
    %v2215 = vxor.u32 %v2205, 2147483648
    %v2216 = vsel %vm2214, %v2215, %v2206
    %v2217 = vsel %vm2210, %v2213, %v2216
    %v2218 = vsel %vm2207, nan, %v2217
    %v2219 = vand.u32 2147483647, %v2114
    %vm2220 = vcmp.le.f32.partialorder %v2219, 0.7853982
    %vm2221 = vcmp.lt.s32.totalorder %v2114, 0
    %v2222 = vand.u32 %v2114, 2139095040
    %v2223 = vshrl.u32 %v2222, 23
    %v2224 = vsub.s32 %v2223, 127
    %v2225 = vand.u32 2147483647, %v2114
    %v2226 = vand.u32 %v2225, 8388607
    %v2227 = vor.u32 %v2226, 8388608
    %v2228 = vsub.s32 0, %v2227
    %v2229 = vadd.s32 %v2224, 1
    %vm2230 = vcmp.gt.s32.totalorder %v2229, 0
    %v2231 = vsel %vm2230, %v2229, 0
    %v2232 = vshrl.u32 %v2231, 5
    %v2233 = vand.u32 %v2231, 31
    %v2234 = vsub.s32 32, %v2233
    %v2235 = vshrl.u32 683565275, %v2234
    %v2236 = vshll.u32 683565275, %v2233
    %v2237 = vshrl.u32 2475754826, %v2234
    %v2238 = vor.u32 %v2236, %v2237
    %v2239 = vshll.u32 2475754826, %v2233
    %v2240 = vshrl.u32 2131351028, %v2234
    %v2241 = vor.u32 %v2239, %v2240
    %v2242 = vshll.u32 2131351028, %v2233
    %v2243 = vshrl.u32 2102212464, %v2234
    %v2244 = vor.u32 %v2242, %v2243
    %v2245 = vshll.u32 2102212464, %v2233
    %v2246 = vshrl.u32 920167782, %v2234
    %v2247 = vor.u32 %v2245, %v2246
    %v2248 = vshll.u32 920167782, %v2233
    %v2249 = vshrl.u32 1326507024, %v2234
    %v2250 = vor.u32 %v2248, %v2249
    %vm2251 = vcmp.lt.s32.totalorder %v2232, 1
    %vm2252 = vcmp.lt.s32.totalorder %v2232, 2
    %vm2253 = vcmp.lt.s32.totalorder %v2232, 3
    %vm2254 = vcmp.lt.s32.totalorder %v2232, 4
    %v2255 = vsel %vm2251, %v2235, %v2238
    %v2256 = vsel %vm2254, %v2244, 2102212464
    %v2257 = vsel %vm2253, %v2241, %v2256
    %v2258 = vsel %vm2252, %v2255, %v2257
    %v2259 = vsel %vm2251, %v2238, %v2241
    %v2260 = vsel %vm2254, %v2247, 920167782
    %v2261 = vsel %vm2253, %v2244, %v2260
    %v2262 = vsel %vm2252, %v2259, %v2261
    %v2263 = vsel %vm2251, %v2241, %v2244
    %v2264 = vsel %vm2254, %v2250, 1326507024
    %v2265 = vsel %vm2253, %v2247, %v2264
    %v2266 = vsel %vm2252, %v2263, %v2265
    %v2267 = vshll.u32 %v2227, 8
    %v2268 = vmul.u32.u64.compose %v2267, %v2266
    %v2269 = vextract.low.u32 %v2268
    %v2270 = vextract.high.u32 %v2268
    %v2271 = vmul.u32.u64.compose %v2267, %v2262
    %v2272 = vextract.low.u32 %v2271
    %v2273 = vextract.high.u32 %v2271
    %v2274 = vmul.u32 %v2267, %v2258
    %v2275 = vadd.s32 %v2270, %v2272
    %vm2276 = vc.u32 %v2270, %v2272
    %v2277 = vadd.s32 %v2273, 1
    %v2278 = vsel %vm2276, %v2277, %v2273
    %v2279 = vadd.s32 %v2274, %v2278
    %v2280 = vadd.s32 %v2279, 536870912
    %v2281 = vshrl.u32 %v2280, 30
    %v2282 = vshll.u32 %v2281, 30
    %v2283 = vsub.s32 %v2279, %v2282
    %vm2284 = vcmp.lt.s32.totalorder %v2283, 0
    %v2285 = vsub.s32 0, %v2283
    %v2286 = vsel %vm2284, %v2285, %v2283
    %v2287 = vclz %v2286
    %v2288 = vsub.s32 %v2287, 2
    %vm2289 = vcmp.gt.s32.totalorder 0, %v2288
    %v2290 = vsel %vm2289, 0, %v2288
    %v2291 = vsub.s32 32, %v2290
    %v2292 = vshll.u32 %v2283, %v2290
    %v2293 = vshrl.u32 %v2275, %v2291
    %v2294 = vor.u32 %v2292, %v2293
    %v2295 = vsub.s32 4294967266, %v2290
    %v2296 = vadd.s32 %v2295, 127
    %v2297 = vshll.u32 %v2296, 23
    %v2298 = vor.u32 4788187, %v2297
    %v2299 = vand.u32 2147483647, %v2298
    %v2301 = vcvt.s32.f32 %v2294
    %v2302 = vmul.f32 %v2301, %v2299
    %v2303 = vxor.u32 %v2302, 2147483648
    %v2304 = vsel %vm2221, %v2303, %v2302
    %v2305 = vsub.s32 4, %v2281
    %v2306 = vsel %vm2221, %v2305, %v2281
    %v2307 = vsel %vm2220, %v2114, %v2304
    %v2308 = vsel %vm2220, 0, %v2306
    %v2309 = vcosq.f32.pop %v2307
    %v2310 = vsinq.f32.pop %v2307
    %vm2311 = vweird.f32 %v2114
    %v2312 = vadd.s32 %v2308, 3
    %v2313 = vand.u32 %v2312, 3
    %vm2314 = vcmp.lt.s32.totalorder %v2313, 2
    %vm2315 = vcmp.eq.s32.totalorder %v2313, 0
    %v2316 = vxor.u32 %v2310, 2147483648
    %v2317 = vsel %vm2315, %v2309, %v2316
    %vm2318 = vcmp.eq.s32.totalorder %v2313, 2
    %v2319 = vxor.u32 %v2309, 2147483648
    %v2320 = vsel %vm2318, %v2319, %v2310
    %v2321 = vsel %vm2314, %v2317, %v2320
    %v2322 = vsel %vm2311, nan, %v2321
    %v2323 = vmul.f32 %v1881, 0.16666667
    %v2324 = vmul.f32 %v1882, 0.16666667
    %v2325 = vsub.f32 1.0, %v2323
    %v2326 = vsub.f32 1.0, %v2324
    %v2327 = vrcp.pop %v1897
    %v2328 = vmul.f32 %v2008, %v2327
    %v2329 = vrcp.pop %v1904
    %v2330 = vmul.f32 %v2112, %v2329
    %v2331 = vsel %vm1887, %v2325, %v2328
    %v2332 = vsel %vm1888, %v2326, %v2330
    %v2333 = vmul.f32 %v1881, 0.041666668
    %v2334 = vmul.f32 %v1882, 0.041666668
    %v2335 = vsub.f32 0.5, %v2333
    %v2336 = vsub.f32 0.5, %v2334
    %v2337 = vmul.f32 %v2218, %v2218
    %v2338 = vmul.f32 %v2322, %v2322
    %v2339 = vmul.f32 %v2337, 2.0
    %v2340 = vmul.f32 %v2338, 2.0
    %v2341 = vrcp.pop %v1889
    %v2342 = vmul.f32 %v2339, %v2341
    %v2343 = vrcp.pop %v1890
    %v2344 = vmul.f32 %v2340, %v2343
    %v2345 = vsel %vm1887, %v2335, %v2342
    %v2346 = vsel %vm1888, %v2336, %v2344
    %v2347 = vmul.f32 %v1804, %v1816
    %v2348 = vmul.f32 %v1810, %v1822
    %v2349 = vmul.f32 %v2345, %v2347
    %v2350 = vmul.f32 %v2346, %v2348
    %v2351 = vmul.f32 %v1804, %v1828
    %v2352 = vmul.f32 %v1810, %v1834
    %v2353 = vmul.f32 %v2345, %v2351
    %v2354 = vmul.f32 %v2346, %v2352
    %v2355 = vmul.f32 %v1816, %v1828
    %v2356 = vmul.f32 %v1822, %v1834
    %v2357 = vmul.f32 %v2345, %v2355
    %v2358 = vmul.f32 %v2346, %v2356
    %v2359 = vmul.f32 %v2331, %v1804
    %v2360 = vmul.f32 %v2332, %v1810
    %v2361 = vmul.f32 %v2331, %v1816
    %v2362 = vmul.f32 %v2332, %v1822
    %v2363 = vmul.f32 %v2331, %v1828
    %v2364 = vmul.f32 %v2332, %v1834
    %v2365 = vmul.f32 %v2345, %v1883
    %v2366 = vmul.f32 %v2346, %v1884
    %v2367 = vsub.f32 1.0, %v2365
    %v2368 = vsub.f32 1.0, %v2366
    %v2369 = vsub.f32 %v2349, %v2363
    %v2370 = vsub.f32 %v2350, %v2364
    %v2371 = vadd.f32 %v2353, %v2361
    %v2372 = vadd.f32 %v2354, %v2362
    %v2373 = vadd.f32 %v2349, %v2363
    %v2374 = vadd.f32 %v2350, %v2364
    %v2375 = vmul.f32 %v2345, %v1885
    %v2376 = vmul.f32 %v2346, %v1886
    %v2377 = vsub.f32 1.0, %v2375
    %v2378 = vsub.f32 1.0, %v2376
    %v2379 = vsub.f32 %v2357, %v2359
    %v2380 = vsub.f32 %v2358, %v2360
    %v2381 = vsub.f32 %v2353, %v2361
    %v2382 = vsub.f32 %v2354, %v2362
    %v2383 = vadd.f32 %v2357, %v2359
    %v2384 = vadd.f32 %v2358, %v2360
    %v2385 = vmul.f32 %v2345, %v1879
    %v2386 = vmul.f32 %v2346, %v1880
    %v2387 = vsub.f32 1.0, %v2385
    %v2388 = vsub.f32 1.0, %v2386
    %v2389 = vld [vmem:[#allocation2] sm:$0xff]
    %v2390 = vld [vmem:[#allocation2 + $0x8] sm:$0xff]
    %v2391 = vld [vmem:[#allocation2 + $0x10] sm:$0xff]
    %v2392 = vld [vmem:[#allocation2 + $0x18] sm:$0xff]
    %v2393 = vld [vmem:[#allocation2 + $0x20] sm:$0xff]
    %v2394 = vld [vmem:[#allocation2 + $0x28] sm:$0xff]
    %v2395 = vld [vmem:[#allocation2 + $0x30] sm:$0xff]
    %v2396 = vld [vmem:[#allocation2 + $0x38] sm:$0xff]
    %v2397 = vld [vmem:[#allocation2 + $0x40] sm:$0xff]
    %v2398 = vld [vmem:[#allocation2 + $0x48] sm:$0xff]
    %v2399 = vld [vmem:[#allocation2 + $0x50] sm:$0xff]
    %v2400 = vld [vmem:[#allocation2 + $0x58] sm:$0xff]
    %v2401 = vld [vmem:[#allocation2 + $0x60] sm:$0xff]
    %v2402 = vld [vmem:[#allocation2 + $0x68] sm:$0xff]
    %v2403 = vld [vmem:[#allocation2 + $0x70] sm:$0xff]
    %v2404 = vld [vmem:[#allocation2 + $0x78] sm:$0xff]
    %v2405 = vld [vmem:[#allocation2 + $0x80] sm:$0xff]
    %v2406 = vld [vmem:[#allocation2 + $0x88] sm:$0xff]
    %v2407 = vld [vmem:[#allocation2 + $0x90] sm:$0xff]
    %v2408 = vld [vmem:[#allocation2 + $0x98] sm:$0xff]
    %v2409 = vld [vmem:[#allocation2 + $0xa0] sm:$0xff]
    %v2410 = vld [vmem:[#allocation2 + $0xa8] sm:$0xff]
    %v2411 = vld [vmem:[#allocation2 + $0xb0] sm:$0xff]
    %v2412 = vld [vmem:[#allocation2 + $0xb8] sm:$0xff]
    %v2413 = vld [vmem:[#allocation2 + $0xc0] sm:$0xff]
    %v2414 = vld [vmem:[#allocation2 + $0xc8] sm:$0xff]
    %v2415 = vld [vmem:[#allocation2 + $0xd0] sm:$0xff]
    %v2416 = vld [vmem:[#allocation2 + $0xd8] sm:$0xff]
    %v2417 = vld [vmem:[#allocation2 + $0xe0] sm:$0xff]
    %v2418 = vld [vmem:[#allocation2 + $0xe8] sm:$0xff]
    %v2419 = vld [vmem:[#allocation2 + $0xf0] sm:$0xff]
    %v2420 = vld [vmem:[#allocation2 + $0xf8] sm:$0xff]
    %v2421 = vld [vmem:[#allocation2 + $0x100] sm:$0xff]
    %v2422 = vld [vmem:[#allocation2 + $0x108] sm:$0xff]
    %v2423 = vld [vmem:[#allocation2 + $0x110] sm:$0xff]
    %v2424 = vld [vmem:[#allocation2 + $0x118] sm:$0xff]
    %v2425 = vld [vmem:[#allocation2 + $0x120] sm:$0xff]
    %v2426 = vld [vmem:[#allocation2 + $0x128] sm:$0xff]
    %v2427 = vld [vmem:[#allocation2 + $0x130] sm:$0xff]
    %v2428 = vld [vmem:[#allocation2 + $0x138] sm:$0xff]
    %v2429 = vld [vmem:[#allocation2 + $0x140] sm:$0xff]
    %v2430 = vld [vmem:[#allocation2 + $0x148] sm:$0xff]
    %v2431 = vld [vmem:[#allocation2 + $0x150] sm:$0xff]
    %v2432 = vld [vmem:[#allocation2 + $0x158] sm:$0xff]
    %v2433 = vld [vmem:[#allocation2 + $0x160] sm:$0xff]
    %v2434 = vld [vmem:[#allocation2 + $0x168] sm:$0xff]
    %v2435 = vld [vmem:[#allocation2 + $0x170] sm:$0xff]
    %v2436 = vld [vmem:[#allocation2 + $0x178] sm:$0xff]
    %vm2437 = vcmask 523264
    %v2439 = vsel %vm2437, %v2390, 0
    %v2442 = vsel %vm2437, %v2392, 0
    %v2445 = vsel %vm2437, %v2394, 0
    %v2448 = vsel %vm2437, %v2396, 0
    %v2451 = vsel %vm2437, %v2398, 0
    %v2454 = vsel %vm2437, %v2400, 0
    %v2457 = vsel %vm2437, %v2402, 0
    %v2460 = vsel %vm2437, %v2404, 0
    %v2463 = vsel %vm2437, %v2406, 0
    %v2466 = vsel %vm2437, %v2408, 0
    %v2469 = vsel %vm2437, %v2410, 0
    %v2472 = vsel %vm2437, %v2412, 0
    %v2475 = vsel %vm2437, %v2414, 0
    %v2478 = vsel %vm2437, %v2416, 0
    %v2481 = vsel %vm2437, %v2418, 0
    %v2484 = vsel %vm2437, %v2420, 0
    %v2487 = vsel %vm2437, %v2422, 0
    %v2490 = vsel %vm2437, %v2424, 0
    %v2493 = vsel %vm2437, %v2426, 0
    %v2496 = vsel %vm2437, %v2428, 0
    %v2499 = vsel %vm2437, %v2430, 0
    %v2502 = vsel %vm2437, %v2432, 0
    %v2505 = vsel %vm2437, %v2434, 0
    %v2508 = vsel %vm2437, %v2436, 0
    %2510 = vmatprep.subr.mxu0 0.0
    %v2511 = vand.u32 %v1858, 4294901760
    %2512 = vmatpush1.msra.mxu0 %v2511
    %2513 = vmatprep.subr.mxu0 0.0
    %v2514 = vand.u32 %v1852, 4294901760
    %2515 = vmatpush1.msra.mxu0 %v2514
    %2516 = vmatprep.subr.mxu0 0.0
    %v2517 = vand.u32 %v2380, 4294901760
    %2518 = vmatpush1.msra.mxu0 %v2517
    %2519 = vmatprep.subr.mxu0 0.0
    %v2520 = vand.u32 %v2379, 4294901760
    %2521 = vmatpush1.msra.mxu0 %v2520
    %2522 = vmatprep.subr.mxu0 0.0
    %v2523 = vand.u32 %v2378, 4294901760
    %2524 = vmatpush1.msra.mxu0 %v2523
    %2525 = vmatprep.subr.mxu0 0.0
    %v2526 = vand.u32 %v2377, 4294901760
    %2527 = vmatpush1.msra.mxu0 %v2526
    %2528 = vmatprep.subr.mxu0 0.0
    %v2529 = vand.u32 %v2374, 4294901760
    %2530 = vmatpush1.msra.mxu0 %v2529
    %2531 = vmatprep.subr.mxu0 0.0
    %v2532 = vand.u32 %v2373, 4294901760
    %2533 = vmatpush1.msra.mxu0 %v2532
    %2534 = vmatprep.subr.mxu0 0.0
    %v2535 = vand.u32 %v1846, 4294901760
    %2536 = vmatpush1.msra.mxu0 %v2535
    %2537 = vmatprep.subr.mxu0 0.0
    %v2538 = vand.u32 %v1840, 4294901760
    %2539 = vmatpush1.msra.mxu0 %v2538
    %2540 = vmatprep.subr.mxu0 0.0
    %v2541 = vand.u32 %v2372, 4294901760
    %2542 = vmatpush1.msra.mxu0 %v2541
    %2543 = vmatprep.subr.mxu0 0.0
    %v2544 = vand.u32 %v2371, 4294901760
    %2545 = vmatpush1.msra.mxu0 %v2544
    %2546 = vmatprep.subr.mxu0 0.0
    %v2547 = vand.u32 %v2370, 4294901760
    %2548 = vmatpush1.msra.mxu0 %v2547
    %2549 = vmatprep.subr.mxu0 0.0
    %v2550 = vand.u32 %v2369, 4294901760
    %2551 = vmatpush1.msra.mxu0 %v2550
    %2552 = vmatprep.subr.mxu0 0.0
    %v2553 = vand.u32 %v2368, 4294901760
    %2554 = vmatpush1.msra.mxu0 %v2553
    %2555 = vmatprep.subr.mxu0 0.0
    %v2556 = vand.u32 %v2367, 4294901760
    %2557 = vmatpush1.msra.mxu0 %v2556
    %2558 = vmatprep.subr.mxu0 0.0
    %2559 = vmatpush2.msra.mxu0 0.0
    %2560 = vmatprep.subr.mxu0 0.0
    %2561 = vmatpush2.msra.mxu0 0.0
    %2562 = vmatprep.subr.mxu0 0.0
    %2563 = vmatpush2.msra.mxu0 0.0
    %2564 = vmatprep.subr.mxu0 0.0
    %2565 = vmatpush2.msra.mxu0 0.0
    %2566 = vmatprep.subr.mxu0 0.0
    %2567 = vmatpush2.msra.mxu0 0.0
    %2568 = vmatprep.subr.mxu0 0.0
    %2569 = vmatpush2.msra.mxu0 0.0
    %2570 = vmatprep.subr.mxu0 0.0
    %2571 = vmatpush2.msra.mxu0 0.0
    %2572 = vmatprep.subr.mxu0 0.0
    %2573 = vmatpush2.msra.mxu0 0.0
    %2574 = vmatprep.subr.mxu0 0.0
    %v2575 = vand.u32 %v1870, 4294901760
    %2576 = vmatpush2.msra.mxu0 %v2575
    %2577 = vmatprep.subr.mxu0 0.0
    %v2578 = vand.u32 %v1864, 4294901760
    %2579 = vmatpush2.msra.mxu0 %v2578
    %2580 = vmatprep.subr.mxu0 0.0
    %v2581 = vand.u32 %v2388, 4294901760
    %2582 = vmatpush2.msra.mxu0 %v2581
    %2583 = vmatprep.subr.mxu0 0.0
    %v2584 = vand.u32 %v2387, 4294901760
    %2585 = vmatpush2.msra.mxu0 %v2584
    %2586 = vmatprep.subr.mxu0 0.0
    %v2587 = vand.u32 %v2384, 4294901760
    %2588 = vmatpush2.msra.mxu0 %v2587
    %2589 = vmatprep.subr.mxu0 0.0
    %v2590 = vand.u32 %v2383, 4294901760
    %2591 = vmatpush2.msra.mxu0 %v2590
    %2592 = vmatprep.subr.mxu0 0.0
    %v2593 = vand.u32 %v2382, 4294901760
    %2594 = vmatpush2.msra.mxu0 %v2593
    %2595 = vmatprep.subr.mxu0 0.0
    %v2596 = vand.u32 %v2381, 4294901760
    %2597 = vmatpush2.msra.mxu0 %v2596
    %v2598 = vand.u32 %v2439, 4294901760
    %v2599 = vsub.f32 %v2439, %v2598
    %v2600 = vand.u32 %v2599, 4294901760
    %v2601 = vsub.f32 %v2599, %v2600
    %v2602 = vand.u32 %v2601, 4294901760
    %2603 = vmatprep.mubr.f32.mxu0 %v2602
    %v2604 = vand.u32 %v2389, 4294901760
    %v2605 = vsub.f32 %v2389, %v2604
    %v2606 = vand.u32 %v2605, 4294901760
    %v2607 = vsub.f32 %v2605, %v2606
    %v2608 = vand.u32 %v2607, 4294901760
    %2609 = vmatmul.mubr.f32.gmra.mxu0 %v2608
    %v2610 = vpop.f32.mrf.mxu0
    %v2611 = vadd.f32 0.0, %v2610
    %v2612 = vpop.f32.mrf.mxu0
    %v2613 = vand.u32 %v2442, 4294901760
    %v2614 = vsub.f32 %v2442, %v2613
    %v2615 = vand.u32 %v2614, 4294901760
    %v2616 = vsub.f32 %v2614, %v2615
    %v2617 = vand.u32 %v2616, 4294901760
    %2618 = vmatprep.mubr.f32.mxu0 %v2617
    %v2619 = vand.u32 %v2391, 4294901760
    %v2620 = vsub.f32 %v2391, %v2619
    %v2621 = vand.u32 %v2620, 4294901760
    %v2622 = vsub.f32 %v2620, %v2621
    %v2623 = vand.u32 %v2622, 4294901760
    %2624 = vmatmul.mubr.f32.gmra.mxu0 %v2623
    %v2625 = vpop.f32.mrf.mxu0
    %v2626 = vadd.f32 0.0, %v2625
    %v2627 = vpop.f32.mrf.mxu0
    %v2628 = vand.u32 %v2445, 4294901760
    %v2629 = vsub.f32 %v2445, %v2628
    %v2630 = vand.u32 %v2629, 4294901760
    %v2631 = vsub.f32 %v2629, %v2630
    %v2632 = vand.u32 %v2631, 4294901760
    %2633 = vmatprep.mubr.f32.mxu0 %v2632
    %v2634 = vand.u32 %v2393, 4294901760
    %v2635 = vsub.f32 %v2393, %v2634
    %v2636 = vand.u32 %v2635, 4294901760
    %v2637 = vsub.f32 %v2635, %v2636
    %v2638 = vand.u32 %v2637, 4294901760
    %2639 = vmatmul.mubr.f32.gmra.mxu0 %v2638
    %v2640 = vpop.f32.mrf.mxu0
    %v2641 = vadd.f32 0.0, %v2640
    %v2642 = vpop.f32.mrf.mxu0
    %v2643 = vand.u32 %v2448, 4294901760
    %v2644 = vsub.f32 %v2448, %v2643
    %v2645 = vand.u32 %v2644, 4294901760
    %v2646 = vsub.f32 %v2644, %v2645
    %v2647 = vand.u32 %v2646, 4294901760
    %2648 = vmatprep.mubr.f32.mxu0 %v2647
    %v2649 = vand.u32 %v2395, 4294901760
    %v2650 = vsub.f32 %v2395, %v2649
    %v2651 = vand.u32 %v2650, 4294901760
    %v2652 = vsub.f32 %v2650, %v2651
    %v2653 = vand.u32 %v2652, 4294901760
    %2654 = vmatmul.mubr.f32.gmra.mxu0 %v2653
    %v2655 = vpop.f32.mrf.mxu0
    %v2656 = vadd.f32 0.0, %v2655
    %v2657 = vpop.f32.mrf.mxu0
    %v2658 = vand.u32 %v2451, 4294901760
    %v2659 = vsub.f32 %v2451, %v2658
    %v2660 = vand.u32 %v2659, 4294901760
    %v2661 = vsub.f32 %v2659, %v2660
    %v2662 = vand.u32 %v2661, 4294901760
    %2663 = vmatprep.mubr.f32.mxu0 %v2662
    %v2664 = vand.u32 %v2397, 4294901760
    %v2665 = vsub.f32 %v2397, %v2664
    %v2666 = vand.u32 %v2665, 4294901760
    %v2667 = vsub.f32 %v2665, %v2666
    %v2668 = vand.u32 %v2667, 4294901760
    %2669 = vmatmul.mubr.f32.gmra.mxu0 %v2668
    %v2670 = vpop.f32.mrf.mxu0
    %v2671 = vadd.f32 0.0, %v2670
    %v2672 = vpop.f32.mrf.mxu0
    %v2673 = vand.u32 %v2454, 4294901760
    %v2674 = vsub.f32 %v2454, %v2673
    %v2675 = vand.u32 %v2674, 4294901760
    %v2676 = vsub.f32 %v2674, %v2675
    %v2677 = vand.u32 %v2676, 4294901760
    %2678 = vmatprep.mubr.f32.mxu0 %v2677
    %v2679 = vand.u32 %v2399, 4294901760
    %v2680 = vsub.f32 %v2399, %v2679
    %v2681 = vand.u32 %v2680, 4294901760
    %v2682 = vsub.f32 %v2680, %v2681
    %v2683 = vand.u32 %v2682, 4294901760
    %2684 = vmatmul.mubr.f32.gmra.mxu0 %v2683
    %v2685 = vpop.f32.mrf.mxu0
    %v2686 = vadd.f32 0.0, %v2685
    %v2687 = vpop.f32.mrf.mxu0
    %v2688 = vand.u32 %v2457, 4294901760
    %v2689 = vsub.f32 %v2457, %v2688
    %v2690 = vand.u32 %v2689, 4294901760
    %v2691 = vsub.f32 %v2689, %v2690
    %v2692 = vand.u32 %v2691, 4294901760
    %2693 = vmatprep.mubr.f32.mxu0 %v2692
    %v2694 = vand.u32 %v2401, 4294901760
    %v2695 = vsub.f32 %v2401, %v2694
    %v2696 = vand.u32 %v2695, 4294901760
    %v2697 = vsub.f32 %v2695, %v2696
    %v2698 = vand.u32 %v2697, 4294901760
    %2699 = vmatmul.mubr.f32.gmra.mxu0 %v2698
    %v2700 = vpop.f32.mrf.mxu0
    %v2701 = vadd.f32 0.0, %v2700
    %v2702 = vpop.f32.mrf.mxu0
    %v2703 = vand.u32 %v2460, 4294901760
    %v2704 = vsub.f32 %v2460, %v2703
    %v2705 = vand.u32 %v2704, 4294901760
    %v2706 = vsub.f32 %v2704, %v2705
    %v2707 = vand.u32 %v2706, 4294901760
    %2708 = vmatprep.mubr.f32.mxu0 %v2707
    %v2709 = vand.u32 %v2403, 4294901760
    %v2710 = vsub.f32 %v2403, %v2709
    %v2711 = vand.u32 %v2710, 4294901760
    %v2712 = vsub.f32 %v2710, %v2711
    %v2713 = vand.u32 %v2712, 4294901760
    %2714 = vmatmul.mubr.f32.gmra.mxu0 %v2713
    %v2715 = vpop.f32.mrf.mxu0
    %v2716 = vadd.f32 0.0, %v2715
    %v2717 = vpop.f32.mrf.mxu0
    %v2718 = vand.u32 %v2463, 4294901760
    %v2719 = vsub.f32 %v2463, %v2718
    %v2720 = vand.u32 %v2719, 4294901760
    %v2721 = vsub.f32 %v2719, %v2720
    %v2722 = vand.u32 %v2721, 4294901760
    %2723 = vmatprep.mubr.f32.mxu0 %v2722
    %v2724 = vand.u32 %v2405, 4294901760
    %v2725 = vsub.f32 %v2405, %v2724
    %v2726 = vand.u32 %v2725, 4294901760
    %v2727 = vsub.f32 %v2725, %v2726
    %v2728 = vand.u32 %v2727, 4294901760
    %2729 = vmatmul.mubr.f32.gmra.mxu0 %v2728
    %v2730 = vpop.f32.mrf.mxu0
    %v2731 = vadd.f32 0.0, %v2730
    %v2732 = vpop.f32.mrf.mxu0
    %v2733 = vand.u32 %v2466, 4294901760
    %v2734 = vsub.f32 %v2466, %v2733
    %v2735 = vand.u32 %v2734, 4294901760
    %v2736 = vsub.f32 %v2734, %v2735
    %v2737 = vand.u32 %v2736, 4294901760
    %2738 = vmatprep.mubr.f32.mxu0 %v2737
    %v2739 = vand.u32 %v2407, 4294901760
    %v2740 = vsub.f32 %v2407, %v2739
    %v2741 = vand.u32 %v2740, 4294901760
    %v2742 = vsub.f32 %v2740, %v2741
    %v2743 = vand.u32 %v2742, 4294901760
    %2744 = vmatmul.mubr.f32.gmra.mxu0 %v2743
    %v2745 = vpop.f32.mrf.mxu0
    %v2746 = vadd.f32 0.0, %v2745
    %v2747 = vpop.f32.mrf.mxu0
    %v2748 = vand.u32 %v2469, 4294901760
    %v2749 = vsub.f32 %v2469, %v2748
    %v2750 = vand.u32 %v2749, 4294901760
    %v2751 = vsub.f32 %v2749, %v2750
    %v2752 = vand.u32 %v2751, 4294901760
    %2753 = vmatprep.mubr.f32.mxu0 %v2752
    %v2754 = vand.u32 %v2409, 4294901760
    %v2755 = vsub.f32 %v2409, %v2754
    %v2756 = vand.u32 %v2755, 4294901760
    %v2757 = vsub.f32 %v2755, %v2756
    %v2758 = vand.u32 %v2757, 4294901760
    %2759 = vmatmul.mubr.f32.gmra.mxu0 %v2758
    %v2760 = vpop.f32.mrf.mxu0
    %v2761 = vadd.f32 0.0, %v2760
    %v2762 = vpop.f32.mrf.mxu0
    %v2763 = vand.u32 %v2472, 4294901760
    %v2764 = vsub.f32 %v2472, %v2763
    %v2765 = vand.u32 %v2764, 4294901760
    %v2766 = vsub.f32 %v2764, %v2765
    %v2767 = vand.u32 %v2766, 4294901760
    %2768 = vmatprep.mubr.f32.mxu0 %v2767
    %v2769 = vand.u32 %v2411, 4294901760
    %v2770 = vsub.f32 %v2411, %v2769
    %v2771 = vand.u32 %v2770, 4294901760
    %v2772 = vsub.f32 %v2770, %v2771
    %v2773 = vand.u32 %v2772, 4294901760
    %2774 = vmatmul.mubr.f32.gmra.mxu0 %v2773
    %v2775 = vpop.f32.mrf.mxu0
    %v2776 = vadd.f32 0.0, %v2775
    %v2777 = vpop.f32.mrf.mxu0
    %v2778 = vand.u32 %v2475, 4294901760
    %v2779 = vsub.f32 %v2475, %v2778
    %v2780 = vand.u32 %v2779, 4294901760
    %v2781 = vsub.f32 %v2779, %v2780
    %v2782 = vand.u32 %v2781, 4294901760
    %2783 = vmatprep.mubr.f32.mxu0 %v2782
    %v2784 = vand.u32 %v2413, 4294901760
    %v2785 = vsub.f32 %v2413, %v2784
    %v2786 = vand.u32 %v2785, 4294901760
    %v2787 = vsub.f32 %v2785, %v2786
    %v2788 = vand.u32 %v2787, 4294901760
    %2789 = vmatmul.mubr.f32.gmra.mxu0 %v2788
    %v2790 = vpop.f32.mrf.mxu0
    %v2791 = vadd.f32 0.0, %v2790
    %v2792 = vpop.f32.mrf.mxu0
    %v2793 = vand.u32 %v2478, 4294901760
    %v2794 = vsub.f32 %v2478, %v2793
    %v2795 = vand.u32 %v2794, 4294901760
    %v2796 = vsub.f32 %v2794, %v2795
    %v2797 = vand.u32 %v2796, 4294901760
    %2798 = vmatprep.mubr.f32.mxu0 %v2797
    %v2799 = vand.u32 %v2415, 4294901760
    %v2800 = vsub.f32 %v2415, %v2799
    %v2801 = vand.u32 %v2800, 4294901760
    %v2802 = vsub.f32 %v2800, %v2801
    %v2803 = vand.u32 %v2802, 4294901760
    %2804 = vmatmul.mubr.f32.gmra.mxu0 %v2803
    %v2805 = vpop.f32.mrf.mxu0
    %v2806 = vadd.f32 0.0, %v2805
    %v2807 = vpop.f32.mrf.mxu0
    %v2808 = vand.u32 %v2481, 4294901760
    %v2809 = vsub.f32 %v2481, %v2808
    %v2810 = vand.u32 %v2809, 4294901760
    %v2811 = vsub.f32 %v2809, %v2810
    %v2812 = vand.u32 %v2811, 4294901760
    %2813 = vmatprep.mubr.f32.mxu0 %v2812
    %v2814 = vand.u32 %v2417, 4294901760
    %v2815 = vsub.f32 %v2417, %v2814
    %v2816 = vand.u32 %v2815, 4294901760
    %v2817 = vsub.f32 %v2815, %v2816
    %v2818 = vand.u32 %v2817, 4294901760
    %2819 = vmatmul.mubr.f32.gmra.mxu0 %v2818
    %v2820 = vpop.f32.mrf.mxu0
    %v2821 = vadd.f32 0.0, %v2820
    %v2822 = vpop.f32.mrf.mxu0
    %v2823 = vand.u32 %v2484, 4294901760
    %v2824 = vsub.f32 %v2484, %v2823
    %v2825 = vand.u32 %v2824, 4294901760
    %v2826 = vsub.f32 %v2824, %v2825
    %v2827 = vand.u32 %v2826, 4294901760
    %2828 = vmatprep.mubr.f32.mxu0 %v2827
    %v2829 = vand.u32 %v2419, 4294901760
    %v2830 = vsub.f32 %v2419, %v2829
    %v2831 = vand.u32 %v2830, 4294901760
    %v2832 = vsub.f32 %v2830, %v2831
    %v2833 = vand.u32 %v2832, 4294901760
    %2834 = vmatmul.mubr.f32.gmra.mxu0 %v2833
    %v2835 = vpop.f32.mrf.mxu0
    %v2836 = vadd.f32 0.0, %v2835
    %v2837 = vpop.f32.mrf.mxu0
    %v2838 = vand.u32 %v2487, 4294901760
    %v2839 = vsub.f32 %v2487, %v2838
    %v2840 = vand.u32 %v2839, 4294901760
    %v2841 = vsub.f32 %v2839, %v2840
    %v2842 = vand.u32 %v2841, 4294901760
    %2843 = vmatprep.mubr.f32.mxu0 %v2842
    %v2844 = vand.u32 %v2421, 4294901760
    %v2845 = vsub.f32 %v2421, %v2844
    %v2846 = vand.u32 %v2845, 4294901760
    %v2847 = vsub.f32 %v2845, %v2846
    %v2848 = vand.u32 %v2847, 4294901760
    %2849 = vmatmul.mubr.f32.gmra.mxu0 %v2848
    %v2850 = vpop.f32.mrf.mxu0
    %v2851 = vadd.f32 0.0, %v2850
    %v2852 = vpop.f32.mrf.mxu0
    %v2853 = vand.u32 %v2490, 4294901760
    %v2854 = vsub.f32 %v2490, %v2853
    %v2855 = vand.u32 %v2854, 4294901760
    %v2856 = vsub.f32 %v2854, %v2855
    %v2857 = vand.u32 %v2856, 4294901760
    %2858 = vmatprep.mubr.f32.mxu0 %v2857
    %v2859 = vand.u32 %v2423, 4294901760
    %v2860 = vsub.f32 %v2423, %v2859
    %v2861 = vand.u32 %v2860, 4294901760
    %v2862 = vsub.f32 %v2860, %v2861
    %v2863 = vand.u32 %v2862, 4294901760
    %2864 = vmatmul.mubr.f32.gmra.mxu0 %v2863
    %v2865 = vpop.f32.mrf.mxu0
    %v2866 = vadd.f32 0.0, %v2865
    %v2867 = vpop.f32.mrf.mxu0
    %v2868 = vand.u32 %v2493, 4294901760
    %v2869 = vsub.f32 %v2493, %v2868
    %v2870 = vand.u32 %v2869, 4294901760
    %v2871 = vsub.f32 %v2869, %v2870
    %v2872 = vand.u32 %v2871, 4294901760
    %2873 = vmatprep.mubr.f32.mxu0 %v2872
    %v2874 = vand.u32 %v2425, 4294901760
    %v2875 = vsub.f32 %v2425, %v2874
    %v2876 = vand.u32 %v2875, 4294901760
    %v2877 = vsub.f32 %v2875, %v2876
    %v2878 = vand.u32 %v2877, 4294901760
    %2879 = vmatmul.mubr.f32.gmra.mxu0 %v2878
    %v2880 = vpop.f32.mrf.mxu0
    %v2881 = vadd.f32 0.0, %v2880
    %v2882 = vpop.f32.mrf.mxu0
    %v2883 = vand.u32 %v2496, 4294901760
    %v2884 = vsub.f32 %v2496, %v2883
    %v2885 = vand.u32 %v2884, 4294901760
    %v2886 = vsub.f32 %v2884, %v2885
    %v2887 = vand.u32 %v2886, 4294901760
    %2888 = vmatprep.mubr.f32.mxu0 %v2887
    %v2889 = vand.u32 %v2427, 4294901760
    %v2890 = vsub.f32 %v2427, %v2889
    %v2891 = vand.u32 %v2890, 4294901760
    %v2892 = vsub.f32 %v2890, %v2891
    %v2893 = vand.u32 %v2892, 4294901760
    %2894 = vmatmul.mubr.f32.gmra.mxu0 %v2893
    %v2895 = vpop.f32.mrf.mxu0
    %v2896 = vadd.f32 0.0, %v2895
    %v2897 = vpop.f32.mrf.mxu0
    %v2898 = vand.u32 %v2499, 4294901760
    %v2899 = vsub.f32 %v2499, %v2898
    %v2900 = vand.u32 %v2899, 4294901760
    %v2901 = vsub.f32 %v2899, %v2900
    %v2902 = vand.u32 %v2901, 4294901760
    %2903 = vmatprep.mubr.f32.mxu0 %v2902
    %v2904 = vand.u32 %v2429, 4294901760
    %v2905 = vsub.f32 %v2429, %v2904
    %v2906 = vand.u32 %v2905, 4294901760
    %v2907 = vsub.f32 %v2905, %v2906
    %v2908 = vand.u32 %v2907, 4294901760
    %2909 = vmatmul.mubr.f32.gmra.mxu0 %v2908
    %v2910 = vpop.f32.mrf.mxu0
    %v2911 = vadd.f32 0.0, %v2910
    %v2912 = vpop.f32.mrf.mxu0
    %v2913 = vand.u32 %v2502, 4294901760
    %v2914 = vsub.f32 %v2502, %v2913
    %v2915 = vand.u32 %v2914, 4294901760
    %v2916 = vsub.f32 %v2914, %v2915
    %v2917 = vand.u32 %v2916, 4294901760
    %2918 = vmatprep.mubr.f32.mxu0 %v2917
    %v2919 = vand.u32 %v2431, 4294901760
    %v2920 = vsub.f32 %v2431, %v2919
    %v2921 = vand.u32 %v2920, 4294901760
    %v2922 = vsub.f32 %v2920, %v2921
    %v2923 = vand.u32 %v2922, 4294901760
    %2924 = vmatmul.mubr.f32.gmra.mxu0 %v2923
    %v2925 = vpop.f32.mrf.mxu0
    %v2926 = vadd.f32 0.0, %v2925
    %v2927 = vpop.f32.mrf.mxu0
    %v2928 = vand.u32 %v2505, 4294901760
    %v2929 = vsub.f32 %v2505, %v2928
    %v2930 = vand.u32 %v2929, 4294901760
    %v2931 = vsub.f32 %v2929, %v2930
    %v2932 = vand.u32 %v2931, 4294901760
    %2933 = vmatprep.mubr.f32.mxu0 %v2932
    %v2934 = vand.u32 %v2433, 4294901760
    %v2935 = vsub.f32 %v2433, %v2934
    %v2936 = vand.u32 %v2935, 4294901760
    %v2937 = vsub.f32 %v2935, %v2936
    %v2938 = vand.u32 %v2937, 4294901760
    %2939 = vmatmul.mubr.f32.gmra.mxu0 %v2938
    %v2940 = vpop.f32.mrf.mxu0
    %v2941 = vadd.f32 0.0, %v2940
    %v2942 = vpop.f32.mrf.mxu0
    %v2943 = vand.u32 %v2508, 4294901760
    %v2944 = vsub.f32 %v2508, %v2943
    %v2945 = vand.u32 %v2944, 4294901760
    %v2946 = vsub.f32 %v2944, %v2945
    %v2947 = vand.u32 %v2946, 4294901760
    %2948 = vmatprep.mubr.f32.mxu0 %v2947
    %v2949 = vand.u32 %v2435, 4294901760
    %v2950 = vsub.f32 %v2435, %v2949
    %v2951 = vand.u32 %v2950, 4294901760
    %v2952 = vsub.f32 %v2950, %v2951
    %v2953 = vand.u32 %v2952, 4294901760
    %2954 = vmatmul.mubr.f32.gmra.mxu0 %v2953
    %v2955 = vpop.f32.mrf.mxu0
    %v2956 = vadd.f32 0.0, %v2955
    %v2957 = vpop.f32.mrf.mxu0
    %2958 = vdwg.mxu0
    %2959 = vmatprep.subr.mxu0 0.0
    %v2960 = vand.u32 %v1858, 4294901760
    %v2961 = vsub.f32 %v1858, %v2960
    %v2962 = vand.u32 %v2961, 4294901760
    %v2963 = vsub.f32 %v2961, %v2962
    %v2964 = vand.u32 %v2963, 4294901760
    %2965 = vmatpush1.msra.mxu0 %v2964
    %2966 = vmatprep.subr.mxu0 0.0
    %v2967 = vand.u32 %v1852, 4294901760
    %v2968 = vsub.f32 %v1852, %v2967
    %v2969 = vand.u32 %v2968, 4294901760
    %v2970 = vsub.f32 %v2968, %v2969
    %v2971 = vand.u32 %v2970, 4294901760
    %2972 = vmatpush1.msra.mxu0 %v2971
    %2973 = vmatprep.subr.mxu0 0.0
    %v2974 = vand.u32 %v2380, 4294901760
    %v2975 = vsub.f32 %v2380, %v2974
    %v2976 = vand.u32 %v2975, 4294901760
    %v2977 = vsub.f32 %v2975, %v2976
    %v2978 = vand.u32 %v2977, 4294901760
    %2979 = vmatpush1.msra.mxu0 %v2978
    %2980 = vmatprep.subr.mxu0 0.0
    %v2981 = vand.u32 %v2379, 4294901760
    %v2982 = vsub.f32 %v2379, %v2981
    %v2983 = vand.u32 %v2982, 4294901760
    %v2984 = vsub.f32 %v2982, %v2983
    %v2985 = vand.u32 %v2984, 4294901760
    %2986 = vmatpush1.msra.mxu0 %v2985
    %2987 = vmatprep.subr.mxu0 0.0
    %v2988 = vand.u32 %v2378, 4294901760
    %v2989 = vsub.f32 %v2378, %v2988
    %v2990 = vand.u32 %v2989, 4294901760
    %v2991 = vsub.f32 %v2989, %v2990
    %v2992 = vand.u32 %v2991, 4294901760
    %2993 = vmatpush1.msra.mxu0 %v2992
    %2994 = vmatprep.subr.mxu0 0.0
    %v2995 = vand.u32 %v2377, 4294901760
    %v2996 = vsub.f32 %v2377, %v2995
    %v2997 = vand.u32 %v2996, 4294901760
    %v2998 = vsub.f32 %v2996, %v2997
    %v2999 = vand.u32 %v2998, 4294901760
    %3000 = vmatpush1.msra.mxu0 %v2999
    %3001 = vmatprep.subr.mxu0 0.0
    %v3002 = vand.u32 %v2374, 4294901760
    %v3003 = vsub.f32 %v2374, %v3002
    %v3004 = vand.u32 %v3003, 4294901760
    %v3005 = vsub.f32 %v3003, %v3004
    %v3006 = vand.u32 %v3005, 4294901760
    %3007 = vmatpush1.msra.mxu0 %v3006
    %3008 = vmatprep.subr.mxu0 0.0
    %v3009 = vand.u32 %v2373, 4294901760
    %v3010 = vsub.f32 %v2373, %v3009
    %v3011 = vand.u32 %v3010, 4294901760
    %v3012 = vsub.f32 %v3010, %v3011
    %v3013 = vand.u32 %v3012, 4294901760
    %3014 = vmatpush1.msra.mxu0 %v3013
    %3015 = vmatprep.subr.mxu0 0.0
    %v3016 = vand.u32 %v1846, 4294901760
    %v3017 = vsub.f32 %v1846, %v3016
    %v3018 = vand.u32 %v3017, 4294901760
    %v3019 = vsub.f32 %v3017, %v3018
    %v3020 = vand.u32 %v3019, 4294901760
    %3021 = vmatpush1.msra.mxu0 %v3020
    %3022 = vmatprep.subr.mxu0 0.0
    %v3023 = vand.u32 %v1840, 4294901760
    %v3024 = vsub.f32 %v1840, %v3023
    %v3025 = vand.u32 %v3024, 4294901760
    %v3026 = vsub.f32 %v3024, %v3025
    %v3027 = vand.u32 %v3026, 4294901760
    %3028 = vmatpush1.msra.mxu0 %v3027
    %3029 = vmatprep.subr.mxu0 0.0
    %v3030 = vand.u32 %v2372, 4294901760
    %v3031 = vsub.f32 %v2372, %v3030
    %v3032 = vand.u32 %v3031, 4294901760
    %v3033 = vsub.f32 %v3031, %v3032
    %v3034 = vand.u32 %v3033, 4294901760
    %3035 = vmatpush1.msra.mxu0 %v3034
    %3036 = vmatprep.subr.mxu0 0.0
    %v3037 = vand.u32 %v2371, 4294901760
    %v3038 = vsub.f32 %v2371, %v3037
    %v3039 = vand.u32 %v3038, 4294901760
    %v3040 = vsub.f32 %v3038, %v3039
    %v3041 = vand.u32 %v3040, 4294901760
    %3042 = vmatpush1.msra.mxu0 %v3041
    %3043 = vmatprep.subr.mxu0 0.0
    %v3044 = vand.u32 %v2370, 4294901760
    %v3045 = vsub.f32 %v2370, %v3044
    %v3046 = vand.u32 %v3045, 4294901760
    %v3047 = vsub.f32 %v3045, %v3046
    %v3048 = vand.u32 %v3047, 4294901760
    %3049 = vmatpush1.msra.mxu0 %v3048
    %3050 = vmatprep.subr.mxu0 0.0
    %v3051 = vand.u32 %v2369, 4294901760
    %v3052 = vsub.f32 %v2369, %v3051
    %v3053 = vand.u32 %v3052, 4294901760
    %v3054 = vsub.f32 %v3052, %v3053
    %v3055 = vand.u32 %v3054, 4294901760
    %3056 = vmatpush1.msra.mxu0 %v3055
    %3057 = vmatprep.subr.mxu0 0.0
    %v3058 = vand.u32 %v2368, 4294901760
    %v3059 = vsub.f32 %v2368, %v3058
    %v3060 = vand.u32 %v3059, 4294901760
    %v3061 = vsub.f32 %v3059, %v3060
    %v3062 = vand.u32 %v3061, 4294901760
    %3063 = vmatpush1.msra.mxu0 %v3062
    %3064 = vmatprep.subr.mxu0 0.0
    %v3065 = vand.u32 %v2367, 4294901760
    %v3066 = vsub.f32 %v2367, %v3065
    %v3067 = vand.u32 %v3066, 4294901760
    %v3068 = vsub.f32 %v3066, %v3067
    %v3069 = vand.u32 %v3068, 4294901760
    %3070 = vmatpush1.msra.mxu0 %v3069
    %3071 = vmatprep.subr.mxu0 0.0
    %3072 = vmatpush2.msra.mxu0 0.0
    %3073 = vmatprep.subr.mxu0 0.0
    %3074 = vmatpush2.msra.mxu0 0.0
    %3075 = vmatprep.subr.mxu0 0.0
    %3076 = vmatpush2.msra.mxu0 0.0
    %3077 = vmatprep.subr.mxu0 0.0
    %3078 = vmatpush2.msra.mxu0 0.0
    %3079 = vmatprep.subr.mxu0 0.0
    %3080 = vmatpush2.msra.mxu0 0.0
    %3081 = vmatprep.subr.mxu0 0.0
    %3082 = vmatpush2.msra.mxu0 0.0
    %3083 = vmatprep.subr.mxu0 0.0
    %3084 = vmatpush2.msra.mxu0 0.0
    %3085 = vmatprep.subr.mxu0 0.0
    %3086 = vmatpush2.msra.mxu0 0.0
    %3087 = vmatprep.subr.mxu0 0.0
    %v3088 = vand.u32 %v1870, 4294901760
    %v3089 = vsub.f32 %v1870, %v3088
    %v3090 = vand.u32 %v3089, 4294901760
    %v3091 = vsub.f32 %v3089, %v3090
    %v3092 = vand.u32 %v3091, 4294901760
    %3093 = vmatpush2.msra.mxu0 %v3092
    %3094 = vmatprep.subr.mxu0 0.0
    %v3095 = vand.u32 %v1864, 4294901760
    %v3096 = vsub.f32 %v1864, %v3095
    %v3097 = vand.u32 %v3096, 4294901760
    %v3098 = vsub.f32 %v3096, %v3097
    %v3099 = vand.u32 %v3098, 4294901760
    %3100 = vmatpush2.msra.mxu0 %v3099
    %3101 = vmatprep.subr.mxu0 0.0
    %v3102 = vand.u32 %v2388, 4294901760
    %v3103 = vsub.f32 %v2388, %v3102
    %v3104 = vand.u32 %v3103, 4294901760
    %v3105 = vsub.f32 %v3103, %v3104
    %v3106 = vand.u32 %v3105, 4294901760
    %3107 = vmatpush2.msra.mxu0 %v3106
    %3108 = vmatprep.subr.mxu0 0.0
    %v3109 = vand.u32 %v2387, 4294901760
    %v3110 = vsub.f32 %v2387, %v3109
    %v3111 = vand.u32 %v3110, 4294901760
    %v3112 = vsub.f32 %v3110, %v3111
    %v3113 = vand.u32 %v3112, 4294901760
    %3114 = vmatpush2.msra.mxu0 %v3113
    %3115 = vmatprep.subr.mxu0 0.0
    %v3116 = vand.u32 %v2384, 4294901760
    %v3117 = vsub.f32 %v2384, %v3116
    %v3118 = vand.u32 %v3117, 4294901760
    %v3119 = vsub.f32 %v3117, %v3118
    %v3120 = vand.u32 %v3119, 4294901760
    %3121 = vmatpush2.msra.mxu0 %v3120
    %3122 = vmatprep.subr.mxu0 0.0
    %v3123 = vand.u32 %v2383, 4294901760
    %v3124 = vsub.f32 %v2383, %v3123
    %v3125 = vand.u32 %v3124, 4294901760
    %v3126 = vsub.f32 %v3124, %v3125
    %v3127 = vand.u32 %v3126, 4294901760
    %3128 = vmatpush2.msra.mxu0 %v3127
    %3129 = vmatprep.subr.mxu0 0.0
    %v3130 = vand.u32 %v2382, 4294901760
    %v3131 = vsub.f32 %v2382, %v3130
    %v3132 = vand.u32 %v3131, 4294901760
    %v3133 = vsub.f32 %v3131, %v3132
    %v3134 = vand.u32 %v3133, 4294901760
    %3135 = vmatpush2.msra.mxu0 %v3134
    %3136 = vmatprep.subr.mxu0 0.0
    %v3137 = vand.u32 %v2381, 4294901760
    %v3138 = vsub.f32 %v2381, %v3137
    %v3139 = vand.u32 %v3138, 4294901760
    %v3140 = vsub.f32 %v3138, %v3139
    %v3141 = vand.u32 %v3140, 4294901760
    %3142 = vmatpush2.msra.mxu0 %v3141
    %v3143 = vand.u32 %v2439, 4294901760
    %3144 = vmatprep.mubr.f32.mxu0 %v3143
    %v3145 = vand.u32 %v2389, 4294901760
    %3146 = vmatmul.mubr.f32.gmra.mxu0 %v3145
    %v3147 = vpop.f32.mrf.mxu0
    %v3148 = vadd.f32 %v2611, %v3147
    %v3149 = vpop.f32.mrf.mxu0
    %v3150 = vand.u32 %v2442, 4294901760
    %3151 = vmatprep.mubr.f32.mxu0 %v3150
    %v3152 = vand.u32 %v2391, 4294901760
    %3153 = vmatmul.mubr.f32.gmra.mxu0 %v3152
    %v3154 = vpop.f32.mrf.mxu0
    %v3155 = vadd.f32 %v2626, %v3154
    %v3156 = vpop.f32.mrf.mxu0
    %v3157 = vand.u32 %v2445, 4294901760
    %3158 = vmatprep.mubr.f32.mxu0 %v3157
    %v3159 = vand.u32 %v2393, 4294901760
    %3160 = vmatmul.mubr.f32.gmra.mxu0 %v3159
    %v3161 = vpop.f32.mrf.mxu0
    %v3162 = vadd.f32 %v2641, %v3161
    %v3163 = vpop.f32.mrf.mxu0
    %v3164 = vand.u32 %v2448, 4294901760
    %3165 = vmatprep.mubr.f32.mxu0 %v3164
    %v3166 = vand.u32 %v2395, 4294901760
    %3167 = vmatmul.mubr.f32.gmra.mxu0 %v3166
    %v3168 = vpop.f32.mrf.mxu0
    %v3169 = vadd.f32 %v2656, %v3168
    %v3170 = vpop.f32.mrf.mxu0
    %v3171 = vand.u32 %v2451, 4294901760
    %3172 = vmatprep.mubr.f32.mxu0 %v3171
    %v3173 = vand.u32 %v2397, 4294901760
    %3174 = vmatmul.mubr.f32.gmra.mxu0 %v3173
    %v3175 = vpop.f32.mrf.mxu0
    %v3176 = vadd.f32 %v2671, %v3175
    %v3177 = vpop.f32.mrf.mxu0
    %v3178 = vand.u32 %v2454, 4294901760
    %3179 = vmatprep.mubr.f32.mxu0 %v3178
    %v3180 = vand.u32 %v2399, 4294901760
    %3181 = vmatmul.mubr.f32.gmra.mxu0 %v3180
    %v3182 = vpop.f32.mrf.mxu0
    %v3183 = vadd.f32 %v2686, %v3182
    %v3184 = vpop.f32.mrf.mxu0
    %v3185 = vand.u32 %v2457, 4294901760
    %3186 = vmatprep.mubr.f32.mxu0 %v3185
    %v3187 = vand.u32 %v2401, 4294901760
    %3188 = vmatmul.mubr.f32.gmra.mxu0 %v3187
    %v3189 = vpop.f32.mrf.mxu0
    %v3190 = vadd.f32 %v2701, %v3189
    %v3191 = vpop.f32.mrf.mxu0
    %v3192 = vand.u32 %v2460, 4294901760
    %3193 = vmatprep.mubr.f32.mxu0 %v3192
    %v3194 = vand.u32 %v2403, 4294901760
    %3195 = vmatmul.mubr.f32.gmra.mxu0 %v3194
    %v3196 = vpop.f32.mrf.mxu0
    %v3197 = vadd.f32 %v2716, %v3196
    %v3198 = vpop.f32.mrf.mxu0
    %v3199 = vand.u32 %v2463, 4294901760
    %3200 = vmatprep.mubr.f32.mxu0 %v3199
    %v3201 = vand.u32 %v2405, 4294901760
    %3202 = vmatmul.mubr.f32.gmra.mxu0 %v3201
    %v3203 = vpop.f32.mrf.mxu0
    %v3204 = vadd.f32 %v2731, %v3203
    %v3205 = vpop.f32.mrf.mxu0
    %v3206 = vand.u32 %v2466, 4294901760
    %3207 = vmatprep.mubr.f32.mxu0 %v3206
    %v3208 = vand.u32 %v2407, 4294901760
    %3209 = vmatmul.mubr.f32.gmra.mxu0 %v3208
    %v3210 = vpop.f32.mrf.mxu0
    %v3211 = vadd.f32 %v2746, %v3210
    %v3212 = vpop.f32.mrf.mxu0
    %v3213 = vand.u32 %v2469, 4294901760
    %3214 = vmatprep.mubr.f32.mxu0 %v3213
    %v3215 = vand.u32 %v2409, 4294901760
    %3216 = vmatmul.mubr.f32.gmra.mxu0 %v3215
    %v3217 = vpop.f32.mrf.mxu0
    %v3218 = vadd.f32 %v2761, %v3217
    %v3219 = vpop.f32.mrf.mxu0
    %v3220 = vand.u32 %v2472, 4294901760
    %3221 = vmatprep.mubr.f32.mxu0 %v3220
    %v3222 = vand.u32 %v2411, 4294901760
    %3223 = vmatmul.mubr.f32.gmra.mxu0 %v3222
    %v3224 = vpop.f32.mrf.mxu0
    %v3225 = vadd.f32 %v2776, %v3224
    %v3226 = vpop.f32.mrf.mxu0
    %v3227 = vand.u32 %v2475, 4294901760
    %3228 = vmatprep.mubr.f32.mxu0 %v3227
    %v3229 = vand.u32 %v2413, 4294901760
    %3230 = vmatmul.mubr.f32.gmra.mxu0 %v3229
    %v3231 = vpop.f32.mrf.mxu0
    %v3232 = vadd.f32 %v2791, %v3231
    %v3233 = vpop.f32.mrf.mxu0
    %v3234 = vand.u32 %v2478, 4294901760
    %3235 = vmatprep.mubr.f32.mxu0 %v3234
    %v3236 = vand.u32 %v2415, 4294901760
    %3237 = vmatmul.mubr.f32.gmra.mxu0 %v3236
    %v3238 = vpop.f32.mrf.mxu0
    %v3239 = vadd.f32 %v2806, %v3238
    %v3240 = vpop.f32.mrf.mxu0
    %v3241 = vand.u32 %v2481, 4294901760
    %3242 = vmatprep.mubr.f32.mxu0 %v3241
    %v3243 = vand.u32 %v2417, 4294901760
    %3244 = vmatmul.mubr.f32.gmra.mxu0 %v3243
    %v3245 = vpop.f32.mrf.mxu0
    %v3246 = vadd.f32 %v2821, %v3245
    %v3247 = vpop.f32.mrf.mxu0
    %v3248 = vand.u32 %v2484, 4294901760
    %3249 = vmatprep.mubr.f32.mxu0 %v3248
    %v3250 = vand.u32 %v2419, 4294901760
    %3251 = vmatmul.mubr.f32.gmra.mxu0 %v3250
    %v3252 = vpop.f32.mrf.mxu0
    %v3253 = vadd.f32 %v2836, %v3252
    %v3254 = vpop.f32.mrf.mxu0
    %v3255 = vand.u32 %v2487, 4294901760
    %3256 = vmatprep.mubr.f32.mxu0 %v3255
    %v3257 = vand.u32 %v2421, 4294901760
    %3258 = vmatmul.mubr.f32.gmra.mxu0 %v3257
    %v3259 = vpop.f32.mrf.mxu0
    %v3260 = vadd.f32 %v2851, %v3259
    %v3261 = vpop.f32.mrf.mxu0
    %v3262 = vand.u32 %v2490, 4294901760
    %3263 = vmatprep.mubr.f32.mxu0 %v3262
    %v3264 = vand.u32 %v2423, 4294901760
    %3265 = vmatmul.mubr.f32.gmra.mxu0 %v3264
    %v3266 = vpop.f32.mrf.mxu0
    %v3267 = vadd.f32 %v2866, %v3266
    %v3268 = vpop.f32.mrf.mxu0
    %v3269 = vand.u32 %v2493, 4294901760
    %3270 = vmatprep.mubr.f32.mxu0 %v3269
    %v3271 = vand.u32 %v2425, 4294901760
    %3272 = vmatmul.mubr.f32.gmra.mxu0 %v3271
    %v3273 = vpop.f32.mrf.mxu0
    %v3274 = vadd.f32 %v2881, %v3273
    %v3275 = vpop.f32.mrf.mxu0
    %v3276 = vand.u32 %v2496, 4294901760
    %3277 = vmatprep.mubr.f32.mxu0 %v3276
    %v3278 = vand.u32 %v2427, 4294901760
    %3279 = vmatmul.mubr.f32.gmra.mxu0 %v3278
    %v3280 = vpop.f32.mrf.mxu0
    %v3281 = vadd.f32 %v2896, %v3280
    %v3282 = vpop.f32.mrf.mxu0
    %v3283 = vand.u32 %v2499, 4294901760
    %3284 = vmatprep.mubr.f32.mxu0 %v3283
    %v3285 = vand.u32 %v2429, 4294901760
    %3286 = vmatmul.mubr.f32.gmra.mxu0 %v3285
    %v3287 = vpop.f32.mrf.mxu0
    %v3288 = vadd.f32 %v2911, %v3287
    %v3289 = vpop.f32.mrf.mxu0
    %v3290 = vand.u32 %v2502, 4294901760
    %3291 = vmatprep.mubr.f32.mxu0 %v3290
    %v3292 = vand.u32 %v2431, 4294901760
    %3293 = vmatmul.mubr.f32.gmra.mxu0 %v3292
    %v3294 = vpop.f32.mrf.mxu0
    %v3295 = vadd.f32 %v2926, %v3294
    %v3296 = vpop.f32.mrf.mxu0
    %v3297 = vand.u32 %v2505, 4294901760
    %3298 = vmatprep.mubr.f32.mxu0 %v3297
    %v3299 = vand.u32 %v2433, 4294901760
    %3300 = vmatmul.mubr.f32.gmra.mxu0 %v3299
    %v3301 = vpop.f32.mrf.mxu0
    %v3302 = vadd.f32 %v2941, %v3301
    %v3303 = vpop.f32.mrf.mxu0
    %v3304 = vand.u32 %v2508, 4294901760
    %3305 = vmatprep.mubr.f32.mxu0 %v3304
    %v3306 = vand.u32 %v2435, 4294901760
    %3307 = vmatmul.mubr.f32.gmra.mxu0 %v3306
    %v3308 = vpop.f32.mrf.mxu0
    %v3309 = vadd.f32 %v2956, %v3308
    %v3310 = vpop.f32.mrf.mxu0
    %3311 = vdwg.mxu0
    %3312 = vmatprep.subr.mxu0 0.0
    %v3313 = vand.u32 %v1858, 4294901760
    %v3314 = vsub.f32 %v1858, %v3313
    %3315 = vmatpush1.msra.mxu0 %v3314
    %3316 = vmatprep.subr.mxu0 0.0
    %v3317 = vand.u32 %v1852, 4294901760
    %v3318 = vsub.f32 %v1852, %v3317
    %3319 = vmatpush1.msra.mxu0 %v3318
    %3320 = vmatprep.subr.mxu0 0.0
    %v3321 = vand.u32 %v2380, 4294901760
    %v3322 = vsub.f32 %v2380, %v3321
    %3323 = vmatpush1.msra.mxu0 %v3322
    %3324 = vmatprep.subr.mxu0 0.0
    %v3325 = vand.u32 %v2379, 4294901760
    %v3326 = vsub.f32 %v2379, %v3325
    %3327 = vmatpush1.msra.mxu0 %v3326
    %3328 = vmatprep.subr.mxu0 0.0
    %v3329 = vand.u32 %v2378, 4294901760
    %v3330 = vsub.f32 %v2378, %v3329
    %3331 = vmatpush1.msra.mxu0 %v3330
    %3332 = vmatprep.subr.mxu0 0.0
    %v3333 = vand.u32 %v2377, 4294901760
    %v3334 = vsub.f32 %v2377, %v3333
    %3335 = vmatpush1.msra.mxu0 %v3334
    %3336 = vmatprep.subr.mxu0 0.0
    %v3337 = vand.u32 %v2374, 4294901760
    %v3338 = vsub.f32 %v2374, %v3337
    %3339 = vmatpush1.msra.mxu0 %v3338
    %3340 = vmatprep.subr.mxu0 0.0
    %v3341 = vand.u32 %v2373, 4294901760
    %v3342 = vsub.f32 %v2373, %v3341
    %3343 = vmatpush1.msra.mxu0 %v3342
    %3344 = vmatprep.subr.mxu0 0.0
    %v3345 = vand.u32 %v1846, 4294901760
    %v3346 = vsub.f32 %v1846, %v3345
    %3347 = vmatpush1.msra.mxu0 %v3346
    %3348 = vmatprep.subr.mxu0 0.0
    %v3349 = vand.u32 %v1840, 4294901760
    %v3350 = vsub.f32 %v1840, %v3349
    %3351 = vmatpush1.msra.mxu0 %v3350
    %3352 = vmatprep.subr.mxu0 0.0
    %v3353 = vand.u32 %v2372, 4294901760
    %v3354 = vsub.f32 %v2372, %v3353
    %3355 = vmatpush1.msra.mxu0 %v3354
    %3356 = vmatprep.subr.mxu0 0.0
    %v3357 = vand.u32 %v2371, 4294901760
    %v3358 = vsub.f32 %v2371, %v3357
    %3359 = vmatpush1.msra.mxu0 %v3358
    %3360 = vmatprep.subr.mxu0 0.0
    %v3361 = vand.u32 %v2370, 4294901760
    %v3362 = vsub.f32 %v2370, %v3361
    %3363 = vmatpush1.msra.mxu0 %v3362
    %3364 = vmatprep.subr.mxu0 0.0
    %v3365 = vand.u32 %v2369, 4294901760
    %v3366 = vsub.f32 %v2369, %v3365
    %3367 = vmatpush1.msra.mxu0 %v3366
    %3368 = vmatprep.subr.mxu0 0.0
    %v3369 = vand.u32 %v2368, 4294901760
    %v3370 = vsub.f32 %v2368, %v3369
    %3371 = vmatpush1.msra.mxu0 %v3370
    %3372 = vmatprep.subr.mxu0 0.0
    %v3373 = vand.u32 %v2367, 4294901760
    %v3374 = vsub.f32 %v2367, %v3373
    %3375 = vmatpush1.msra.mxu0 %v3374
    %3376 = vmatprep.subr.mxu0 0.0
    %3377 = vmatpush2.msra.mxu0 0.0
    %3378 = vmatprep.subr.mxu0 0.0
    %3379 = vmatpush2.msra.mxu0 0.0
    %3380 = vmatprep.subr.mxu0 0.0
    %3381 = vmatpush2.msra.mxu0 0.0
    %3382 = vmatprep.subr.mxu0 0.0
    %3383 = vmatpush2.msra.mxu0 0.0
    %3384 = vmatprep.subr.mxu0 0.0
    %3385 = vmatpush2.msra.mxu0 0.0
    %3386 = vmatprep.subr.mxu0 0.0
    %3387 = vmatpush2.msra.mxu0 0.0
    %3388 = vmatprep.subr.mxu0 0.0
    %3389 = vmatpush2.msra.mxu0 0.0
    %3390 = vmatprep.subr.mxu0 0.0
    %3391 = vmatpush2.msra.mxu0 0.0
    %3392 = vmatprep.subr.mxu0 0.0
    %v3393 = vand.u32 %v1870, 4294901760
    %v3394 = vsub.f32 %v1870, %v3393
    %3395 = vmatpush2.msra.mxu0 %v3394
    %3396 = vmatprep.subr.mxu0 0.0
    %v3397 = vand.u32 %v1864, 4294901760
    %v3398 = vsub.f32 %v1864, %v3397
    %3399 = vmatpush2.msra.mxu0 %v3398
    %3400 = vmatprep.subr.mxu0 0.0
    %v3401 = vand.u32 %v2388, 4294901760
    %v3402 = vsub.f32 %v2388, %v3401
    %3403 = vmatpush2.msra.mxu0 %v3402
    %3404 = vmatprep.subr.mxu0 0.0
    %v3405 = vand.u32 %v2387, 4294901760
    %v3406 = vsub.f32 %v2387, %v3405
    %3407 = vmatpush2.msra.mxu0 %v3406
    %3408 = vmatprep.subr.mxu0 0.0
    %v3409 = vand.u32 %v2384, 4294901760
    %v3410 = vsub.f32 %v2384, %v3409
    %3411 = vmatpush2.msra.mxu0 %v3410
    %3412 = vmatprep.subr.mxu0 0.0
    %v3413 = vand.u32 %v2383, 4294901760
    %v3414 = vsub.f32 %v2383, %v3413
    %3415 = vmatpush2.msra.mxu0 %v3414
    %3416 = vmatprep.subr.mxu0 0.0
    %v3417 = vand.u32 %v2382, 4294901760
    %v3418 = vsub.f32 %v2382, %v3417
    %3419 = vmatpush2.msra.mxu0 %v3418
    %3420 = vmatprep.subr.mxu0 0.0
    %v3421 = vand.u32 %v2381, 4294901760
    %v3422 = vsub.f32 %v2381, %v3421
    %3423 = vmatpush2.msra.mxu0 %v3422
    %v3424 = vand.u32 %v2439, 4294901760
    %v3425 = vsub.f32 %v2439, %v3424
    %3426 = vmatprep.mubr.f32.mxu0 %v3425
    %v3427 = vand.u32 %v2389, 4294901760
    %v3428 = vsub.f32 %v2389, %v3427
    %3429 = vmatmul.mubr.f32.gmra.mxu0 %v3428
    %v3430 = vpop.f32.mrf.mxu0
    %v3431 = vadd.f32 %v3148, %v3430
    %v3432 = vpop.f32.mrf.mxu0
    %v3433 = vand.u32 %v2442, 4294901760
    %v3434 = vsub.f32 %v2442, %v3433
    %3435 = vmatprep.mubr.f32.mxu0 %v3434
    %v3436 = vand.u32 %v2391, 4294901760
    %v3437 = vsub.f32 %v2391, %v3436
    %3438 = vmatmul.mubr.f32.gmra.mxu0 %v3437
    %v3439 = vpop.f32.mrf.mxu0
    %v3440 = vadd.f32 %v3155, %v3439
    %v3441 = vpop.f32.mrf.mxu0
    %v3442 = vand.u32 %v2445, 4294901760
    %v3443 = vsub.f32 %v2445, %v3442
    %3444 = vmatprep.mubr.f32.mxu0 %v3443
    %v3445 = vand.u32 %v2393, 4294901760
    %v3446 = vsub.f32 %v2393, %v3445
    %3447 = vmatmul.mubr.f32.gmra.mxu0 %v3446
    %v3448 = vpop.f32.mrf.mxu0
    %v3449 = vadd.f32 %v3162, %v3448
    %v3450 = vpop.f32.mrf.mxu0
    %v3451 = vand.u32 %v2448, 4294901760
    %v3452 = vsub.f32 %v2448, %v3451
    %3453 = vmatprep.mubr.f32.mxu0 %v3452
    %v3454 = vand.u32 %v2395, 4294901760
    %v3455 = vsub.f32 %v2395, %v3454
    %3456 = vmatmul.mubr.f32.gmra.mxu0 %v3455
    %v3457 = vpop.f32.mrf.mxu0
    %v3458 = vadd.f32 %v3169, %v3457
    %v3459 = vpop.f32.mrf.mxu0
    %v3460 = vand.u32 %v2451, 4294901760
    %v3461 = vsub.f32 %v2451, %v3460
    %3462 = vmatprep.mubr.f32.mxu0 %v3461
    %v3463 = vand.u32 %v2397, 4294901760
    %v3464 = vsub.f32 %v2397, %v3463
    %3465 = vmatmul.mubr.f32.gmra.mxu0 %v3464
    %v3466 = vpop.f32.mrf.mxu0
    %v3467 = vadd.f32 %v3176, %v3466
    %v3468 = vpop.f32.mrf.mxu0
    %v3469 = vand.u32 %v2454, 4294901760
    %v3470 = vsub.f32 %v2454, %v3469
    %3471 = vmatprep.mubr.f32.mxu0 %v3470
    %v3472 = vand.u32 %v2399, 4294901760
    %v3473 = vsub.f32 %v2399, %v3472
    %3474 = vmatmul.mubr.f32.gmra.mxu0 %v3473
    %v3475 = vpop.f32.mrf.mxu0
    %v3476 = vadd.f32 %v3183, %v3475
    %v3477 = vpop.f32.mrf.mxu0
    %v3478 = vand.u32 %v2457, 4294901760
    %v3479 = vsub.f32 %v2457, %v3478
    %3480 = vmatprep.mubr.f32.mxu0 %v3479
    %v3481 = vand.u32 %v2401, 4294901760
    %v3482 = vsub.f32 %v2401, %v3481
    %3483 = vmatmul.mubr.f32.gmra.mxu0 %v3482
    %v3484 = vpop.f32.mrf.mxu0
    %v3485 = vadd.f32 %v3190, %v3484
    %v3486 = vpop.f32.mrf.mxu0
    %v3487 = vand.u32 %v2460, 4294901760
    %v3488 = vsub.f32 %v2460, %v3487
    %3489 = vmatprep.mubr.f32.mxu0 %v3488
    %v3490 = vand.u32 %v2403, 4294901760
    %v3491 = vsub.f32 %v2403, %v3490
    %3492 = vmatmul.mubr.f32.gmra.mxu0 %v3491
    %v3493 = vpop.f32.mrf.mxu0
    %v3494 = vadd.f32 %v3197, %v3493
    %v3495 = vpop.f32.mrf.mxu0
    %v3496 = vand.u32 %v2463, 4294901760
    %v3497 = vsub.f32 %v2463, %v3496
    %3498 = vmatprep.mubr.f32.mxu0 %v3497
    %v3499 = vand.u32 %v2405, 4294901760
    %v3500 = vsub.f32 %v2405, %v3499
    %3501 = vmatmul.mubr.f32.gmra.mxu0 %v3500
    %v3502 = vpop.f32.mrf.mxu0
    %v3503 = vadd.f32 %v3204, %v3502
    %v3504 = vpop.f32.mrf.mxu0
    %v3505 = vand.u32 %v2466, 4294901760
    %v3506 = vsub.f32 %v2466, %v3505
    %3507 = vmatprep.mubr.f32.mxu0 %v3506
    %v3508 = vand.u32 %v2407, 4294901760
    %v3509 = vsub.f32 %v2407, %v3508
    %3510 = vmatmul.mubr.f32.gmra.mxu0 %v3509
    %v3511 = vpop.f32.mrf.mxu0
    %v3512 = vadd.f32 %v3211, %v3511
    %v3513 = vpop.f32.mrf.mxu0
    %v3514 = vand.u32 %v2469, 4294901760
    %v3515 = vsub.f32 %v2469, %v3514
    %3516 = vmatprep.mubr.f32.mxu0 %v3515
    %v3517 = vand.u32 %v2409, 4294901760
    %v3518 = vsub.f32 %v2409, %v3517
    %3519 = vmatmul.mubr.f32.gmra.mxu0 %v3518
    %v3520 = vpop.f32.mrf.mxu0
    %v3521 = vadd.f32 %v3218, %v3520
    %v3522 = vpop.f32.mrf.mxu0
    %v3523 = vand.u32 %v2472, 4294901760
    %v3524 = vsub.f32 %v2472, %v3523
    %3525 = vmatprep.mubr.f32.mxu0 %v3524
    %v3526 = vand.u32 %v2411, 4294901760
    %v3527 = vsub.f32 %v2411, %v3526
    %3528 = vmatmul.mubr.f32.gmra.mxu0 %v3527
    %v3529 = vpop.f32.mrf.mxu0
    %v3530 = vadd.f32 %v3225, %v3529
    %v3531 = vpop.f32.mrf.mxu0
    %v3532 = vand.u32 %v2475, 4294901760
    %v3533 = vsub.f32 %v2475, %v3532
    %3534 = vmatprep.mubr.f32.mxu0 %v3533
    %v3535 = vand.u32 %v2413, 4294901760
    %v3536 = vsub.f32 %v2413, %v3535
    %3537 = vmatmul.mubr.f32.gmra.mxu0 %v3536
    %v3538 = vpop.f32.mrf.mxu0
    %v3539 = vadd.f32 %v3232, %v3538
    %v3540 = vpop.f32.mrf.mxu0
    %v3541 = vand.u32 %v2478, 4294901760
    %v3542 = vsub.f32 %v2478, %v3541
    %3543 = vmatprep.mubr.f32.mxu0 %v3542
    %v3544 = vand.u32 %v2415, 4294901760
    %v3545 = vsub.f32 %v2415, %v3544
    %3546 = vmatmul.mubr.f32.gmra.mxu0 %v3545
    %v3547 = vpop.f32.mrf.mxu0
    %v3548 = vadd.f32 %v3239, %v3547
    %v3549 = vpop.f32.mrf.mxu0
    %v3550 = vand.u32 %v2481, 4294901760
    %v3551 = vsub.f32 %v2481, %v3550
    %3552 = vmatprep.mubr.f32.mxu0 %v3551
    %v3553 = vand.u32 %v2417, 4294901760
    %v3554 = vsub.f32 %v2417, %v3553
    %3555 = vmatmul.mubr.f32.gmra.mxu0 %v3554
    %v3556 = vpop.f32.mrf.mxu0
    %v3557 = vadd.f32 %v3246, %v3556
    %v3558 = vpop.f32.mrf.mxu0
    %v3559 = vand.u32 %v2484, 4294901760
    %v3560 = vsub.f32 %v2484, %v3559
    %3561 = vmatprep.mubr.f32.mxu0 %v3560
    %v3562 = vand.u32 %v2419, 4294901760
    %v3563 = vsub.f32 %v2419, %v3562
    %3564 = vmatmul.mubr.f32.gmra.mxu0 %v3563
    %v3565 = vpop.f32.mrf.mxu0
    %v3566 = vadd.f32 %v3253, %v3565
    %v3567 = vpop.f32.mrf.mxu0
    %v3568 = vand.u32 %v2487, 4294901760
    %v3569 = vsub.f32 %v2487, %v3568
    %3570 = vmatprep.mubr.f32.mxu0 %v3569
    %v3571 = vand.u32 %v2421, 4294901760
    %v3572 = vsub.f32 %v2421, %v3571
    %3573 = vmatmul.mubr.f32.gmra.mxu0 %v3572
    %v3574 = vpop.f32.mrf.mxu0
    %v3575 = vadd.f32 %v3260, %v3574
    %v3576 = vpop.f32.mrf.mxu0
    %v3577 = vand.u32 %v2490, 4294901760
    %v3578 = vsub.f32 %v2490, %v3577
    %3579 = vmatprep.mubr.f32.mxu0 %v3578
    %v3580 = vand.u32 %v2423, 4294901760
    %v3581 = vsub.f32 %v2423, %v3580
    %3582 = vmatmul.mubr.f32.gmra.mxu0 %v3581
    %v3583 = vpop.f32.mrf.mxu0
    %v3584 = vadd.f32 %v3267, %v3583
    %v3585 = vpop.f32.mrf.mxu0
    %v3586 = vand.u32 %v2493, 4294901760
    %v3587 = vsub.f32 %v2493, %v3586
    %3588 = vmatprep.mubr.f32.mxu0 %v3587
    %v3589 = vand.u32 %v2425, 4294901760
    %v3590 = vsub.f32 %v2425, %v3589
    %3591 = vmatmul.mubr.f32.gmra.mxu0 %v3590
    %v3592 = vpop.f32.mrf.mxu0
    %v3593 = vadd.f32 %v3274, %v3592
    %v3594 = vpop.f32.mrf.mxu0
    %v3595 = vand.u32 %v2496, 4294901760
    %v3596 = vsub.f32 %v2496, %v3595
    %3597 = vmatprep.mubr.f32.mxu0 %v3596
    %v3598 = vand.u32 %v2427, 4294901760
    %v3599 = vsub.f32 %v2427, %v3598
    %3600 = vmatmul.mubr.f32.gmra.mxu0 %v3599
    %v3601 = vpop.f32.mrf.mxu0
    %v3602 = vadd.f32 %v3281, %v3601
    %v3603 = vpop.f32.mrf.mxu0
    %v3604 = vand.u32 %v2499, 4294901760
    %v3605 = vsub.f32 %v2499, %v3604
    %3606 = vmatprep.mubr.f32.mxu0 %v3605
    %v3607 = vand.u32 %v2429, 4294901760
    %v3608 = vsub.f32 %v2429, %v3607
    %3609 = vmatmul.mubr.f32.gmra.mxu0 %v3608
    %v3610 = vpop.f32.mrf.mxu0
    %v3611 = vadd.f32 %v3288, %v3610
    %v3612 = vpop.f32.mrf.mxu0
    %v3613 = vand.u32 %v2502, 4294901760
    %v3614 = vsub.f32 %v2502, %v3613
    %3615 = vmatprep.mubr.f32.mxu0 %v3614
    %v3616 = vand.u32 %v2431, 4294901760
    %v3617 = vsub.f32 %v2431, %v3616
    %3618 = vmatmul.mubr.f32.gmra.mxu0 %v3617
    %v3619 = vpop.f32.mrf.mxu0
    %v3620 = vadd.f32 %v3295, %v3619
    %v3621 = vpop.f32.mrf.mxu0
    %v3622 = vand.u32 %v2505, 4294901760
    %v3623 = vsub.f32 %v2505, %v3622
    %3624 = vmatprep.mubr.f32.mxu0 %v3623
    %v3625 = vand.u32 %v2433, 4294901760
    %v3626 = vsub.f32 %v2433, %v3625
    %3627 = vmatmul.mubr.f32.gmra.mxu0 %v3626
    %v3628 = vpop.f32.mrf.mxu0
    %v3629 = vadd.f32 %v3302, %v3628
    %v3630 = vpop.f32.mrf.mxu0
    %v3631 = vand.u32 %v2508, 4294901760
    %v3632 = vsub.f32 %v2508, %v3631
    %3633 = vmatprep.mubr.f32.mxu0 %v3632
    %v3634 = vand.u32 %v2435, 4294901760
    %v3635 = vsub.f32 %v2435, %v3634
    %3636 = vmatmul.mubr.f32.gmra.mxu0 %v3635
    %v3637 = vpop.f32.mrf.mxu0
    %v3638 = vadd.f32 %v3309, %v3637
    %v3639 = vpop.f32.mrf.mxu0
    %3640 = vdwg.mxu0
    %3641 = vmatprep.subr.mxu0 0.0
    %v3642 = vand.u32 %v1858, 4294901760
    %3643 = vmatpush1.msra.mxu0 %v3642
    %3644 = vmatprep.subr.mxu0 0.0
    %v3645 = vand.u32 %v1852, 4294901760
    %3646 = vmatpush1.msra.mxu0 %v3645
    %3647 = vmatprep.subr.mxu0 0.0
    %v3648 = vand.u32 %v2380, 4294901760
    %3649 = vmatpush1.msra.mxu0 %v3648
    %3650 = vmatprep.subr.mxu0 0.0
    %v3651 = vand.u32 %v2379, 4294901760
    %3652 = vmatpush1.msra.mxu0 %v3651
    %3653 = vmatprep.subr.mxu0 0.0
    %v3654 = vand.u32 %v2378, 4294901760
    %3655 = vmatpush1.msra.mxu0 %v3654
    %3656 = vmatprep.subr.mxu0 0.0
    %v3657 = vand.u32 %v2377, 4294901760
    %3658 = vmatpush1.msra.mxu0 %v3657
    %3659 = vmatprep.subr.mxu0 0.0
    %v3660 = vand.u32 %v2374, 4294901760
    %3661 = vmatpush1.msra.mxu0 %v3660
    %3662 = vmatprep.subr.mxu0 0.0
    %v3663 = vand.u32 %v2373, 4294901760
    %3664 = vmatpush1.msra.mxu0 %v3663
    %3665 = vmatprep.subr.mxu0 0.0
    %v3666 = vand.u32 %v1846, 4294901760
    %3667 = vmatpush1.msra.mxu0 %v3666
    %3668 = vmatprep.subr.mxu0 0.0
    %v3669 = vand.u32 %v1840, 4294901760
    %3670 = vmatpush1.msra.mxu0 %v3669
    %3671 = vmatprep.subr.mxu0 0.0
    %v3672 = vand.u32 %v2372, 4294901760
    %3673 = vmatpush1.msra.mxu0 %v3672
    %3674 = vmatprep.subr.mxu0 0.0
    %v3675 = vand.u32 %v2371, 4294901760
    %3676 = vmatpush1.msra.mxu0 %v3675
    %3677 = vmatprep.subr.mxu0 0.0
    %v3678 = vand.u32 %v2370, 4294901760
    %3679 = vmatpush1.msra.mxu0 %v3678
    %3680 = vmatprep.subr.mxu0 0.0
    %v3681 = vand.u32 %v2369, 4294901760
    %3682 = vmatpush1.msra.mxu0 %v3681
    %3683 = vmatprep.subr.mxu0 0.0
    %v3684 = vand.u32 %v2368, 4294901760
    %3685 = vmatpush1.msra.mxu0 %v3684
    %3686 = vmatprep.subr.mxu0 0.0
    %v3687 = vand.u32 %v2367, 4294901760
    %3688 = vmatpush1.msra.mxu0 %v3687
    %3689 = vmatprep.subr.mxu0 0.0
    %3690 = vmatpush2.msra.mxu0 0.0
    %3691 = vmatprep.subr.mxu0 0.0
    %3692 = vmatpush2.msra.mxu0 0.0
    %3693 = vmatprep.subr.mxu0 0.0
    %3694 = vmatpush2.msra.mxu0 0.0
    %3695 = vmatprep.subr.mxu0 0.0
    %3696 = vmatpush2.msra.mxu0 0.0
    %3697 = vmatprep.subr.mxu0 0.0
    %3698 = vmatpush2.msra.mxu0 0.0
    %3699 = vmatprep.subr.mxu0 0.0
    %3700 = vmatpush2.msra.mxu0 0.0
    %3701 = vmatprep.subr.mxu0 0.0
    %3702 = vmatpush2.msra.mxu0 0.0
    %3703 = vmatprep.subr.mxu0 0.0
    %3704 = vmatpush2.msra.mxu0 0.0
    %3705 = vmatprep.subr.mxu0 0.0
    %v3706 = vand.u32 %v1870, 4294901760
    %3707 = vmatpush2.msra.mxu0 %v3706
    %3708 = vmatprep.subr.mxu0 0.0
    %v3709 = vand.u32 %v1864, 4294901760
    %3710 = vmatpush2.msra.mxu0 %v3709
    %3711 = vmatprep.subr.mxu0 0.0
    %v3712 = vand.u32 %v2388, 4294901760
    %3713 = vmatpush2.msra.mxu0 %v3712
    %3714 = vmatprep.subr.mxu0 0.0
    %v3715 = vand.u32 %v2387, 4294901760
    %3716 = vmatpush2.msra.mxu0 %v3715
    %3717 = vmatprep.subr.mxu0 0.0
    %v3718 = vand.u32 %v2384, 4294901760
    %3719 = vmatpush2.msra.mxu0 %v3718
    %3720 = vmatprep.subr.mxu0 0.0
    %v3721 = vand.u32 %v2383, 4294901760
    %3722 = vmatpush2.msra.mxu0 %v3721
    %3723 = vmatprep.subr.mxu0 0.0
    %v3724 = vand.u32 %v2382, 4294901760
    %3725 = vmatpush2.msra.mxu0 %v3724
    %3726 = vmatprep.subr.mxu0 0.0
    %v3727 = vand.u32 %v2381, 4294901760
    %3728 = vmatpush2.msra.mxu0 %v3727
    %v3729 = vand.u32 %v2439, 4294901760
    %v3730 = vsub.f32 %v2439, %v3729
    %v3731 = vand.u32 %v3730, 4294901760
    %3732 = vmatprep.mubr.f32.mxu0 %v3731
    %v3733 = vand.u32 %v2389, 4294901760
    %v3734 = vsub.f32 %v2389, %v3733
    %v3735 = vand.u32 %v3734, 4294901760
    %3736 = vmatmul.mubr.f32.gmra.mxu0 %v3735
    %v3737 = vpop.f32.mrf.mxu0
    %v3738 = vadd.f32 %v3431, %v3737
    %v3739 = vpop.f32.mrf.mxu0
    %v3740 = vand.u32 %v2442, 4294901760
    %v3741 = vsub.f32 %v2442, %v3740
    %v3742 = vand.u32 %v3741, 4294901760
    %3743 = vmatprep.mubr.f32.mxu0 %v3742
    %v3744 = vand.u32 %v2391, 4294901760
    %v3745 = vsub.f32 %v2391, %v3744
    %v3746 = vand.u32 %v3745, 4294901760
    %3747 = vmatmul.mubr.f32.gmra.mxu0 %v3746
    %v3748 = vpop.f32.mrf.mxu0
    %v3749 = vadd.f32 %v3440, %v3748
    %v3750 = vpop.f32.mrf.mxu0
    %v3751 = vand.u32 %v2445, 4294901760
    %v3752 = vsub.f32 %v2445, %v3751
    %v3753 = vand.u32 %v3752, 4294901760
    %3754 = vmatprep.mubr.f32.mxu0 %v3753
    %v3755 = vand.u32 %v2393, 4294901760
    %v3756 = vsub.f32 %v2393, %v3755
    %v3757 = vand.u32 %v3756, 4294901760
    %3758 = vmatmul.mubr.f32.gmra.mxu0 %v3757
    %v3759 = vpop.f32.mrf.mxu0
    %v3760 = vadd.f32 %v3449, %v3759
    %v3761 = vpop.f32.mrf.mxu0
    %v3762 = vand.u32 %v2448, 4294901760
    %v3763 = vsub.f32 %v2448, %v3762
    %v3764 = vand.u32 %v3763, 4294901760
    %3765 = vmatprep.mubr.f32.mxu0 %v3764
    %v3766 = vand.u32 %v2395, 4294901760
    %v3767 = vsub.f32 %v2395, %v3766
    %v3768 = vand.u32 %v3767, 4294901760
    %3769 = vmatmul.mubr.f32.gmra.mxu0 %v3768
    %v3770 = vpop.f32.mrf.mxu0
    %v3771 = vadd.f32 %v3458, %v3770
    %v3772 = vpop.f32.mrf.mxu0
    %v3773 = vand.u32 %v2451, 4294901760
    %v3774 = vsub.f32 %v2451, %v3773
    %v3775 = vand.u32 %v3774, 4294901760
    %3776 = vmatprep.mubr.f32.mxu0 %v3775
    %v3777 = vand.u32 %v2397, 4294901760
    %v3778 = vsub.f32 %v2397, %v3777
    %v3779 = vand.u32 %v3778, 4294901760
    %3780 = vmatmul.mubr.f32.gmra.mxu0 %v3779
    %v3781 = vpop.f32.mrf.mxu0
    %v3782 = vadd.f32 %v3467, %v3781
    %v3783 = vpop.f32.mrf.mxu0
    %v3784 = vand.u32 %v2454, 4294901760
    %v3785 = vsub.f32 %v2454, %v3784
    %v3786 = vand.u32 %v3785, 4294901760
    %3787 = vmatprep.mubr.f32.mxu0 %v3786
    %v3788 = vand.u32 %v2399, 4294901760
    %v3789 = vsub.f32 %v2399, %v3788
    %v3790 = vand.u32 %v3789, 4294901760
    %3791 = vmatmul.mubr.f32.gmra.mxu0 %v3790
    %v3792 = vpop.f32.mrf.mxu0
    %v3793 = vadd.f32 %v3476, %v3792
    %v3794 = vpop.f32.mrf.mxu0
    %v3795 = vand.u32 %v2457, 4294901760
    %v3796 = vsub.f32 %v2457, %v3795
    %v3797 = vand.u32 %v3796, 4294901760
    %3798 = vmatprep.mubr.f32.mxu0 %v3797
    %v3799 = vand.u32 %v2401, 4294901760
    %v3800 = vsub.f32 %v2401, %v3799
    %v3801 = vand.u32 %v3800, 4294901760
    %3802 = vmatmul.mubr.f32.gmra.mxu0 %v3801
    %v3803 = vpop.f32.mrf.mxu0
    %v3804 = vadd.f32 %v3485, %v3803
    %v3805 = vpop.f32.mrf.mxu0
    %v3806 = vand.u32 %v2460, 4294901760
    %v3807 = vsub.f32 %v2460, %v3806
    %v3808 = vand.u32 %v3807, 4294901760
    %3809 = vmatprep.mubr.f32.mxu0 %v3808
    %v3810 = vand.u32 %v2403, 4294901760
    %v3811 = vsub.f32 %v2403, %v3810
    %v3812 = vand.u32 %v3811, 4294901760
    %3813 = vmatmul.mubr.f32.gmra.mxu0 %v3812
    %v3814 = vpop.f32.mrf.mxu0
    %v3815 = vadd.f32 %v3494, %v3814
    %v3816 = vpop.f32.mrf.mxu0
    %v3817 = vand.u32 %v2463, 4294901760
    %v3818 = vsub.f32 %v2463, %v3817
    %v3819 = vand.u32 %v3818, 4294901760
    %3820 = vmatprep.mubr.f32.mxu0 %v3819
    %v3821 = vand.u32 %v2405, 4294901760
    %v3822 = vsub.f32 %v2405, %v3821
    %v3823 = vand.u32 %v3822, 4294901760
    %3824 = vmatmul.mubr.f32.gmra.mxu0 %v3823
    %v3825 = vpop.f32.mrf.mxu0
    %v3826 = vadd.f32 %v3503, %v3825
    %v3827 = vpop.f32.mrf.mxu0
    %v3828 = vand.u32 %v2466, 4294901760
    %v3829 = vsub.f32 %v2466, %v3828
    %v3830 = vand.u32 %v3829, 4294901760
    %3831 = vmatprep.mubr.f32.mxu0 %v3830
    %v3832 = vand.u32 %v2407, 4294901760
    %v3833 = vsub.f32 %v2407, %v3832
    %v3834 = vand.u32 %v3833, 4294901760
    %3835 = vmatmul.mubr.f32.gmra.mxu0 %v3834
    %v3836 = vpop.f32.mrf.mxu0
    %v3837 = vadd.f32 %v3512, %v3836
    %v3838 = vpop.f32.mrf.mxu0
    %v3839 = vand.u32 %v2469, 4294901760
    %v3840 = vsub.f32 %v2469, %v3839
    %v3841 = vand.u32 %v3840, 4294901760
    %3842 = vmatprep.mubr.f32.mxu0 %v3841
    %v3843 = vand.u32 %v2409, 4294901760
    %v3844 = vsub.f32 %v2409, %v3843
    %v3845 = vand.u32 %v3844, 4294901760
    %3846 = vmatmul.mubr.f32.gmra.mxu0 %v3845
    %v3847 = vpop.f32.mrf.mxu0
    %v3848 = vadd.f32 %v3521, %v3847
    %v3849 = vpop.f32.mrf.mxu0
    %v3850 = vand.u32 %v2472, 4294901760
    %v3851 = vsub.f32 %v2472, %v3850
    %v3852 = vand.u32 %v3851, 4294901760
    %3853 = vmatprep.mubr.f32.mxu0 %v3852
    %v3854 = vand.u32 %v2411, 4294901760
    %v3855 = vsub.f32 %v2411, %v3854
    %v3856 = vand.u32 %v3855, 4294901760
    %3857 = vmatmul.mubr.f32.gmra.mxu0 %v3856
    %v3858 = vpop.f32.mrf.mxu0
    %v3859 = vadd.f32 %v3530, %v3858
    %v3860 = vpop.f32.mrf.mxu0
    %v3861 = vand.u32 %v2475, 4294901760
    %v3862 = vsub.f32 %v2475, %v3861
    %v3863 = vand.u32 %v3862, 4294901760
    %3864 = vmatprep.mubr.f32.mxu0 %v3863
    %v3865 = vand.u32 %v2413, 4294901760
    %v3866 = vsub.f32 %v2413, %v3865
    %v3867 = vand.u32 %v3866, 4294901760
    %3868 = vmatmul.mubr.f32.gmra.mxu0 %v3867
    %v3869 = vpop.f32.mrf.mxu0
    %v3870 = vadd.f32 %v3539, %v3869
    %v3871 = vpop.f32.mrf.mxu0
    %v3872 = vand.u32 %v2478, 4294901760
    %v3873 = vsub.f32 %v2478, %v3872
    %v3874 = vand.u32 %v3873, 4294901760
    %3875 = vmatprep.mubr.f32.mxu0 %v3874
    %v3876 = vand.u32 %v2415, 4294901760
    %v3877 = vsub.f32 %v2415, %v3876
    %v3878 = vand.u32 %v3877, 4294901760
    %3879 = vmatmul.mubr.f32.gmra.mxu0 %v3878
    %v3880 = vpop.f32.mrf.mxu0
    %v3881 = vadd.f32 %v3548, %v3880
    %v3882 = vpop.f32.mrf.mxu0
    %v3883 = vand.u32 %v2481, 4294901760
    %v3884 = vsub.f32 %v2481, %v3883
    %v3885 = vand.u32 %v3884, 4294901760
    %3886 = vmatprep.mubr.f32.mxu0 %v3885
    %v3887 = vand.u32 %v2417, 4294901760
    %v3888 = vsub.f32 %v2417, %v3887
    %v3889 = vand.u32 %v3888, 4294901760
    %3890 = vmatmul.mubr.f32.gmra.mxu0 %v3889
    %v3891 = vpop.f32.mrf.mxu0
    %v3892 = vadd.f32 %v3557, %v3891
    %v3893 = vpop.f32.mrf.mxu0
    %v3894 = vand.u32 %v2484, 4294901760
    %v3895 = vsub.f32 %v2484, %v3894
    %v3896 = vand.u32 %v3895, 4294901760
    %3897 = vmatprep.mubr.f32.mxu0 %v3896
    %v3898 = vand.u32 %v2419, 4294901760
    %v3899 = vsub.f32 %v2419, %v3898
    %v3900 = vand.u32 %v3899, 4294901760
    %3901 = vmatmul.mubr.f32.gmra.mxu0 %v3900
    %v3902 = vpop.f32.mrf.mxu0
    %v3903 = vadd.f32 %v3566, %v3902
    %v3904 = vpop.f32.mrf.mxu0
    %v3905 = vand.u32 %v2487, 4294901760
    %v3906 = vsub.f32 %v2487, %v3905
    %v3907 = vand.u32 %v3906, 4294901760
    %3908 = vmatprep.mubr.f32.mxu0 %v3907
    %v3909 = vand.u32 %v2421, 4294901760
    %v3910 = vsub.f32 %v2421, %v3909
    %v3911 = vand.u32 %v3910, 4294901760
    %3912 = vmatmul.mubr.f32.gmra.mxu0 %v3911
    %v3913 = vpop.f32.mrf.mxu0
    %v3914 = vadd.f32 %v3575, %v3913
    %v3915 = vpop.f32.mrf.mxu0
    %v3916 = vand.u32 %v2490, 4294901760
    %v3917 = vsub.f32 %v2490, %v3916
    %v3918 = vand.u32 %v3917, 4294901760
    %3919 = vmatprep.mubr.f32.mxu0 %v3918
    %v3920 = vand.u32 %v2423, 4294901760
    %v3921 = vsub.f32 %v2423, %v3920
    %v3922 = vand.u32 %v3921, 4294901760
    %3923 = vmatmul.mubr.f32.gmra.mxu0 %v3922
    %v3924 = vpop.f32.mrf.mxu0
    %v3925 = vadd.f32 %v3584, %v3924
    %v3926 = vpop.f32.mrf.mxu0
    %v3927 = vand.u32 %v2493, 4294901760
    %v3928 = vsub.f32 %v2493, %v3927
    %v3929 = vand.u32 %v3928, 4294901760
    %3930 = vmatprep.mubr.f32.mxu0 %v3929
    %v3931 = vand.u32 %v2425, 4294901760
    %v3932 = vsub.f32 %v2425, %v3931
    %v3933 = vand.u32 %v3932, 4294901760
    %3934 = vmatmul.mubr.f32.gmra.mxu0 %v3933
    %v3935 = vpop.f32.mrf.mxu0
    %v3936 = vadd.f32 %v3593, %v3935
    %v3937 = vpop.f32.mrf.mxu0
    %v3938 = vand.u32 %v2496, 4294901760
    %v3939 = vsub.f32 %v2496, %v3938
    %v3940 = vand.u32 %v3939, 4294901760
    %3941 = vmatprep.mubr.f32.mxu0 %v3940
    %v3942 = vand.u32 %v2427, 4294901760
    %v3943 = vsub.f32 %v2427, %v3942
    %v3944 = vand.u32 %v3943, 4294901760
    %3945 = vmatmul.mubr.f32.gmra.mxu0 %v3944
    %v3946 = vpop.f32.mrf.mxu0
    %v3947 = vadd.f32 %v3602, %v3946
    %v3948 = vpop.f32.mrf.mxu0
    %v3949 = vand.u32 %v2499, 4294901760
    %v3950 = vsub.f32 %v2499, %v3949
    %v3951 = vand.u32 %v3950, 4294901760
    %3952 = vmatprep.mubr.f32.mxu0 %v3951
    %v3953 = vand.u32 %v2429, 4294901760
    %v3954 = vsub.f32 %v2429, %v3953
    %v3955 = vand.u32 %v3954, 4294901760
    %3956 = vmatmul.mubr.f32.gmra.mxu0 %v3955
    %v3957 = vpop.f32.mrf.mxu0
    %v3958 = vadd.f32 %v3611, %v3957
    %v3959 = vpop.f32.mrf.mxu0
    %v3960 = vand.u32 %v2502, 4294901760
    %v3961 = vsub.f32 %v2502, %v3960
    %v3962 = vand.u32 %v3961, 4294901760
    %3963 = vmatprep.mubr.f32.mxu0 %v3962
    %v3964 = vand.u32 %v2431, 4294901760
    %v3965 = vsub.f32 %v2431, %v3964
    %v3966 = vand.u32 %v3965, 4294901760
    %3967 = vmatmul.mubr.f32.gmra.mxu0 %v3966
    %v3968 = vpop.f32.mrf.mxu0
    %v3969 = vadd.f32 %v3620, %v3968
    %v3970 = vpop.f32.mrf.mxu0
    %v3971 = vand.u32 %v2505, 4294901760
    %v3972 = vsub.f32 %v2505, %v3971
    %v3973 = vand.u32 %v3972, 4294901760
    %3974 = vmatprep.mubr.f32.mxu0 %v3973
    %v3975 = vand.u32 %v2433, 4294901760
    %v3976 = vsub.f32 %v2433, %v3975
    %v3977 = vand.u32 %v3976, 4294901760
    %3978 = vmatmul.mubr.f32.gmra.mxu0 %v3977
    %v3979 = vpop.f32.mrf.mxu0
    %v3980 = vadd.f32 %v3629, %v3979
    %v3981 = vpop.f32.mrf.mxu0
    %v3982 = vand.u32 %v2508, 4294901760
    %v3983 = vsub.f32 %v2508, %v3982
    %v3984 = vand.u32 %v3983, 4294901760
    %3985 = vmatprep.mubr.f32.mxu0 %v3984
    %v3986 = vand.u32 %v2435, 4294901760
    %v3987 = vsub.f32 %v2435, %v3986
    %v3988 = vand.u32 %v3987, 4294901760
    %3989 = vmatmul.mubr.f32.gmra.mxu0 %v3988
    %v3990 = vpop.f32.mrf.mxu0
    %v3991 = vadd.f32 %v3638, %v3990
    %v3992 = vpop.f32.mrf.mxu0
    %3993 = vdwg.mxu0
    %3994 = vmatprep.subr.mxu0 0.0
    %v3995 = vand.u32 %v1858, 4294901760
    %v3996 = vsub.f32 %v1858, %v3995
    %v3997 = vand.u32 %v3996, 4294901760
    %3998 = vmatpush1.msra.mxu0 %v3997
    %3999 = vmatprep.subr.mxu0 0.0
    %v4000 = vand.u32 %v1852, 4294901760
    %v4001 = vsub.f32 %v1852, %v4000
    %v4002 = vand.u32 %v4001, 4294901760
    %4003 = vmatpush1.msra.mxu0 %v4002
    %4004 = vmatprep.subr.mxu0 0.0
    %v4005 = vand.u32 %v2380, 4294901760
    %v4006 = vsub.f32 %v2380, %v4005
    %v4007 = vand.u32 %v4006, 4294901760
    %4008 = vmatpush1.msra.mxu0 %v4007
    %4009 = vmatprep.subr.mxu0 0.0
    %v4010 = vand.u32 %v2379, 4294901760
    %v4011 = vsub.f32 %v2379, %v4010
    %v4012 = vand.u32 %v4011, 4294901760
    %4013 = vmatpush1.msra.mxu0 %v4012
    %4014 = vmatprep.subr.mxu0 0.0
    %v4015 = vand.u32 %v2378, 4294901760
    %v4016 = vsub.f32 %v2378, %v4015
    %v4017 = vand.u32 %v4016, 4294901760
    %4018 = vmatpush1.msra.mxu0 %v4017
    %4019 = vmatprep.subr.mxu0 0.0
    %v4020 = vand.u32 %v2377, 4294901760
    %v4021 = vsub.f32 %v2377, %v4020
    %v4022 = vand.u32 %v4021, 4294901760
    %4023 = vmatpush1.msra.mxu0 %v4022
    %4024 = vmatprep.subr.mxu0 0.0
    %v4025 = vand.u32 %v2374, 4294901760
    %v4026 = vsub.f32 %v2374, %v4025
    %v4027 = vand.u32 %v4026, 4294901760
    %4028 = vmatpush1.msra.mxu0 %v4027
    %4029 = vmatprep.subr.mxu0 0.0
    %v4030 = vand.u32 %v2373, 4294901760
    %v4031 = vsub.f32 %v2373, %v4030
    %v4032 = vand.u32 %v4031, 4294901760
    %4033 = vmatpush1.msra.mxu0 %v4032
    %4034 = vmatprep.subr.mxu0 0.0
    %v4035 = vand.u32 %v1846, 4294901760
    %v4036 = vsub.f32 %v1846, %v4035
    %v4037 = vand.u32 %v4036, 4294901760
    %4038 = vmatpush1.msra.mxu0 %v4037
    %4039 = vmatprep.subr.mxu0 0.0
    %v4040 = vand.u32 %v1840, 4294901760
    %v4041 = vsub.f32 %v1840, %v4040
    %v4042 = vand.u32 %v4041, 4294901760
    %4043 = vmatpush1.msra.mxu0 %v4042
    %4044 = vmatprep.subr.mxu0 0.0
    %v4045 = vand.u32 %v2372, 4294901760
    %v4046 = vsub.f32 %v2372, %v4045
    %v4047 = vand.u32 %v4046, 4294901760
    %4048 = vmatpush1.msra.mxu0 %v4047
    %4049 = vmatprep.subr.mxu0 0.0
    %v4050 = vand.u32 %v2371, 4294901760
    %v4051 = vsub.f32 %v2371, %v4050
    %v4052 = vand.u32 %v4051, 4294901760
    %4053 = vmatpush1.msra.mxu0 %v4052
    %4054 = vmatprep.subr.mxu0 0.0
    %v4055 = vand.u32 %v2370, 4294901760
    %v4056 = vsub.f32 %v2370, %v4055
    %v4057 = vand.u32 %v4056, 4294901760
    %4058 = vmatpush1.msra.mxu0 %v4057
    %4059 = vmatprep.subr.mxu0 0.0
    %v4060 = vand.u32 %v2369, 4294901760
    %v4061 = vsub.f32 %v2369, %v4060
    %v4062 = vand.u32 %v4061, 4294901760
    %4063 = vmatpush1.msra.mxu0 %v4062
    %4064 = vmatprep.subr.mxu0 0.0
    %v4065 = vand.u32 %v2368, 4294901760
    %v4066 = vsub.f32 %v2368, %v4065
    %v4067 = vand.u32 %v4066, 4294901760
    %4068 = vmatpush1.msra.mxu0 %v4067
    %4069 = vmatprep.subr.mxu0 0.0
    %v4070 = vand.u32 %v2367, 4294901760
    %v4071 = vsub.f32 %v2367, %v4070
    %v4072 = vand.u32 %v4071, 4294901760
    %4073 = vmatpush1.msra.mxu0 %v4072
    %4074 = vmatprep.subr.mxu0 0.0
    %4075 = vmatpush2.msra.mxu0 0.0
    %4076 = vmatprep.subr.mxu0 0.0
    %4077 = vmatpush2.msra.mxu0 0.0
    %4078 = vmatprep.subr.mxu0 0.0
    %4079 = vmatpush2.msra.mxu0 0.0
    %4080 = vmatprep.subr.mxu0 0.0
    %4081 = vmatpush2.msra.mxu0 0.0
    %4082 = vmatprep.subr.mxu0 0.0
    %4083 = vmatpush2.msra.mxu0 0.0
    %4084 = vmatprep.subr.mxu0 0.0
    %4085 = vmatpush2.msra.mxu0 0.0
    %4086 = vmatprep.subr.mxu0 0.0
    %4087 = vmatpush2.msra.mxu0 0.0
    %4088 = vmatprep.subr.mxu0 0.0
    %4089 = vmatpush2.msra.mxu0 0.0
    %4090 = vmatprep.subr.mxu0 0.0
    %v4091 = vand.u32 %v1870, 4294901760
    %v4092 = vsub.f32 %v1870, %v4091
    %v4093 = vand.u32 %v4092, 4294901760
    %4094 = vmatpush2.msra.mxu0 %v4093
    %4095 = vmatprep.subr.mxu0 0.0
    %v4096 = vand.u32 %v1864, 4294901760
    %v4097 = vsub.f32 %v1864, %v4096
    %v4098 = vand.u32 %v4097, 4294901760
    %4099 = vmatpush2.msra.mxu0 %v4098
    %4100 = vmatprep.subr.mxu0 0.0
    %v4101 = vand.u32 %v2388, 4294901760
    %v4102 = vsub.f32 %v2388, %v4101
    %v4103 = vand.u32 %v4102, 4294901760
    %4104 = vmatpush2.msra.mxu0 %v4103
    %4105 = vmatprep.subr.mxu0 0.0
    %v4106 = vand.u32 %v2387, 4294901760
    %v4107 = vsub.f32 %v2387, %v4106
    %v4108 = vand.u32 %v4107, 4294901760
    %4109 = vmatpush2.msra.mxu0 %v4108
    %4110 = vmatprep.subr.mxu0 0.0
    %v4111 = vand.u32 %v2384, 4294901760
    %v4112 = vsub.f32 %v2384, %v4111
    %v4113 = vand.u32 %v4112, 4294901760
    %4114 = vmatpush2.msra.mxu0 %v4113
    %4115 = vmatprep.subr.mxu0 0.0
    %v4116 = vand.u32 %v2383, 4294901760
    %v4117 = vsub.f32 %v2383, %v4116
    %v4118 = vand.u32 %v4117, 4294901760
    %4119 = vmatpush2.msra.mxu0 %v4118
    %4120 = vmatprep.subr.mxu0 0.0
    %v4121 = vand.u32 %v2382, 4294901760
    %v4122 = vsub.f32 %v2382, %v4121
    %v4123 = vand.u32 %v4122, 4294901760
    %4124 = vmatpush2.msra.mxu0 %v4123
    %4125 = vmatprep.subr.mxu0 0.0
    %v4126 = vand.u32 %v2381, 4294901760
    %v4127 = vsub.f32 %v2381, %v4126
    %v4128 = vand.u32 %v4127, 4294901760
    %4129 = vmatpush2.msra.mxu0 %v4128
    %v4130 = vand.u32 %v2439, 4294901760
    %4131 = vmatprep.mubr.f32.mxu0 %v4130
    %v4132 = vand.u32 %v2389, 4294901760
    %4133 = vmatmul.mubr.f32.gmra.mxu0 %v4132
    %v4134 = vpop.f32.mrf.mxu0
    %v4135 = vadd.f32 %v3738, %v4134
    %v4136 = vpop.f32.mrf.mxu0
    %v4137 = vand.u32 %v2442, 4294901760
    %4138 = vmatprep.mubr.f32.mxu0 %v4137
    %v4139 = vand.u32 %v2391, 4294901760
    %4140 = vmatmul.mubr.f32.gmra.mxu0 %v4139
    %v4141 = vpop.f32.mrf.mxu0
    %v4142 = vadd.f32 %v3749, %v4141
    %v4143 = vpop.f32.mrf.mxu0
    %v4144 = vand.u32 %v2445, 4294901760
    %4145 = vmatprep.mubr.f32.mxu0 %v4144
    %v4146 = vand.u32 %v2393, 4294901760
    %4147 = vmatmul.mubr.f32.gmra.mxu0 %v4146
    %v4148 = vpop.f32.mrf.mxu0
    %v4149 = vadd.f32 %v3760, %v4148
    %v4150 = vpop.f32.mrf.mxu0
    %v4151 = vand.u32 %v2448, 4294901760
    %4152 = vmatprep.mubr.f32.mxu0 %v4151
    %v4153 = vand.u32 %v2395, 4294901760
    %4154 = vmatmul.mubr.f32.gmra.mxu0 %v4153
    %v4155 = vpop.f32.mrf.mxu0
    %v4156 = vadd.f32 %v3771, %v4155
    %v4157 = vpop.f32.mrf.mxu0
    %v4158 = vand.u32 %v2451, 4294901760
    %4159 = vmatprep.mubr.f32.mxu0 %v4158
    %v4160 = vand.u32 %v2397, 4294901760
    %4161 = vmatmul.mubr.f32.gmra.mxu0 %v4160
    %v4162 = vpop.f32.mrf.mxu0
    %v4163 = vadd.f32 %v3782, %v4162
    %v4164 = vpop.f32.mrf.mxu0
    %v4165 = vand.u32 %v2454, 4294901760
    %4166 = vmatprep.mubr.f32.mxu0 %v4165
    %v4167 = vand.u32 %v2399, 4294901760
    %4168 = vmatmul.mubr.f32.gmra.mxu0 %v4167
    %v4169 = vpop.f32.mrf.mxu0
    %v4170 = vadd.f32 %v3793, %v4169
    %v4171 = vpop.f32.mrf.mxu0
    %v4172 = vand.u32 %v2457, 4294901760
    %4173 = vmatprep.mubr.f32.mxu0 %v4172
    %v4174 = vand.u32 %v2401, 4294901760
    %4175 = vmatmul.mubr.f32.gmra.mxu0 %v4174
    %v4176 = vpop.f32.mrf.mxu0
    %v4177 = vadd.f32 %v3804, %v4176
    %v4178 = vpop.f32.mrf.mxu0
    %v4179 = vand.u32 %v2460, 4294901760
    %4180 = vmatprep.mubr.f32.mxu0 %v4179
    %v4181 = vand.u32 %v2403, 4294901760
    %4182 = vmatmul.mubr.f32.gmra.mxu0 %v4181
    %v4183 = vpop.f32.mrf.mxu0
    %v4184 = vadd.f32 %v3815, %v4183
    %v4185 = vpop.f32.mrf.mxu0
    %v4186 = vand.u32 %v2463, 4294901760
    %4187 = vmatprep.mubr.f32.mxu0 %v4186
    %v4188 = vand.u32 %v2405, 4294901760
    %4189 = vmatmul.mubr.f32.gmra.mxu0 %v4188
    %v4190 = vpop.f32.mrf.mxu0
    %v4191 = vadd.f32 %v3826, %v4190
    %v4192 = vpop.f32.mrf.mxu0
    %v4193 = vand.u32 %v2466, 4294901760
    %4194 = vmatprep.mubr.f32.mxu0 %v4193
    %v4195 = vand.u32 %v2407, 4294901760
    %4196 = vmatmul.mubr.f32.gmra.mxu0 %v4195
    %v4197 = vpop.f32.mrf.mxu0
    %v4198 = vadd.f32 %v3837, %v4197
    %v4199 = vpop.f32.mrf.mxu0
    %v4200 = vand.u32 %v2469, 4294901760
    %4201 = vmatprep.mubr.f32.mxu0 %v4200
    %v4202 = vand.u32 %v2409, 4294901760
    %4203 = vmatmul.mubr.f32.gmra.mxu0 %v4202
    %v4204 = vpop.f32.mrf.mxu0
    %v4205 = vadd.f32 %v3848, %v4204
    %v4206 = vpop.f32.mrf.mxu0
    %v4207 = vand.u32 %v2472, 4294901760
    %4208 = vmatprep.mubr.f32.mxu0 %v4207
    %v4209 = vand.u32 %v2411, 4294901760
    %4210 = vmatmul.mubr.f32.gmra.mxu0 %v4209
    %v4211 = vpop.f32.mrf.mxu0
    %v4212 = vadd.f32 %v3859, %v4211
    %v4213 = vpop.f32.mrf.mxu0
    %v4214 = vand.u32 %v2475, 4294901760
    %4215 = vmatprep.mubr.f32.mxu0 %v4214
    %v4216 = vand.u32 %v2413, 4294901760
    %4217 = vmatmul.mubr.f32.gmra.mxu0 %v4216
    %v4218 = vpop.f32.mrf.mxu0
    %v4219 = vadd.f32 %v3870, %v4218
    %v4220 = vpop.f32.mrf.mxu0
    %v4221 = vand.u32 %v2478, 4294901760
    %4222 = vmatprep.mubr.f32.mxu0 %v4221
    %v4223 = vand.u32 %v2415, 4294901760
    %4224 = vmatmul.mubr.f32.gmra.mxu0 %v4223
    %v4225 = vpop.f32.mrf.mxu0
    %v4226 = vadd.f32 %v3881, %v4225
    %v4227 = vpop.f32.mrf.mxu0
    %v4228 = vand.u32 %v2481, 4294901760
    %4229 = vmatprep.mubr.f32.mxu0 %v4228
    %v4230 = vand.u32 %v2417, 4294901760
    %4231 = vmatmul.mubr.f32.gmra.mxu0 %v4230
    %v4232 = vpop.f32.mrf.mxu0
    %v4233 = vadd.f32 %v3892, %v4232
    %v4234 = vpop.f32.mrf.mxu0
    %v4235 = vand.u32 %v2484, 4294901760
    %4236 = vmatprep.mubr.f32.mxu0 %v4235
    %v4237 = vand.u32 %v2419, 4294901760
    %4238 = vmatmul.mubr.f32.gmra.mxu0 %v4237
    %v4239 = vpop.f32.mrf.mxu0
    %v4240 = vadd.f32 %v3903, %v4239
    %v4241 = vpop.f32.mrf.mxu0
    %v4242 = vand.u32 %v2487, 4294901760
    %4243 = vmatprep.mubr.f32.mxu0 %v4242
    %v4244 = vand.u32 %v2421, 4294901760
    %4245 = vmatmul.mubr.f32.gmra.mxu0 %v4244
    %v4246 = vpop.f32.mrf.mxu0
    %v4247 = vadd.f32 %v3914, %v4246
    %v4248 = vpop.f32.mrf.mxu0
    %v4249 = vand.u32 %v2490, 4294901760
    %4250 = vmatprep.mubr.f32.mxu0 %v4249
    %v4251 = vand.u32 %v2423, 4294901760
    %4252 = vmatmul.mubr.f32.gmra.mxu0 %v4251
    %v4253 = vpop.f32.mrf.mxu0
    %v4254 = vadd.f32 %v3925, %v4253
    %v4255 = vpop.f32.mrf.mxu0
    %v4256 = vand.u32 %v2493, 4294901760
    %4257 = vmatprep.mubr.f32.mxu0 %v4256
    %v4258 = vand.u32 %v2425, 4294901760
    %4259 = vmatmul.mubr.f32.gmra.mxu0 %v4258
    %v4260 = vpop.f32.mrf.mxu0
    %v4261 = vadd.f32 %v3936, %v4260
    %v4262 = vpop.f32.mrf.mxu0
    %v4263 = vand.u32 %v2496, 4294901760
    %4264 = vmatprep.mubr.f32.mxu0 %v4263
    %v4265 = vand.u32 %v2427, 4294901760
    %4266 = vmatmul.mubr.f32.gmra.mxu0 %v4265
    %v4267 = vpop.f32.mrf.mxu0
    %v4268 = vadd.f32 %v3947, %v4267
    %v4269 = vpop.f32.mrf.mxu0
    %v4270 = vand.u32 %v2499, 4294901760
    %4271 = vmatprep.mubr.f32.mxu0 %v4270
    %v4272 = vand.u32 %v2429, 4294901760
    %4273 = vmatmul.mubr.f32.gmra.mxu0 %v4272
    %v4274 = vpop.f32.mrf.mxu0
    %v4275 = vadd.f32 %v3958, %v4274
    %v4276 = vpop.f32.mrf.mxu0
    %v4277 = vand.u32 %v2502, 4294901760
    %4278 = vmatprep.mubr.f32.mxu0 %v4277
    %v4279 = vand.u32 %v2431, 4294901760
    %4280 = vmatmul.mubr.f32.gmra.mxu0 %v4279
    %v4281 = vpop.f32.mrf.mxu0
    %v4282 = vadd.f32 %v3969, %v4281
    %v4283 = vpop.f32.mrf.mxu0
    %v4284 = vand.u32 %v2505, 4294901760
    %4285 = vmatprep.mubr.f32.mxu0 %v4284
    %v4286 = vand.u32 %v2433, 4294901760
    %4287 = vmatmul.mubr.f32.gmra.mxu0 %v4286
    %v4288 = vpop.f32.mrf.mxu0
    %v4289 = vadd.f32 %v3980, %v4288
    %v4290 = vpop.f32.mrf.mxu0
    %v4291 = vand.u32 %v2508, 4294901760
    %4292 = vmatprep.mubr.f32.mxu0 %v4291
    %v4293 = vand.u32 %v2435, 4294901760
    %4294 = vmatmul.mubr.f32.gmra.mxu0 %v4293
    %v4295 = vpop.f32.mrf.mxu0
    %v4296 = vadd.f32 %v3991, %v4295
    %v4297 = vpop.f32.mrf.mxu0
    %4298 = vdwg.mxu0
    %4299 = vmatprep.subr.mxu0 0.0
    %v4300 = vand.u32 %v1858, 4294901760
    %4301 = vmatpush1.msra.mxu0 %v4300
    %4302 = vmatprep.subr.mxu0 0.0
    %v4303 = vand.u32 %v1852, 4294901760
    %4304 = vmatpush1.msra.mxu0 %v4303
    %4305 = vmatprep.subr.mxu0 0.0
    %v4306 = vand.u32 %v2380, 4294901760
    %4307 = vmatpush1.msra.mxu0 %v4306
    %4308 = vmatprep.subr.mxu0 0.0
    %v4309 = vand.u32 %v2379, 4294901760
    %4310 = vmatpush1.msra.mxu0 %v4309
    %4311 = vmatprep.subr.mxu0 0.0
    %v4312 = vand.u32 %v2378, 4294901760
    %4313 = vmatpush1.msra.mxu0 %v4312
    %4314 = vmatprep.subr.mxu0 0.0
    %v4315 = vand.u32 %v2377, 4294901760
    %4316 = vmatpush1.msra.mxu0 %v4315
    %4317 = vmatprep.subr.mxu0 0.0
    %v4318 = vand.u32 %v2374, 4294901760
    %4319 = vmatpush1.msra.mxu0 %v4318
    %4320 = vmatprep.subr.mxu0 0.0
    %v4321 = vand.u32 %v2373, 4294901760
    %4322 = vmatpush1.msra.mxu0 %v4321
    %4323 = vmatprep.subr.mxu0 0.0
    %v4324 = vand.u32 %v1846, 4294901760
    %4325 = vmatpush1.msra.mxu0 %v4324
    %4326 = vmatprep.subr.mxu0 0.0
    %v4327 = vand.u32 %v1840, 4294901760
    %4328 = vmatpush1.msra.mxu0 %v4327
    %4329 = vmatprep.subr.mxu0 0.0
    %v4330 = vand.u32 %v2372, 4294901760
    %4331 = vmatpush1.msra.mxu0 %v4330
    %4332 = vmatprep.subr.mxu0 0.0
    %v4333 = vand.u32 %v2371, 4294901760
    %4334 = vmatpush1.msra.mxu0 %v4333
    %4335 = vmatprep.subr.mxu0 0.0
    %v4336 = vand.u32 %v2370, 4294901760
    %4337 = vmatpush1.msra.mxu0 %v4336
    %4338 = vmatprep.subr.mxu0 0.0
    %v4339 = vand.u32 %v2369, 4294901760
    %4340 = vmatpush1.msra.mxu0 %v4339
    %4341 = vmatprep.subr.mxu0 0.0
    %v4342 = vand.u32 %v2368, 4294901760
    %4343 = vmatpush1.msra.mxu0 %v4342
    %4344 = vmatprep.subr.mxu0 0.0
    %v4345 = vand.u32 %v2367, 4294901760
    %4346 = vmatpush1.msra.mxu0 %v4345
    %4347 = vmatprep.subr.mxu0 0.0
    %4348 = vmatpush2.msra.mxu0 0.0
    %4349 = vmatprep.subr.mxu0 0.0
    %4350 = vmatpush2.msra.mxu0 0.0
    %4351 = vmatprep.subr.mxu0 0.0
    %4352 = vmatpush2.msra.mxu0 0.0
    %4353 = vmatprep.subr.mxu0 0.0
    %4354 = vmatpush2.msra.mxu0 0.0
    %4355 = vmatprep.subr.mxu0 0.0
    %4356 = vmatpush2.msra.mxu0 0.0
    %4357 = vmatprep.subr.mxu0 0.0
    %4358 = vmatpush2.msra.mxu0 0.0
    %4359 = vmatprep.subr.mxu0 0.0
    %4360 = vmatpush2.msra.mxu0 0.0
    %4361 = vmatprep.subr.mxu0 0.0
    %4362 = vmatpush2.msra.mxu0 0.0
    %4363 = vmatprep.subr.mxu0 0.0
    %v4364 = vand.u32 %v1870, 4294901760
    %4365 = vmatpush2.msra.mxu0 %v4364
    %4366 = vmatprep.subr.mxu0 0.0
    %v4367 = vand.u32 %v1864, 4294901760
    %4368 = vmatpush2.msra.mxu0 %v4367
    %4369 = vmatprep.subr.mxu0 0.0
    %v4370 = vand.u32 %v2388, 4294901760
    %4371 = vmatpush2.msra.mxu0 %v4370
    %4372 = vmatprep.subr.mxu0 0.0
    %v4373 = vand.u32 %v2387, 4294901760
    %4374 = vmatpush2.msra.mxu0 %v4373
    %4375 = vmatprep.subr.mxu0 0.0
    %v4376 = vand.u32 %v2384, 4294901760
    %4377 = vmatpush2.msra.mxu0 %v4376
    %4378 = vmatprep.subr.mxu0 0.0
    %v4379 = vand.u32 %v2383, 4294901760
    %4380 = vmatpush2.msra.mxu0 %v4379
    %4381 = vmatprep.subr.mxu0 0.0
    %v4382 = vand.u32 %v2382, 4294901760
    %4383 = vmatpush2.msra.mxu0 %v4382
    %4384 = vmatprep.subr.mxu0 0.0
    %v4385 = vand.u32 %v2381, 4294901760
    %4386 = vmatpush2.msra.mxu0 %v4385
    %v4387 = vand.u32 %v2439, 4294901760
    %4388 = vmatprep.mubr.f32.mxu0 %v4387
    %v4389 = vand.u32 %v2389, 4294901760
    %4390 = vmatmul.mubr.f32.gmra.mxu0 %v4389
    %v4391 = vpop.f32.mrf.mxu0
    %v4392 = vadd.f32 %v4135, %v4391
    %v4393 = vpop.f32.mrf.mxu0
    %v4394 = vand.u32 %v2442, 4294901760
    %4395 = vmatprep.mubr.f32.mxu0 %v4394
    %v4396 = vand.u32 %v2391, 4294901760
    %4397 = vmatmul.mubr.f32.gmra.mxu0 %v4396
    %v4398 = vpop.f32.mrf.mxu0
    %v4399 = vadd.f32 %v4142, %v4398
    %v4400 = vpop.f32.mrf.mxu0
    %v4401 = vand.u32 %v2445, 4294901760
    %4402 = vmatprep.mubr.f32.mxu0 %v4401
    %v4403 = vand.u32 %v2393, 4294901760
    %4404 = vmatmul.mubr.f32.gmra.mxu0 %v4403
    %v4405 = vpop.f32.mrf.mxu0
    %v4406 = vadd.f32 %v4149, %v4405
    %v4407 = vpop.f32.mrf.mxu0
    %v4408 = vand.u32 %v2448, 4294901760
    %4409 = vmatprep.mubr.f32.mxu0 %v4408
    %v4410 = vand.u32 %v2395, 4294901760
    %4411 = vmatmul.mubr.f32.gmra.mxu0 %v4410
    %v4412 = vpop.f32.mrf.mxu0
    %v4413 = vadd.f32 %v4156, %v4412
    %v4414 = vpop.f32.mrf.mxu0
    %v4415 = vand.u32 %v2451, 4294901760
    %4416 = vmatprep.mubr.f32.mxu0 %v4415
    %v4417 = vand.u32 %v2397, 4294901760
    %4418 = vmatmul.mubr.f32.gmra.mxu0 %v4417
    %v4419 = vpop.f32.mrf.mxu0
    %v4420 = vadd.f32 %v4163, %v4419
    %v4421 = vpop.f32.mrf.mxu0
    %v4422 = vand.u32 %v2454, 4294901760
    %4423 = vmatprep.mubr.f32.mxu0 %v4422
    %v4424 = vand.u32 %v2399, 4294901760
    %4425 = vmatmul.mubr.f32.gmra.mxu0 %v4424
    %v4426 = vpop.f32.mrf.mxu0
    %v4427 = vadd.f32 %v4170, %v4426
    %v4428 = vpop.f32.mrf.mxu0
    %v4429 = vand.u32 %v2457, 4294901760
    %4430 = vmatprep.mubr.f32.mxu0 %v4429
    %v4431 = vand.u32 %v2401, 4294901760
    %4432 = vmatmul.mubr.f32.gmra.mxu0 %v4431
    %v4433 = vpop.f32.mrf.mxu0
    %v4434 = vadd.f32 %v4177, %v4433
    %v4435 = vpop.f32.mrf.mxu0
    %v4436 = vand.u32 %v2460, 4294901760
    %4437 = vmatprep.mubr.f32.mxu0 %v4436
    %v4438 = vand.u32 %v2403, 4294901760
    %4439 = vmatmul.mubr.f32.gmra.mxu0 %v4438
    %v4440 = vpop.f32.mrf.mxu0
    %v4441 = vadd.f32 %v4184, %v4440
    %v4442 = vpop.f32.mrf.mxu0
    %v4443 = vand.u32 %v2463, 4294901760
    %4444 = vmatprep.mubr.f32.mxu0 %v4443
    %v4445 = vand.u32 %v2405, 4294901760
    %4446 = vmatmul.mubr.f32.gmra.mxu0 %v4445
    %v4447 = vpop.f32.mrf.mxu0
    %v4448 = vadd.f32 %v4191, %v4447
    %v4449 = vpop.f32.mrf.mxu0
    %v4450 = vand.u32 %v2466, 4294901760
    %4451 = vmatprep.mubr.f32.mxu0 %v4450
    %v4452 = vand.u32 %v2407, 4294901760
    %4453 = vmatmul.mubr.f32.gmra.mxu0 %v4452
    %v4454 = vpop.f32.mrf.mxu0
    %v4455 = vadd.f32 %v4198, %v4454
    %v4456 = vpop.f32.mrf.mxu0
    %v4457 = vand.u32 %v2469, 4294901760
    %4458 = vmatprep.mubr.f32.mxu0 %v4457
    %v4459 = vand.u32 %v2409, 4294901760
    %4460 = vmatmul.mubr.f32.gmra.mxu0 %v4459
    %v4461 = vpop.f32.mrf.mxu0
    %v4462 = vadd.f32 %v4205, %v4461
    %v4463 = vpop.f32.mrf.mxu0
    %v4464 = vand.u32 %v2472, 4294901760
    %4465 = vmatprep.mubr.f32.mxu0 %v4464
    %v4466 = vand.u32 %v2411, 4294901760
    %4467 = vmatmul.mubr.f32.gmra.mxu0 %v4466
    %v4468 = vpop.f32.mrf.mxu0
    %v4469 = vadd.f32 %v4212, %v4468
    %v4470 = vpop.f32.mrf.mxu0
    %v4471 = vand.u32 %v2475, 4294901760
    %4472 = vmatprep.mubr.f32.mxu0 %v4471
    %v4473 = vand.u32 %v2413, 4294901760
    %4474 = vmatmul.mubr.f32.gmra.mxu0 %v4473
    %v4475 = vpop.f32.mrf.mxu0
    %v4476 = vadd.f32 %v4219, %v4475
    %v4477 = vpop.f32.mrf.mxu0
    %v4478 = vand.u32 %v2478, 4294901760
    %4479 = vmatprep.mubr.f32.mxu0 %v4478
    %v4480 = vand.u32 %v2415, 4294901760
    %4481 = vmatmul.mubr.f32.gmra.mxu0 %v4480
    %v4482 = vpop.f32.mrf.mxu0
    %v4483 = vadd.f32 %v4226, %v4482
    %v4484 = vpop.f32.mrf.mxu0
    %v4485 = vand.u32 %v2481, 4294901760
    %4486 = vmatprep.mubr.f32.mxu0 %v4485
    %v4487 = vand.u32 %v2417, 4294901760
    %4488 = vmatmul.mubr.f32.gmra.mxu0 %v4487
    %v4489 = vpop.f32.mrf.mxu0
    %v4490 = vadd.f32 %v4233, %v4489
    %v4491 = vpop.f32.mrf.mxu0
    %v4492 = vand.u32 %v2484, 4294901760
    %4493 = vmatprep.mubr.f32.mxu0 %v4492
    %v4494 = vand.u32 %v2419, 4294901760
    %4495 = vmatmul.mubr.f32.gmra.mxu0 %v4494
    %v4496 = vpop.f32.mrf.mxu0
    %v4497 = vadd.f32 %v4240, %v4496
    %v4498 = vpop.f32.mrf.mxu0
    %v4499 = vand.u32 %v2487, 4294901760
    %4500 = vmatprep.mubr.f32.mxu0 %v4499
    %v4501 = vand.u32 %v2421, 4294901760
    %4502 = vmatmul.mubr.f32.gmra.mxu0 %v4501
    %v4503 = vpop.f32.mrf.mxu0
    %v4504 = vadd.f32 %v4247, %v4503
    %v4505 = vpop.f32.mrf.mxu0
    %v4506 = vand.u32 %v2490, 4294901760
    %4507 = vmatprep.mubr.f32.mxu0 %v4506
    %v4508 = vand.u32 %v2423, 4294901760
    %4509 = vmatmul.mubr.f32.gmra.mxu0 %v4508
    %v4510 = vpop.f32.mrf.mxu0
    %v4511 = vadd.f32 %v4254, %v4510
    %v4512 = vpop.f32.mrf.mxu0
    %v4513 = vand.u32 %v2493, 4294901760
    %4514 = vmatprep.mubr.f32.mxu0 %v4513
    %v4515 = vand.u32 %v2425, 4294901760
    %4516 = vmatmul.mubr.f32.gmra.mxu0 %v4515
    %v4517 = vpop.f32.mrf.mxu0
    %v4518 = vadd.f32 %v4261, %v4517
    %v4519 = vpop.f32.mrf.mxu0
    %v4520 = vand.u32 %v2496, 4294901760
    %4521 = vmatprep.mubr.f32.mxu0 %v4520
    %v4522 = vand.u32 %v2427, 4294901760
    %4523 = vmatmul.mubr.f32.gmra.mxu0 %v4522
    %v4524 = vpop.f32.mrf.mxu0
    %v4525 = vadd.f32 %v4268, %v4524
    %v4526 = vpop.f32.mrf.mxu0
    %v4527 = vand.u32 %v2499, 4294901760
    %4528 = vmatprep.mubr.f32.mxu0 %v4527
    %v4529 = vand.u32 %v2429, 4294901760
    %4530 = vmatmul.mubr.f32.gmra.mxu0 %v4529
    %v4531 = vpop.f32.mrf.mxu0
    %v4532 = vadd.f32 %v4275, %v4531
    %v4533 = vpop.f32.mrf.mxu0
    %v4534 = vand.u32 %v2502, 4294901760
    %4535 = vmatprep.mubr.f32.mxu0 %v4534
    %v4536 = vand.u32 %v2431, 4294901760
    %4537 = vmatmul.mubr.f32.gmra.mxu0 %v4536
    %v4538 = vpop.f32.mrf.mxu0
    %v4539 = vadd.f32 %v4282, %v4538
    %v4540 = vpop.f32.mrf.mxu0
    %v4541 = vand.u32 %v2505, 4294901760
    %4542 = vmatprep.mubr.f32.mxu0 %v4541
    %v4543 = vand.u32 %v2433, 4294901760
    %4544 = vmatmul.mubr.f32.gmra.mxu0 %v4543
    %v4545 = vpop.f32.mrf.mxu0
    %v4546 = vadd.f32 %v4289, %v4545
    %v4547 = vpop.f32.mrf.mxu0
    %v4548 = vand.u32 %v2508, 4294901760
    %4549 = vmatprep.mubr.f32.mxu0 %v4548
    %v4550 = vand.u32 %v2435, 4294901760
    %4551 = vmatmul.mubr.f32.gmra.mxu0 %v4550
    %v4552 = vpop.f32.mrf.mxu0
    %v4553 = vadd.f32 %v4296, %v4552
    %v4554 = vpop.f32.mrf.mxu0
    %4555 = vdwg.mxu0
    %4556 = vxpose.xlu0.b32.start [1/16] %v4392, 128
    %4557 = vxpose.xlu0.b32.cont [2/16] %v4399, 128
    %4558 = vxpose.xlu0.b32.cont [3/16] %v4406, 128
    %4559 = vxpose.xlu0.b32.cont [4/16] %v4413, 128
    %4560 = vxpose.xlu0.b32.cont [5/16] %v4420, 128
    %4561 = vxpose.xlu0.b32.cont [6/16] %v4427, 128
    %4562 = vxpose.xlu0.b32.cont [7/16] %v4434, 128
    %4563 = vxpose.xlu0.b32.cont [8/16] %v4441, 128
    %4564 = vxpose.xlu0.b32.cont [9/16] %v4448, 128
    %4565 = vxpose.xlu0.b32.cont [10/16] %v4455, 128
    %4566 = vxpose.xlu0.b32.cont [11/16] %v4462, 128
    %4567 = vxpose.xlu0.b32.cont [12/16] %v4469, 128
    %4568 = vxpose.xlu0.b32.cont [13/16] %v4476, 128
    %4569 = vxpose.xlu0.b32.cont [14/16] %v4483, 128
    %4570 = vxpose.xlu0.b32.cont [15/16] %v4490, 128
    %4571 = vxpose.xlu0.b32.end [16/16] %v4497, 128
    %v4572 = vpop.trf.xlu0
    %v4573 = vpop.trf.xlu0
    %v4574 = vpop.trf.xlu0
    %v4575 = vpop.trf.xlu0
    %v4576 = vpop.trf.xlu0
    %v4577 = vpop.trf.xlu0
    %v4578 = vpop.trf.xlu0
    %v4579 = vpop.trf.xlu0
    %v4580 = vpop.trf.xlu0
    %v4581 = vpop.trf.xlu0
    %v4582 = vpop.trf.xlu0
    %v4583 = vpop.trf.xlu0
    %v4584 = vpop.trf.xlu0
    %v4585 = vpop.trf.xlu0
    %v4586 = vpop.trf.xlu0
    %v4587 = vpop.trf.xlu0
    %4588 = vxpose.xlu0.b32.start [1/16] %v4504, 128
    %4589 = vxpose.xlu0.b32.cont [2/16] %v4511, 128
    %4590 = vxpose.xlu0.b32.cont [3/16] %v4518, 128
    %4591 = vxpose.xlu0.b32.cont [4/16] %v4525, 128
    %4592 = vxpose.xlu0.b32.cont [5/16] %v4532, 128
    %4593 = vxpose.xlu0.b32.cont [6/16] %v4539, 128
    %4594 = vxpose.xlu0.b32.cont [7/16] %v4546, 128
    %4595 = vxpose.xlu0.b32.cont [8/16] %v4553, 128
    %4596 = vxpose.xlu0.b32.cont [9/16] 0.0, 128
    %4597 = vxpose.xlu0.b32.cont [10/16] 0.0, 128
    %4598 = vxpose.xlu0.b32.cont [11/16] 0.0, 128
    %4599 = vxpose.xlu0.b32.cont [12/16] 0.0, 128
    %4600 = vxpose.xlu0.b32.cont [13/16] 0.0, 128
    %4601 = vxpose.xlu0.b32.cont [14/16] 0.0, 128
    %4602 = vxpose.xlu0.b32.cont [15/16] 0.0, 128
    %4603 = vxpose.xlu0.b32.end [16/16] 0.0, 128
    %v4604 = vpop.trf.xlu0
    %v4605 = vpop.trf.xlu0
    %v4606 = vpop.trf.xlu0
    %v4607 = vpop.trf.xlu0
    %v4608 = vpop.trf.xlu0
    %v4609 = vpop.trf.xlu0
    %v4610 = vpop.trf.xlu0
    %v4611 = vpop.trf.xlu0
    %v4612 = vpop.trf.xlu0
    %v4613 = vpop.trf.xlu0
    %v4614 = vpop.trf.xlu0
    %v4615 = vpop.trf.xlu0
    %v4616 = vpop.trf.xlu0
    %v4617 = vpop.trf.xlu0
    %v4618 = vpop.trf.xlu0
    %v4619 = vpop.trf.xlu0
    %4620 = vst [vmem:[%s8] sm:$0xff] %v4572
    %4621 = vst.msk [vmem:[%s8 + $0x8] sm:$0xff] %vm2437, %v4604
    %4622 = vst [vmem:[%s8 + $0x10] sm:$0xff] %v4573
    %4623 = vst.msk [vmem:[%s8 + $0x18] sm:$0xff] %vm2437, %v4605
    %4624 = vst [vmem:[%s8 + $0x20] sm:$0xff] %v4574
    %4625 = vst.msk [vmem:[%s8 + $0x28] sm:$0xff] %vm2437, %v4606
    %4626 = vst [vmem:[%s8 + $0x30] sm:$0xff] %v4575
    %4627 = vst.msk [vmem:[%s8 + $0x38] sm:$0xff] %vm2437, %v4607
    %4628 = vst [vmem:[%s8 + $0x40] sm:$0xff] %v4576
    %4629 = vst.msk [vmem:[%s8 + $0x48] sm:$0xff] %vm2437, %v4608
    %4630 = vst [vmem:[%s8 + $0x50] sm:$0xff] %v4577
    %4631 = vst.msk [vmem:[%s8 + $0x58] sm:$0xff] %vm2437, %v4609
    %4632 = vst [vmem:[%s8 + $0x60] sm:$0xff] %v4578
    %4633 = vst.msk [vmem:[%s8 + $0x68] sm:$0xff] %vm2437, %v4610
    %4634 = vst [vmem:[%s8 + $0x70] sm:$0xff] %v4579
    %4635 = vst.msk [vmem:[%s8 + $0x78] sm:$0xff] %vm2437, %v4611
    %4636 = vst [vmem:[%s8 + $0x80] sm:$0xff] %v4580
    %4637 = vst.msk [vmem:[%s8 + $0x88] sm:$0xff] %vm2437, %v4612
    %4638 = vst [vmem:[%s8 + $0x90] sm:$0xff] %v4581
    %4639 = vst.msk [vmem:[%s8 + $0x98] sm:$0xff] %vm2437, %v4613
    %4640 = vst [vmem:[%s8 + $0xa0] sm:$0xff] %v4582
    %4641 = vst.msk [vmem:[%s8 + $0xa8] sm:$0xff] %vm2437, %v4614
    %4642 = vst [vmem:[%s8 + $0xb0] sm:$0xff] %v4583
    %4643 = vst.msk [vmem:[%s8 + $0xb8] sm:$0xff] %vm2437, %v4615
    %4644 = vst [vmem:[%s8 + $0xc0] sm:$0xff] %v4584
    %4645 = vst.msk [vmem:[%s8 + $0xc8] sm:$0xff] %vm2437, %v4616
    %4646 = vst [vmem:[%s8 + $0xd0] sm:$0xff] %v4585
    %4647 = vst.msk [vmem:[%s8 + $0xd8] sm:$0xff] %vm2437, %v4617
    %4648 = vst [vmem:[%s8 + $0xe0] sm:$0xff] %v4586
    %4649 = vst.msk [vmem:[%s8 + $0xe8] sm:$0xff] %vm2437, %v4618
    %4650 = vst [vmem:[%s8 + $0xf0] sm:$0xff] %v4587
    %4651 = vst.msk [vmem:[%s8 + $0xf8] sm:$0xff] %vm2437, %v4619
    // Predicated region
    $region38: #{tpu_custom_call.1} parent=1 // pred_check
      _
    $region39: #{tpu_custom_call.1} parent=1 // pred_check_branch
      %4653 = sbr.rel (0) target = $region41
    $region40: #{tpu_custom_call.1} parent=1 // pred_region
      _
    $region41: #{tpu_custom_call.1} parent=1 // pred_fallthru
      _
    // Predicated region
    $region42: #{tpu_custom_call.1} parent=1 // pred_check
      _
    $region43: #{tpu_custom_call.1} parent=1 // pred_check_branch
      %4655 = sbr.rel (0) target = $region45
    $region44: #{tpu_custom_call.1} parent=1 // pred_region
      _
    $region45: #{tpu_custom_call.1} parent=1 // pred_fallthru
      _
    %4656 = vsyncpa [#allocation3], 1

</llo_original>
